<compile_context>
chip_gen: v6e
topology: v6e:2x2x1
jax: 0.10.0
libtpu: 0.0.40
codegen_flags: <defaults>
</compile_context>

<pallas_src>
import functools
import math

import jax
import jax.numpy as jnp
from jax import lax
from jax.experimental import pallas as pl
from jax.experimental.pallas import tpu as pltpu

VMEM_LIMIT = 48 * 1024 * 1024


# ---------------------------------------------------------------------------
# Kernel 1: K-tiled matmul for the per-view fc (512*7*7 -> embed_dim).
# bf16 streaming, f32 accumulation directly in the resident output block.
# ---------------------------------------------------------------------------
def fc_matmul_kernel(x_ref, w_ref, b_ref, o_ref):
    k = pl.program_id(0)

    @pl.when(k == 0)
    def _():
        o_ref[...] = jnp.zeros_like(o_ref)

    o_ref[...] += jnp.dot(x_ref[...], w_ref[...],
                          preferred_element_type=jnp.float32)

    @pl.when(k == pl.num_programs(0) - 1)
    def _():
        o_ref[...] += b_ref[...]


def fc_project(x_flat, w, b, *, tk=3584):
    M, K = x_flat.shape
    N = w.shape[1]
    assert K % tk == 0, (K, tk)
    grid_spec = pltpu.PrefetchScalarGridSpec(
        num_scalar_prefetch=0,
        grid=(K // tk,),
        in_specs=[
            pl.BlockSpec((M, tk), lambda k: (0, k)),
            pl.BlockSpec((tk, N), lambda k: (k, 0)),
            pl.BlockSpec((1, N), lambda k: (0, 0)),
        ],
        out_specs=pl.BlockSpec((M, N), lambda k: (0, 0)),
    )
    return pl.pallas_call(
        fc_matmul_kernel,
        out_shape=jax.ShapeDtypeStruct((M, N), jnp.float32),
        grid_spec=grid_spec,
        compiler_params=pltpu.CompilerParams(
            dimension_semantics=("arbitrary",),
            vmem_limit_bytes=VMEM_LIMIT),
    )(x_flat.astype(jnp.bfloat16), w.astype(jnp.bfloat16),
      b.reshape(1, N).astype(jnp.float32))


# ---------------------------------------------------------------------------
# Kernel 2: one pallas_call per attention *stage* (L stacked layers).
# grid=(L,): bf16 layer weights are streamed / double-buffered across the grid
# axis; the (B*S, D) activation lives in the resident output block.
# ---------------------------------------------------------------------------
def _layer_norm(x, g, b, eps=1e-5):
    mu = jnp.mean(x, axis=-1, keepdims=True)
    xc = x - mu
    var = jnp.mean(xc * xc, axis=-1, keepdims=True)
    return xc * lax.rsqrt(var + eps) * g + b


def stage_kernel(x_ref, mask_ref, ln1_g, ln1_b, wqkv_ref, bqkv_ref,
                 wo_ref, bo_ref, ln2_g, ln2_b, w1_ref, b1_ref,
                 w2_ref, b2_ref, o_ref, *, num_heads, head_dim):
    D = num_heads * head_dim
    l = pl.program_id(0)

    # Activation is DMA'd from HBM only once; it stays resident in the output
    # block (constant block index) for all subsequent layers.
    @pl.when(l == 0)
    def _():
        o_ref[...] = x_ref[...]

    x = o_ref[...]                                     # (B*S, D)

    # --- LayerNorm 1 + fused QKV projection (lane-dense (D, 3D) matmul) -----
    xn = _layer_norm(x, ln1_g[...], ln1_b[...])
    qkv = jnp.dot(xn, wqkv_ref[...].astype(jnp.float32),
                  preferred_element_type=jnp.float32) + bqkv_ref[...]
    q = qkv[:, 0:D]
    k = qkv[:, D:2 * D]
    v = qkv[:, 2 * D:3 * D]

    # Additive block-diagonal mask (precomputed outside) removes cross-batch
    # attention, so the batch can stay folded into the matmul rows.
    neg_mask = mask_ref[...]

    # Per-head loop: S and head_dim are tiny and the layer is weight-DMA
    # bound, so these small MXU ops are not on the critical path.
    scale = 1.0 / math.sqrt(head_dim)
    heads = []
    for h in range(num_heads):
        sl = slice(h * head_dim, (h + 1) * head_dim)
        qh = q[:, sl] * scale                          # (B*S, Dh)
        kh = k[:, sl]
        vh = v[:, sl]
        s = lax.dot_general(qh, kh, (((1,), (1,)), ((), ())),
                            preferred_element_type=jnp.float32) + neg_mask
        s = s - jnp.max(s, axis=-1, keepdims=True)
        p = jnp.exp(s)
        p = p / jnp.sum(p, axis=-1, keepdims=True)
        heads.append(jnp.dot(p, vh, preferred_element_type=jnp.float32))
    attn = jnp.concatenate(heads, axis=-1)             # (B*S, D)
    attn = jnp.dot(attn, wo_ref[...].astype(jnp.float32),
                   preferred_element_type=jnp.float32) + bo_ref[...]
    x = x + attn                                       # residual 1

    # --- LayerNorm 2 + feed-forward -----------------------------------------
    xn2 = _layer_norm(x, ln2_g[...], ln2_b[...])
    h1 = jnp.dot(xn2, w1_ref[...].astype(jnp.float32),
                 preferred_element_type=jnp.float32) + b1_ref[...]
    h1 = jnp.maximum(h1, 0.0)                          # ReLU (dropout = eval)
    ffn = jnp.dot(h1, w2_ref[...].astype(jnp.float32),
                  preferred_element_type=jnp.float32) + b2_ref[...]
    o_ref[...] = x + ffn                               # residual 2


def attn_stage(x, sp, *, num_heads):
    B, S, D = x.shape
    L = sp["wqkv"].shape[0]
    BS = B * S

    # Block-diagonal additive mask (0 within a batch element, -1e30 across).
    bid = jnp.arange(BS, dtype=jnp.int32) // S
    neg_mask = jnp.where(bid[:, None] == bid[None, :], 0.0, -1e30)
    neg_mask = neg_mask.astype(jnp.float32)

    kernel = functools.partial(stage_kernel, num_heads=num_heads,
                               head_dim=D // num_heads)

    def wspec(r, c):
        return pl.BlockSpec((pl.Squeezed(), r, c), lambda l: (l, 0, 0))

    grid_spec = pltpu.PrefetchScalarGridSpec(
        num_scalar_prefetch=0,
        grid=(L,),
        in_specs=[
            pl.BlockSpec((BS, D), lambda l: (0, 0)),    # x (resident input)
            pl.BlockSpec((BS, BS), lambda l: (0, 0)),   # batch mask (resident)
            wspec(1, D), wspec(1, D),                   # LN1
            wspec(D, 3 * D), wspec(1, 3 * D),           # fused QKV
            wspec(D, D), wspec(1, D),                   # out proj
            wspec(1, D), wspec(1, D),                   # LN2
            wspec(D, D), wspec(1, D),                   # FFN 1
            wspec(D, D), wspec(1, D),                   # FFN 2
        ],
        out_specs=pl.BlockSpec((BS, D), lambda l: (0, 0)),
    )
    out = pl.pallas_call(
        kernel,
        out_shape=jax.ShapeDtypeStruct((BS, D), jnp.float32),
        grid_spec=grid_spec,
        compiler_params=pltpu.CompilerParams(
            dimension_semantics=("arbitrary",),   # sequential over layers
            vmem_limit_bytes=VMEM_LIMIT),
    )(x.reshape(BS, D), neg_mask,
      sp["ln1_g"], sp["ln1_b"],
      sp["wqkv"], sp["bqkv"],
      sp["wo"], sp["bo"],
      sp["ln2_g"], sp["ln2_b"],
      sp["w1"], sp["b1"],
      sp["w2"], sp["b2"])
    return out.reshape(B, S, D)


def stack_layer_params(layers):
    """Stack per-layer params along a leading L axis; bf16 for weight matrices."""
    D = layers[0]["wqkv"].shape[0]
    stack = lambda name: jnp.stack([lp[name] for lp in layers])
    return {
        "ln1_g": stack("ln1_g").reshape(-1, 1, D),
        "ln1_b": stack("ln1_b").reshape(-1, 1, D),
        "wqkv": stack("wqkv").astype(jnp.bfloat16),        # (L, D, 3D)
        "bqkv": stack("bqkv").reshape(-1, 1, 3 * D),
        "wo": stack("wo").astype(jnp.bfloat16),            # (L, D, D)
        "bo": stack("bo").reshape(-1, 1, D),
        "ln2_g": stack("ln2_g").reshape(-1, 1, D),
        "ln2_b": stack("ln2_b").reshape(-1, 1, D),
        "w1": stack("w1").astype(jnp.bfloat16),
        "b1": stack("b1").reshape(-1, 1, D),
        "w2": stack("w2").astype(jnp.bfloat16),
        "b2": stack("b2").reshape(-1, 1, D),
    }


# ---------------------------------------------------------------------------
# Full MHSAN forward (glue ops: reshape / concat / PE add / mean / topk /
# gather / max / tiny classifier stay in plain JAX).
# ---------------------------------------------------------------------------
def mhsan_forward(x_feat, params, *, num_heads, top_k):
    B, V = x_feat.shape[:2]
    D = params["class_token"].shape[-1]

    x = x_feat.reshape(B * V, -1)                             # (B*V, 25088)
    x = fc_project(x, params["fc_w"], params["fc_b"])         # Pallas (bf16 stream)
    x = x.reshape(B, V, D)

    cls = jnp.broadcast_to(params["class_token"], (B, 1, D))
    x = jnp.concatenate([cls, x], axis=1)                     # (B, V+1, D)
    x = x + params["pos_emb"]                                 # positional enc.

    stage1 = stack_layer_params(params["layers1"])
    stage2 = stack_layer_params(params["layers2"])

    x = attn_stage(x, stage1, num_heads=num_heads)            # Pallas (3 layers)

    cls_scores = jnp.mean(x[:, 1:, :], axis=-1)               # (B, V)
    _, top_idx = lax.top_k(cls_scores, top_k)                 # (B, K)
    gathered = jnp.take_along_axis(x[:, 1:, :], top_idx[:, :, None], axis=1)
    selected = jnp.concatenate([x[:, :1, :], gathered], axis=1)   # (B, K+1, D)

    selected = attn_stage(selected, stage2, num_heads=num_heads)  # Pallas

    global_feature = jnp.max(x, axis=1)                       # (B, D)
    discriminative_feature = jnp.max(selected, axis=1)         # (B, D)
    final_feature = jnp.concatenate([global_feature, discriminative_feature],
                                    axis=1)                   # (B, 2D)
    # Tiny classifier: plain XLA (a kernel would be pure launch overhead).
    output = jnp.dot(final_feature, params["cls_w"],
                     precision=lax.Precision.HIGHEST) + params["cls_b"]
    return output, final_feature


# ---------------------------------------------------------------------------
# Pure-JAX reference (same math, same bf16 weight quantization) for checking.
# ---------------------------------------------------------------------------
def mhsan_ref(x_feat, params, *, num_heads, top_k):
    P = lax.Precision.HIGHEST
    qz = lambda w: w.astype(jnp.bfloat16).astype(jnp.float32)  # match streaming dtype
    B, V = x_feat.shape[:2]
    D = params["class_token"].shape[-1]
    dh = D // num_heads

    def ln(v, g, b):
        mu = v.mean(-1, keepdims=True)
        var = ((v - mu) ** 2).mean(-1, keepdims=True)
        return (v - mu) / jnp.sqrt(var + 1e-5) * g + b

    def layer_ref(x, lp):
        S = x.shape[1]
        xn = ln(x, lp["ln1_g"], lp["ln1_b"])
        qkv = jnp.einsum("bsd,de->bse", xn, qz(lp["wqkv"]), precision=P) + lp["bqkv"]
        q, k, v = jnp.split(qkv, 3, axis=-1)
        sh = lambda t: t.reshape(B, S, num_heads, dh).transpose(0, 2, 1, 3)
        q, k, v = sh(q), sh(k), sh(v)
        s = jnp.einsum("bhqd,bhkd->bhqk", q, k, precision=P) / math.sqrt(dh)
        p = jax.nn.softmax(s, axis=-1)
        a = jnp.einsum("bhqk,bhkd->bhqd", p, v, precision=P)
        a = a.transpose(0, 2, 1, 3).reshape(B, S, D)
        a = jnp.einsum("bsd,de->bse", a, qz(lp["wo"]), precision=P) + lp["bo"]
        x = x + a
        xn = ln(x, lp["ln2_g"], lp["ln2_b"])
        h = jnp.maximum(
            jnp.einsum("bsd,de->bse", xn, qz(lp["w1"]), precision=P) + lp["b1"], 0.0)
        f = jnp.einsum("bsd,de->bse", h, qz(lp["w2"]), precision=P) + lp["b2"]
        return x + f

    x = x_feat.reshape(B * V, -1)
    xq = x.astype(jnp.bfloat16).astype(jnp.float32)
    x = jnp.dot(xq, qz(params["fc_w"]), precision=P) + params["fc_b"]
    x = x.reshape(B, V, D)
    cls = jnp.broadcast_to(params["class_token"], (B, 1, D))
    x = jnp.concatenate([cls, x], axis=1) + params["pos_emb"]
    for lp in params["layers1"]:
        x = layer_ref(x, lp)
    scores = jnp.mean(x[:, 1:, :], axis=-1)
    _, idx = lax.top_k(scores, top_k)
    sel = jnp.concatenate(
        [x[:, :1, :], jnp.take_along_axis(x[:, 1:, :], idx[:, :, None], axis=1)],
        axis=1)
    for lp in params["layers2"]:
        sel = layer_ref(sel, lp)
    gf = jnp.max(x, axis=1)
    df = jnp.max(sel, axis=1)
    ff = jnp.concatenate([gf, df], axis=1)
    out = jnp.dot(ff, params["cls_w"], precision=P) + params["cls_b"]
    return out, ff


# ---------------------------------------------------------------------------
# Deterministic parameter init (weights stored pre-transposed: x @ W form).
# ---------------------------------------------------------------------------
def init_params(key, *, num_views, embed_dim, num_heads, num_layers,
                feat_dim, num_classes):
    D = embed_dim
    kit = iter(jax.random.split(key, 128))

    def dense(fan_in, shape):
        return (1.0 / math.sqrt(fan_in)) * jax.random.normal(
            next(kit), shape, jnp.float32)

    def bias(shape):
        return 0.02 * jax.random.normal(next(kit), shape, jnp.float32)

    def layer_params():
        return {
            "ln1_g": jnp.ones((D,), jnp.float32),
            "ln1_b": jnp.zeros((D,), jnp.float32),
            "wqkv": dense(D, (D, 3 * D)),
            "bqkv": bias((3 * D,)),
            "wo": dense(D, (D, D)),
            "bo": bias((D,)),
            "ln2_g": jnp.ones((D,), jnp.float32),
            "ln2_b": jnp.zeros((D,), jnp.float32),
            "w1": dense(D, (D, D)),
            "b1": bias((D,)),
            "w2": dense(D, (D, D)),
            "b2": bias((D,)),
        }

    # Sinusoidal positional encoding, exactly as in the PyTorch module.
    S = num_views + 1
    position = jnp.arange(S, dtype=jnp.float32)[:, None]
    div_term = jnp.exp(jnp.arange(0, D, 2, dtype=jnp.float32)
                       * (-(math.log(10000.0) / D)))
    pe = jnp.zeros((S, D), jnp.float32)
    pe = pe.at[:, 0::2].set(jnp.sin(position * div_term))
    pe = pe.at[:, 1::2].set(jnp.cos(position * div_term))

    return {
        "fc_w": dense(feat_dim, (feat_dim, D)),
        "fc_b": bias((D,)),
        "class_token": jax.random.normal(next(kit), (1, 1, D), jnp.float32),
        "pos_emb": pe[None],                      # (1, V+1, D)
        "layers1": [layer_params() for _ in range(num_layers)],
        "layers2": [layer_params() for _ in range(num_layers)],
        "cls_w": dense(2 * D, (2 * D, num_classes)),
        "cls_b": bias((num_classes,)),
    }


if __name__ == "__main__":
    B, V, TOP_K = 2, 12, 6
    D, HEADS, LAYERS, CLASSES = 512, 8, 3, 40
    FC_C, FC_H, FC_W = 512, 7, 7          # VGG16 feature-map shape per view

    key = jax.random.PRNGKey(0)
    pkey, xkey = jax.random.split(key)
    params = init_params(pkey, num_views=V, embed_dim=D, num_heads=HEADS,
                         num_layers=LAYERS, feat_dim=FC_C * FC_H * FC_W,
                         num_classes=CLASSES)
    # Pre-extracted VGG16 features (backbone itself is untranslatable here).
    x_feat = jax.random.normal(xkey, (B, V, FC_C, FC_H, FC_W), jnp.float32)

    out, feat = mhsan_forward(x_feat, params, num_heads=HEADS, top_k=TOP_K)
    out = jax.block_until_ready(out)
    feat = jax.block_until_ready(feat)

    ref_out, ref_feat = mhsan_ref(x_feat, params, num_heads=HEADS, top_k=TOP_K)
    ref_out = jax.block_until_ready(ref_out)
    ref_feat = jax.block_until_ready(ref_feat)

    assert out.shape == (B, CLASSES), out.shape
    assert feat.shape == (B, 2 * D), feat.shape
    assert jnp.allclose(feat, ref_feat, atol=5e-3, rtol=5e-3), \
        float(jnp.abs(feat - ref_feat).max())
    assert jnp.allclose(out, ref_out, atol=5e-3, rtol=5e-3), \
        float(jnp.abs(out - ref_out).max())

    print("KERNEL_OK")
</pallas_src>

<mosaic_0001>
module attributes {stable_mosaic.version = 11 : i64} {
  func.func @fc_matmul_kernel(%arg0: i32, %arg1: memref<24x3584xbf16, #tpu.memory_space<vmem>>, %arg2: memref<3584x512xbf16, #tpu.memory_space<vmem>>, %arg3: memref<1x512xf32, #tpu.memory_space<vmem>>, %arg4: memref<24x512xf32, #tpu.memory_space<vmem>>) attributes {dimension_semantics = [#tpu.dimension_semantics<arbitrary>], iteration_bounds = array<i64: 7>, scalar_prefetch = 0 : i64, scratch_operands = 0 : i64, tpu.core_type = #tpu.core_type<tc>, window_params = [{transform_indices = @transform_0, window_bounds = array<i64: 24, 3584>}, {transform_indices = @transform_1, window_bounds = array<i64: 3584, 512>}, {pipeline_mode = #tpu.pipeline_mode<synchronous>, transform_indices = @transform_2, window_bounds = array<i64: 1, 512>}, {pipeline_mode = #tpu.pipeline_mode<synchronous>, transform_indices = @transform_3, window_bounds = array<i64: 24, 512>}]} {
    %c0_i32 = arith.constant 0 : i32
    %0 = arith.cmpi eq, %arg0, %c0_i32 : i32
    %1 = arith.extui %0 : i1 to i32
    %c0_i32_0 = arith.constant 0 : i32
    %2 = arith.cmpi ne, %1, %c0_i32_0 : i32
    scf.if %2 {
      %cst_9 = arith.constant 0.000000e+00 : f32
      %12 = vector.broadcast %cst_9 : f32 to vector<24x512xf32>
      %c0_10 = arith.constant 0 : index
      %c0_11 = arith.constant 0 : index
      %13 = vector.load %arg4[%c0_10, %c0_11] : memref<24x512xf32, #tpu.memory_space<vmem>>, vector<24x512xf32>
      tpu.vector_store %arg4[%c0_10, %c0_11], %12 {strides = array<i32>} : memref<24x512xf32, #tpu.memory_space<vmem>>, vector<24x512xf32>,
    } else {
    }
    %c0 = arith.constant 0 : index
    %c0_1 = arith.constant 0 : index
    %3 = vector.load %arg4[%c0, %c0_1] : memref<24x512xf32, #tpu.memory_space<vmem>>, vector<24x512xf32>
    %c0_2 = arith.constant 0 : index
    %c0_3 = arith.constant 0 : index
    %4 = vector.load %arg1[%c0_2, %c0_3] : memref<24x3584xbf16, #tpu.memory_space<vmem>>, vector<24x3584xbf16>
    %c0_4 = arith.constant 0 : index
    %c0_5 = arith.constant 0 : index
    %5 = vector.load %arg2[%c0_4, %c0_5] : memref<3584x512xbf16, #tpu.memory_space<vmem>>, vector<3584x512xbf16>
    %cst = arith.constant dense<0.000000e+00> : vector<24x512xf32>
    %6 = tpu.matmul %4, %5, %cst {dimension_numbers = #tpu.dot_dimension_numbers<[1], [0], [0], [1], [0, 0, 1, 1], [], []>} : vector<24x3584xbf16>, vector<3584x512xbf16>, vector<24x512xf32> -> vector<24x512xf32>
    %7 = arith.addf %3, %6 : vector<24x512xf32>
    %c0_6 = arith.constant 0 : index
    %c0_7 = arith.constant 0 : index
    %8 = vector.load %arg4[%c0_6, %c0_7] : memref<24x512xf32, #tpu.memory_space<vmem>>, vector<24x512xf32>
    tpu.vector_store %arg4[%c0_6, %c0_7], %7 {strides = array<i32>} : memref<24x512xf32, #tpu.memory_space<vmem>>, vector<24x512xf32>,
    %c6_i32 = arith.constant 6 : i32
    %9 = arith.cmpi eq, %arg0, %c6_i32 : i32
    %10 = arith.extui %9 : i1 to i32
    %c0_i32_8 = arith.constant 0 : i32
    %11 = arith.cmpi ne, %10, %c0_i32_8 : i32
    scf.if %11 {
      %c0_9 = arith.constant 0 : index
      %c0_10 = arith.constant 0 : index
      %12 = vector.load %arg4[%c0_9, %c0_10] : memref<24x512xf32, #tpu.memory_space<vmem>>, vector<24x512xf32>
      %c0_11 = arith.constant 0 : index
      %c0_12 = arith.constant 0 : index
      %13 = vector.load %arg3[%c0_11, %c0_12] : memref<1x512xf32, #tpu.memory_space<vmem>>, vector<1x512xf32>
      %14 = vector.broadcast %13 : vector<1x512xf32> to vector<24x512xf32>
      %15 = arith.addf %12, %14 : vector<24x512xf32>
      %c0_13 = arith.constant 0 : index
      %c0_14 = arith.constant 0 : index
      %16 = vector.load %arg4[%c0_13, %c0_14] : memref<24x512xf32, #tpu.memory_space<vmem>>, vector<24x512xf32>
      tpu.vector_store %arg4[%c0_13, %c0_14], %15 {strides = array<i32>} : memref<24x512xf32, #tpu.memory_space<vmem>>, vector<24x512xf32>,
    } else {
    }
    return
  }
  func.func @transform_0(%arg0: i32) -> (i32, i32) {
    %c0_i32 = arith.constant 0 : i32
    %c0_i32_0 = arith.constant 0 : i32
    return %c0_i32, %arg0 : i32, i32
  }
  func.func @transform_1(%arg0: i32) -> (i32, i32) {
    %c0_i32 = arith.constant 0 : i32
    %c0_i32_0 = arith.constant 0 : i32
    return %arg0, %c0_i32 : i32, i32
  }
  func.func @transform_2(%arg0: i32) -> (i32, i32) {
    %c0_i32 = arith.constant 0 : i32
    %c0_i32_0 = arith.constant 0 : i32
    %c0_i32_1 = arith.constant 0 : i32
    return %c0_i32, %c0_i32_0 : i32, i32
  }
  func.func @transform_3(%arg0: i32) -> (i32, i32) {
    %c0_i32 = arith.constant 0 : i32
    %c0_i32_0 = arith.constant 0 : i32
    %c0_i32_1 = arith.constant 0 : i32
    return %c0_i32, %c0_i32_0 : i32, i32
  }
}

</mosaic_0001>

<llo_original>
// kernel: tpu_custom_call.1
$region0: #{tpu_custom_call.1}
  #allocation0 [shape = 'u32[]', space=smem, size = 0x4, offset = 0x4, fixed_abs, tag = 'smem constant byte address 0x4 - core index']
  #allocation1 [shape = 'u32[144,128]{1,0:T(1,128)}', space=vmem, size = 0x12000, scoped, tag = 'internal scratch']
  %s0 = inlined_call_operand.hbm [shape: bf16[24,25088], index: 0, kind: input, shape index: {}]
  %s1 = inlined_call_operand.hbm [shape: bf16[25088,512], index: 1, kind: input, shape index: {}]
  %s2 = inlined_call_operand.hbm [shape: f32[1,512], index: 2, kind: input, shape index: {}]
  %s3 = inlined_call_operand.hbm [shape: f32[24,512], index: 3, kind: output, shape index: {}]
  %s4 = sld [smem:[#allocation0]]
  $region65: #{tpu_custom_call.1} parent=0
    _
  %s6 = ssub.s32 1, %s4
  %s7 = scalar_select 0, %s6, %s4
  $region1: #{tpu_custom_call.1} parent=0
    #allocation2 [shape = 'u8[344064]{0}', space=vmem, size = 0x54000, scoped, tag = 'input window, operand 0']
    #allocation3 [shape = 's32[2]{0}', space=sflag, size = 0x8, scoped, tag = 'scoped memory for tpu_custom_call.1']
    #allocation4 [shape = 's32[2]{0}', space=sflag, size = 0x8, scoped, tag = 'scoped memory for tpu_custom_call.1']
    #allocation5 [shape = 'u8[7340032]{0}', space=vmem, size = 0x700000, scoped, tag = 'input window, operand 1']
    #allocation6 [shape = 's32[2]{0}', space=sflag, size = 0x8, scoped, tag = 'scoped memory for tpu_custom_call.1']
    #allocation7 [shape = 'u8[2048]{0}', space=vmem, size = 0x800, scoped, tag = 'input window, operand 2, single buffered']
    #allocation8 [shape = 'u8[49152]{0}', space=vmem, size = 0xc000, scoped, tag = 'output window, operand 0, single buffered']
    %8 = vsyncpa [#allocation3], 0
    %s9 = scalar_lea.sflag [#allocation3], 1
    %10 = vsyncpa %s9, 0
    %11 = vsyncpa [#allocation6], 0
    %s12 = scalar_lea.sflag [#allocation6], 1
    %13 = vsyncpa %s12, 0
    %14 = vsyncpa [#allocation4], 0
    loop: start=0, step=1, limit=9
    $region2: #{tpu_custom_call.1} parent=1 // loop_pre_header
      _
    $region3: #{tpu_custom_call.1} parent=1 // loop_header
      %s16 = sphi 0, %s20
      %p17 = scmp.ge.s32.totalorder %s16, 9
      %s26 = sphi 0, %s28
      %s29 = sphi 0, %s26
      %s30 = sphi 0, %s29
      %s46 = sphi 0, %s30
      %s52 = sphi 0, %s54
      %s55 = sphi 0, %s52
      %s56 = sphi 0, %s55
      %s72 = sphi 0, %s56
      %s76 = sphi 0, %s76
      %s78 = sphi 0, %s76
      %s79 = sphi 0, %s78
      %s93 = sphi 0, %s79
      %s97 = sphi 0, %s97
      %s99 = sphi 0, %s97
      %s100 = sphi 0, %s99
      %s114 = sphi 0, %s100
    $region4: #{tpu_custom_call.1} parent=1 // loop_header_branch
      %19 = sbr.rel (%p17) target = $region8
    $region5: #{tpu_custom_call.1} parent=1 // loop_body
      %s21 = ssub.s32 %s16, 1
      %s22 = ssub.s32 %s16, 2
      %s23 = sadd.s32 %s16, 1
      %s24 = ssub.s32 %s16, %s23
      %p25 = scmp.eq.s32.totalorder %s24, 0
      %s27 = sadd.s32 %s26, 1
      %s28 = scalar_select %p25, %s26, %s27
      %p31 = pneg %p25
      %p32 = scmp.eq.s32.totalorder %s16, 6
      %p33 = por %p31, %p32
      %p34 = scmp.ne.s32.totalorder %s26, %s29
      %p35 = scmp.eq.s32.totalorder %s16, 0
      %p36 = por %p34, %p35
      %p37 = scmp.ne.s32.totalorder %s26, %s29
      %p38 = scmp.eq.s32.totalorder %s21, 6
      %p39 = por %p37, %p38
      %p40 = scmp.ne.s32.totalorder %s29, %s30
      %p41 = scmp.eq.s32.totalorder %s21, 0
      %p42 = por %p40, %p41
      %p43 = scmp.ne.s32.totalorder %s29, %s30
      %p44 = scmp.eq.s32.totalorder %s22, 6
      %p45 = por %p43, %p44
      %p47 = scmp.ne.s32.totalorder %s30, %s46
      %p48 = scmp.eq.s32.totalorder %s22, 0
      %p49 = por %p47, %p48
      %s50 = ssub.s32 %s16, %s23
      %p51 = scmp.eq.s32.totalorder %s50, 0
      %s53 = sadd.s32 %s52, 1
      %s54 = scalar_select %p51, %s52, %s53
      %p57 = pneg %p51
      %p58 = scmp.eq.s32.totalorder %s16, 6
      %p59 = por %p57, %p58
      %p60 = scmp.ne.s32.totalorder %s52, %s55
      %p61 = scmp.eq.s32.totalorder %s16, 0
      %p62 = por %p60, %p61
      %p63 = scmp.ne.s32.totalorder %s52, %s55
      %p64 = scmp.eq.s32.totalorder %s21, 6
      %p65 = por %p63, %p64
      %p66 = scmp.ne.s32.totalorder %s55, %s56
      %p67 = scmp.eq.s32.totalorder %s21, 0
      %p68 = por %p66, %p67
      %p69 = scmp.ne.s32.totalorder %s55, %s56
      %p70 = scmp.eq.s32.totalorder %s22, 6
      %p71 = por %p69, %p70
      %p73 = scmp.ne.s32.totalorder %s56, %s72
      %p74 = scmp.eq.s32.totalorder %s22, 0
      %p75 = por %p73, %p74
      %s77 = sadd.s32 %s76, 1
      %p80 = scmp.eq.s32.totalorder %s16, 6
      %p81 = scmp.ne.s32.totalorder %s76, %s78
      %p82 = scmp.eq.s32.totalorder %s16, 0
      %p83 = por %p81, %p82
      %p84 = scmp.ne.s32.totalorder %s76, %s78
      %p85 = scmp.eq.s32.totalorder %s21, 6
      %p86 = por %p84, %p85
      %p87 = scmp.ne.s32.totalorder %s78, %s79
      %p88 = scmp.eq.s32.totalorder %s21, 0
      %p89 = por %p87, %p88
      %p90 = scmp.ne.s32.totalorder %s78, %s79
      %p91 = scmp.eq.s32.totalorder %s22, 6
      %p92 = por %p90, %p91
      %p94 = scmp.ne.s32.totalorder %s79, %s93
      %p95 = scmp.eq.s32.totalorder %s22, 0
      %p96 = por %p94, %p95
      %s98 = sadd.s32 %s97, 1
      %p101 = scmp.eq.s32.totalorder %s16, 6
      %p102 = scmp.ne.s32.totalorder %s97, %s99
      %p103 = scmp.eq.s32.totalorder %s16, 0
      %p104 = por %p102, %p103
      %p105 = scmp.ne.s32.totalorder %s97, %s99
      %p106 = scmp.eq.s32.totalorder %s21, 6
      %p107 = por %p105, %p106
      %p108 = scmp.ne.s32.totalorder %s99, %s100
      %p109 = scmp.eq.s32.totalorder %s21, 0
      %p110 = por %p108, %p109
      %p111 = scmp.ne.s32.totalorder %s99, %s100
      %p112 = scmp.eq.s32.totalorder %s22, 6
      %p113 = por %p111, %p112
      %p115 = scmp.ne.s32.totalorder %s100, %s114
      %p116 = scmp.eq.s32.totalorder %s22, 0
      %p117 = por %p115, %p116
      %p118 = scmp.le.s32.totalorder 1, %s16
      %p119 = scmp.lt.s32.totalorder %s16, 8
      %p120 = pnand %p118, %p119
      %p121 = pneg %p120
      // Predicated region
      $region9: #{tpu_custom_call.1} parent=5 // pred_check
        _
      $region10: #{tpu_custom_call.1} parent=5 // pred_check_branch
        %123 = sbr.rel (%p120) target = $region12
      $region11: #{tpu_custom_call.1} parent=5 // pred_region
        %s124 = ssub.s32 %s16, 1
        // Predicated region
        $region13: #{tpu_custom_call.1} parent=11 // pred_check
          %p125 = pneg %p89
        $region14: #{tpu_custom_call.1} parent=11 // pred_check_branch
          %127 = sbr.rel (%p125) target = $region16
        $region15: #{tpu_custom_call.1} parent=11 // pred_region
          %s129 = ssub.s32 64, 64
          %130 = vsyncadd [#allocation6], %s129
          %s132 = sshll.u32 [#allocation7], 4
          %s133 = int_to_ptr.vmem [resolvable:$true] %s132
          %135 = dma.hbm_to_vmem [thread:$0]  %s2, 64, %s133, [#allocation6]
        $region16: #{tpu_custom_call.1} parent=11 // pred_fallthru
          _
      $region12: #{tpu_custom_call.1} parent=5 // pred_fallthru
        _
      %p136 = scmp.lt.s32.totalorder %s16, 7
      // Predicated region
      $region17: #{tpu_custom_call.1} parent=5 // pred_check
        %p137 = pneg %p136
      $region18: #{tpu_custom_call.1} parent=5 // pred_check_branch
        %139 = sbr.rel (%p137) target = $region20
      $region19: #{tpu_custom_call.1} parent=5 // pred_region
        // Predicated region
        $region21: #{tpu_custom_call.1} parent=19 // pred_check
          %p140 = pneg %p36
        $region22: #{tpu_custom_call.1} parent=19 // pred_check_branch
          %142 = sbr.rel (%p140) target = $region24
        $region23: #{tpu_custom_call.1} parent=19 // pred_region
          %s143 = sand.u32 %s26, 1
          %s144 = scalar_lea.sflag [#allocation3], %s143
          %s145 = sand.u32 %s26, 1
          %s146 = smul.addr %s145, 336
          %s147 = scalar_lea.vmem [#allocation2], %s146
          %s148 = smul.u32 28, %s16
          %s150 = ssub.s32 5376, 5376
          %151 = vsyncadd %s144, %s150
          %s152 = smul.addr %s148, 64
          %s153 = scalar_lea.hbm %s0, %s152
          %s154 = sshll.u32 %s147, 4
          %s155 = int_to_ptr.vmem [resolvable:$true] %s154
          %160 = dma.hbm_to_vmem [thread:$0]  %s153, 5376, %s155, %s144, 12544, 1792, 112
        $region24: #{tpu_custom_call.1} parent=19 // pred_fallthru
          _
        // Predicated region
        $region25: #{tpu_custom_call.1} parent=19 // pred_check
          %p161 = pneg %p62
        $region26: #{tpu_custom_call.1} parent=19 // pred_check_branch
          %163 = sbr.rel (%p161) target = $region28
        $region27: #{tpu_custom_call.1} parent=19 // pred_region
          %s164 = sand.u32 %s16, 1
          %s165 = scalar_lea.sflag [#allocation6], %s164
          %s166 = sand.u32 %s52, 1
          %s167 = smul.addr %s166, 7168
          %s168 = scalar_lea.vmem [#allocation5], %s167
          %s169 = smul.u32 448, %s16
          %s171 = ssub.s32 114688, 114688
          %172 = vsyncadd %s165, %s171
          %s173 = smul.addr %s169, 4
          %s174 = smul.addr %s173, 64
          %s175 = scalar_lea.hbm %s1, %s174
          %s176 = sshll.u32 %s168, 4
          %s177 = int_to_ptr.vmem [resolvable:$true] %s176
          %182 = dma.hbm_to_vmem [thread:$0]  %s175, 114688, %s177, %s165, 256, 256, 16
        $region28: #{tpu_custom_call.1} parent=19 // pred_fallthru
          _
      $region20: #{tpu_custom_call.1} parent=5 // pred_fallthru
        _
      %p183 = scmp.le.s32.totalorder 1, %s16
      %p184 = scmp.lt.s32.totalorder %s16, 8
      %p185 = pnand %p183, %p184
      %p186 = pneg %p185
      // Predicated region
      $region29: #{tpu_custom_call.1} parent=5 // pred_check
        _
      $region30: #{tpu_custom_call.1} parent=5 // pred_check_branch
        %188 = sbr.rel (%p185) target = $region32
      $region31: #{tpu_custom_call.1} parent=5 // pred_region
        %s189 = ssub.s32 %s16, 1
        %s190 = sand.u32 %s29, 1
        %s191 = scalar_lea.sflag [#allocation3], %s190
        %s192 = sand.u32 %s29, 1
        %s193 = smul.addr %s192, 336
        %s194 = scalar_lea.vmem [#allocation2], %s193
        // Predicated region
        $region33: #{tpu_custom_call.1} parent=31 // pred_check
          %p195 = pneg %p42
        $region34: #{tpu_custom_call.1} parent=31 // pred_check_branch
          %197 = sbr.rel (%p195) target = $region36
        $region35: #{tpu_custom_call.1} parent=31 // pred_region
          %198 = dma.done %s191, 5376
        $region36: #{tpu_custom_call.1} parent=31 // pred_fallthru
          _
        %s199 = sand.u32 %s21, 1
        %s200 = scalar_lea.sflag [#allocation6], %s199
        %s201 = sand.u32 %s55, 1
        %s202 = smul.addr %s201, 7168
        %s203 = scalar_lea.vmem [#allocation5], %s202
        // Predicated region
        $region37: #{tpu_custom_call.1} parent=31 // pred_check
          %p204 = pneg %p68
        $region38: #{tpu_custom_call.1} parent=31 // pred_check_branch
          %206 = sbr.rel (%p204) target = $region40
        $region39: #{tpu_custom_call.1} parent=31 // pred_region
          %207 = dma.done %s200, 114688
        $region40: #{tpu_custom_call.1} parent=31 // pred_fallthru
          _
        // Predicated region
        $region41: #{tpu_custom_call.1} parent=31 // pred_check
          %p208 = pneg %p89
        $region42: #{tpu_custom_call.1} parent=31 // pred_check_branch
          %210 = sbr.rel (%p208) target = $region44
        $region43: #{tpu_custom_call.1} parent=31 // pred_region
          %211 = dma.done [#allocation6], 64
        $region44: #{tpu_custom_call.1} parent=31 // pred_fallthru
          _
        %s212 = sand.u32 %s29, 1
        %s213 = scalar_lea.sflag [#allocation3], %s212
        %s214 = sand.u32 %s29, 1
        %s215 = smul.addr %s214, 336
        %s216 = scalar_lea.vmem [#allocation2], %s215
        %p217 = pneg %p42
        %p218 = pneg %p39
        %s219 = sand.u32 %s21, 1
        %s220 = scalar_lea.sflag [#allocation6], %s219
        %s221 = sand.u32 %s55, 1
        %s222 = smul.addr %s221, 7168
        %s223 = scalar_lea.vmem [#allocation5], %s222
        %p224 = pneg %p68
        %p225 = pneg %p65
        %p226 = pneg %p89
        %p227 = pneg %p86
        %p228 = pneg %p110
        %p229 = pneg %p107
        %s230 = smul.u32 28, %s21
        %s231 = smul.u32 448, %s21
        %p232 = scmp.eq.s32.totalorder %s21, 0
        // Predicated region
        $region45: #{tpu_custom_call.1} parent=31 // pred_check
          %p233 = pneg %p232
        $region46: #{tpu_custom_call.1} parent=31 // pred_check_branch
          %235 = sbr.rel (%p233) target = $region48
        $region47: #{tpu_custom_call.1} parent=31 // pred_region
          %236 = vst [vmem:[#allocation8] sm:$0xff] 0.0
          %237 = vst [vmem:[#allocation8 + $0x8] sm:$0xff] 0.0
          %238 = vst [vmem:[#allocation8 + $0x10] sm:$0xff] 0.0
          %239 = vst [vmem:[#allocation8 + $0x18] sm:$0xff] 0.0
          %240 = vst [vmem:[#allocation8 + $0x20] sm:$0xff] 0.0
          %241 = vst [vmem:[#allocation8 + $0x28] sm:$0xff] 0.0
          %242 = vst [vmem:[#allocation8 + $0x30] sm:$0xff] 0.0
          %243 = vst [vmem:[#allocation8 + $0x38] sm:$0xff] 0.0
          %244 = vst [vmem:[#allocation8 + $0x40] sm:$0xff] 0.0
          %245 = vst [vmem:[#allocation8 + $0x48] sm:$0xff] 0.0
          %246 = vst [vmem:[#allocation8 + $0x50] sm:$0xff] 0.0
          %247 = vst [vmem:[#allocation8 + $0x58] sm:$0xff] 0.0
        $region48: #{tpu_custom_call.1} parent=31 // pred_fallthru
          _
        %v248 = vld [vmem:[#allocation8] sm:$0xff]
        %v249 = vld [vmem:[#allocation8 + $0x8] sm:$0xff]
        %v250 = vld [vmem:[#allocation8 + $0x10] sm:$0xff]
        %v251 = vld [vmem:[#allocation8 + $0x18] sm:$0xff]
        %v252 = vld [vmem:[#allocation8 + $0x20] sm:$0xff]
        %v253 = vld [vmem:[#allocation8 + $0x28] sm:$0xff]
        %v254 = vld [vmem:[#allocation8 + $0x30] sm:$0xff]
        %v255 = vld [vmem:[#allocation8 + $0x38] sm:$0xff]
        %v256 = vld [vmem:[#allocation8 + $0x40] sm:$0xff]
        %v257 = vld [vmem:[#allocation8 + $0x48] sm:$0xff]
        %v258 = vld [vmem:[#allocation8 + $0x50] sm:$0xff]
        %v259 = vld [vmem:[#allocation8 + $0x58] sm:$0xff]
        %v260 = vld [vmem:[%s194] sm:$0xff]
        %v261 = vld [vmem:[%s194 + $0x8] sm:$0xff]
        %v262 = vld [vmem:[%s194 + $0x10] sm:$0xff]
        %v263 = vld [vmem:[%s194 + $0x18] sm:$0xff]
        %v264 = vld [vmem:[%s194 + $0x20] sm:$0xff]
        %v265 = vld [vmem:[%s194 + $0x28] sm:$0xff]
        %v266 = vld [vmem:[%s194 + $0x30] sm:$0xff]
        %v267 = vld [vmem:[%s194 + $0x38] sm:$0xff]
        %v268 = vld [vmem:[%s194 + $0x40] sm:$0xff]
        %v269 = vld [vmem:[%s194 + $0x48] sm:$0xff]
        %v270 = vld [vmem:[%s194 + $0x50] sm:$0xff]
        %v271 = vld [vmem:[%s194 + $0x58] sm:$0xff]
        %v272 = vld [vmem:[%s194 + $0x60] sm:$0xff]
        %v273 = vld [vmem:[%s194 + $0x68] sm:$0xff]
        %v274 = vld [vmem:[%s194 + $0x70] sm:$0xff]
        %v275 = vld [vmem:[%s194 + $0x78] sm:$0xff]
        %v276 = vld [vmem:[%s194 + $0x80] sm:$0xff]
        %v277 = vld [vmem:[%s194 + $0x88] sm:$0xff]
        %v278 = vld [vmem:[%s194 + $0x90] sm:$0xff]
        %v279 = vld [vmem:[%s194 + $0x98] sm:$0xff]
        %v280 = vld [vmem:[%s194 + $0xa0] sm:$0xff]
        %v281 = vld [vmem:[%s194 + $0xa8] sm:$0xff]
        %v282 = vld [vmem:[%s194 + $0xb0] sm:$0xff]
        %v283 = vld [vmem:[%s194 + $0xb8] sm:$0xff]
        %v284 = vld [vmem:[%s194 + $0xc0] sm:$0xff]
        %v285 = vld [vmem:[%s194 + $0xc8] sm:$0xff]
        %v286 = vld [vmem:[%s194 + $0xd0] sm:$0xff]
        %v287 = vld [vmem:[%s194 + $0xd8] sm:$0xff]
        %v288 = vld [vmem:[%s194 + $0xe0] sm:$0xff]
        %v289 = vld [vmem:[%s194 + $0xe8] sm:$0xff]
        %v290 = vld [vmem:[%s194 + $0xf0] sm:$0xff]
        %v291 = vld [vmem:[%s194 + $0xf8] sm:$0xff]
        %v292 = vld [vmem:[%s194 + $0x100] sm:$0xff]
        %v293 = vld [vmem:[%s194 + $0x108] sm:$0xff]
        %v294 = vld [vmem:[%s194 + $0x110] sm:$0xff]
        %v295 = vld [vmem:[%s194 + $0x118] sm:$0xff]
        %v296 = vld [vmem:[%s194 + $0x120] sm:$0xff]
        %v297 = vld [vmem:[%s194 + $0x128] sm:$0xff]
        %v298 = vld [vmem:[%s194 + $0x130] sm:$0xff]
        %v299 = vld [vmem:[%s194 + $0x138] sm:$0xff]
        %v300 = vld [vmem:[%s194 + $0x140] sm:$0xff]
        %v301 = vld [vmem:[%s194 + $0x148] sm:$0xff]
        %v302 = vld [vmem:[%s203] sm:$0xff]
        %v303 = vld [vmem:[%s203 + $0x8] sm:$0xff]
        %v304 = vld [vmem:[%s203 + $0x10] sm:$0xff]
        %v305 = vld [vmem:[%s203 + $0x18] sm:$0xff]
        %v306 = vld [vmem:[%s203 + $0x20] sm:$0xff]
        %v307 = vld [vmem:[%s203 + $0x28] sm:$0xff]
        %v308 = vld [vmem:[%s203 + $0x30] sm:$0xff]
        %v309 = vld [vmem:[%s203 + $0x38] sm:$0xff]
        %v310 = vld [vmem:[%s203 + $0x40] sm:$0xff]
        %v311 = vld [vmem:[%s203 + $0x48] sm:$0xff]
        %v312 = vld [vmem:[%s203 + $0x50] sm:$0xff]
        %v313 = vld [vmem:[%s203 + $0x58] sm:$0xff]
        %v314 = vld [vmem:[%s203 + $0x60] sm:$0xff]
        %v315 = vld [vmem:[%s203 + $0x68] sm:$0xff]
        %v316 = vld [vmem:[%s203 + $0x70] sm:$0xff]
        %v317 = vld [vmem:[%s203 + $0x78] sm:$0xff]
        %v318 = vld [vmem:[%s203 + $0x80] sm:$0xff]
        %v319 = vld [vmem:[%s203 + $0x88] sm:$0xff]
        %v320 = vld [vmem:[%s203 + $0x90] sm:$0xff]
        %v321 = vld [vmem:[%s203 + $0x98] sm:$0xff]
        %v322 = vld [vmem:[%s203 + $0xa0] sm:$0xff]
        %v323 = vld [vmem:[%s203 + $0xa8] sm:$0xff]
        %v324 = vld [vmem:[%s203 + $0xb0] sm:$0xff]
        %v325 = vld [vmem:[%s203 + $0xb8] sm:$0xff]
        %v326 = vld [vmem:[%s203 + $0xc0] sm:$0xff]
        %v327 = vld [vmem:[%s203 + $0xc8] sm:$0xff]
        %v328 = vld [vmem:[%s203 + $0xd0] sm:$0xff]
        %v329 = vld [vmem:[%s203 + $0xd8] sm:$0xff]
        %v330 = vld [vmem:[%s203 + $0xe0] sm:$0xff]
        %v331 = vld [vmem:[%s203 + $0xe8] sm:$0xff]
        %v332 = vld [vmem:[%s203 + $0xf0] sm:$0xff]
        %v333 = vld [vmem:[%s203 + $0xf8] sm:$0xff]
        %v334 = vld [vmem:[%s203 + $0x100] sm:$0xff]
        %v335 = vld [vmem:[%s203 + $0x108] sm:$0xff]
        %v336 = vld [vmem:[%s203 + $0x110] sm:$0xff]
        %v337 = vld [vmem:[%s203 + $0x118] sm:$0xff]
        %v338 = vld [vmem:[%s203 + $0x120] sm:$0xff]
        %v339 = vld [vmem:[%s203 + $0x128] sm:$0xff]
        %v340 = vld [vmem:[%s203 + $0x130] sm:$0xff]
        %v341 = vld [vmem:[%s203 + $0x138] sm:$0xff]
        %v342 = vld [vmem:[%s203 + $0x140] sm:$0xff]
        %v343 = vld [vmem:[%s203 + $0x148] sm:$0xff]
        %v344 = vld [vmem:[%s203 + $0x150] sm:$0xff]
        %v345 = vld [vmem:[%s203 + $0x158] sm:$0xff]
        %v346 = vld [vmem:[%s203 + $0x160] sm:$0xff]
        %v347 = vld [vmem:[%s203 + $0x168] sm:$0xff]
        %v348 = vld [vmem:[%s203 + $0x170] sm:$0xff]
        %v349 = vld [vmem:[%s203 + $0x178] sm:$0xff]
        %v350 = vld [vmem:[%s203 + $0x180] sm:$0xff]
        %v351 = vld [vmem:[%s203 + $0x188] sm:$0xff]
        %v352 = vld [vmem:[%s203 + $0x190] sm:$0xff]
        %v353 = vld [vmem:[%s203 + $0x198] sm:$0xff]
        %v354 = vld [vmem:[%s203 + $0x1a0] sm:$0xff]
        %v355 = vld [vmem:[%s203 + $0x1a8] sm:$0xff]
        %v356 = vld [vmem:[%s203 + $0x1b0] sm:$0xff]
        %v357 = vld [vmem:[%s203 + $0x1b8] sm:$0xff]
        %v358 = vld [vmem:[%s203 + $0x1c0] sm:$0xff]
        %v359 = vld [vmem:[%s203 + $0x1c8] sm:$0xff]
        %v360 = vld [vmem:[%s203 + $0x1d0] sm:$0xff]
        %v361 = vld [vmem:[%s203 + $0x1d8] sm:$0xff]
        %v362 = vld [vmem:[%s203 + $0x1e0] sm:$0xff]
        %v363 = vld [vmem:[%s203 + $0x1e8] sm:$0xff]
        %v364 = vld [vmem:[%s203 + $0x1f0] sm:$0xff]
        %v365 = vld [vmem:[%s203 + $0x1f8] sm:$0xff]
        %v366 = vld [vmem:[%s203 + $0x200] sm:$0xff]
        %v367 = vld [vmem:[%s203 + $0x208] sm:$0xff]
        %v368 = vld [vmem:[%s203 + $0x210] sm:$0xff]
        %v369 = vld [vmem:[%s203 + $0x218] sm:$0xff]
        %v370 = vld [vmem:[%s203 + $0x220] sm:$0xff]
        %v371 = vld [vmem:[%s203 + $0x228] sm:$0xff]
        %v372 = vld [vmem:[%s203 + $0x230] sm:$0xff]
        %v373 = vld [vmem:[%s203 + $0x238] sm:$0xff]
        %v374 = vld [vmem:[%s203 + $0x240] sm:$0xff]
        %v375 = vld [vmem:[%s203 + $0x248] sm:$0xff]
        %v376 = vld [vmem:[%s203 + $0x250] sm:$0xff]
        %v377 = vld [vmem:[%s203 + $0x258] sm:$0xff]
        %v378 = vld [vmem:[%s203 + $0x260] sm:$0xff]
        %v379 = vld [vmem:[%s203 + $0x268] sm:$0xff]
        %v380 = vld [vmem:[%s203 + $0x270] sm:$0xff]
        %v381 = vld [vmem:[%s203 + $0x278] sm:$0xff]
        %v382 = vld [vmem:[%s203 + $0x280] sm:$0xff]
        %v383 = vld [vmem:[%s203 + $0x288] sm:$0xff]
        %v384 = vld [vmem:[%s203 + $0x290] sm:$0xff]
        %v385 = vld [vmem:[%s203 + $0x298] sm:$0xff]
        %v386 = vld [vmem:[%s203 + $0x2a0] sm:$0xff]
        %v387 = vld [vmem:[%s203 + $0x2a8] sm:$0xff]
        %v388 = vld [vmem:[%s203 + $0x2b0] sm:$0xff]
        %v389 = vld [vmem:[%s203 + $0x2b8] sm:$0xff]
        %v390 = vld [vmem:[%s203 + $0x2c0] sm:$0xff]
        %v391 = vld [vmem:[%s203 + $0x2c8] sm:$0xff]
        %v392 = vld [vmem:[%s203 + $0x2d0] sm:$0xff]
        %v393 = vld [vmem:[%s203 + $0x2d8] sm:$0xff]
        %v394 = vld [vmem:[%s203 + $0x2e0] sm:$0xff]
        %v395 = vld [vmem:[%s203 + $0x2e8] sm:$0xff]
        %v396 = vld [vmem:[%s203 + $0x2f0] sm:$0xff]
        %v397 = vld [vmem:[%s203 + $0x2f8] sm:$0xff]
        %v398 = vld [vmem:[%s203 + $0x300] sm:$0xff]
        %v399 = vld [vmem:[%s203 + $0x308] sm:$0xff]
        %v400 = vld [vmem:[%s203 + $0x310] sm:$0xff]
        %v401 = vld [vmem:[%s203 + $0x318] sm:$0xff]
        %v402 = vld [vmem:[%s203 + $0x320] sm:$0xff]
        %v403 = vld [vmem:[%s203 + $0x328] sm:$0xff]
        %v404 = vld [vmem:[%s203 + $0x330] sm:$0xff]
        %v405 = vld [vmem:[%s203 + $0x338] sm:$0xff]
        %v406 = vld [vmem:[%s203 + $0x340] sm:$0xff]
        %v407 = vld [vmem:[%s203 + $0x348] sm:$0xff]
        %v408 = vld [vmem:[%s203 + $0x350] sm:$0xff]
        %v409 = vld [vmem:[%s203 + $0x358] sm:$0xff]
        %v410 = vld [vmem:[%s203 + $0x360] sm:$0xff]
        %v411 = vld [vmem:[%s203 + $0x368] sm:$0xff]
        %v412 = vld [vmem:[%s203 + $0x370] sm:$0xff]
        %v413 = vld [vmem:[%s203 + $0x378] sm:$0xff]
        %v414 = vld [vmem:[%s203 + $0x380] sm:$0xff]
        %v415 = vld [vmem:[%s203 + $0x388] sm:$0xff]
        %v416 = vld [vmem:[%s203 + $0x390] sm:$0xff]
        %v417 = vld [vmem:[%s203 + $0x398] sm:$0xff]
        %v418 = vld [vmem:[%s203 + $0x3a0] sm:$0xff]
        %v419 = vld [vmem:[%s203 + $0x3a8] sm:$0xff]
        %v420 = vld [vmem:[%s203 + $0x3b0] sm:$0xff]
        %v421 = vld [vmem:[%s203 + $0x3b8] sm:$0xff]
        %v422 = vld [vmem:[%s203 + $0x3c0] sm:$0xff]
        %v423 = vld [vmem:[%s203 + $0x3c8] sm:$0xff]
        %v424 = vld [vmem:[%s203 + $0x3d0] sm:$0xff]
        %v425 = vld [vmem:[%s203 + $0x3d8] sm:$0xff]
        %v426 = vld [vmem:[%s203 + $0x3e0] sm:$0xff]
        %v427 = vld [vmem:[%s203 + $0x3e8] sm:$0xff]
        %v428 = vld [vmem:[%s203 + $0x3f0] sm:$0xff]
        %v429 = vld [vmem:[%s203 + $0x3f8] sm:$0xff]
        %v430 = vld [vmem:[%s203 + $0x400] sm:$0xff]
        %v431 = vld [vmem:[%s203 + $0x408] sm:$0xff]
        %v432 = vld [vmem:[%s203 + $0x410] sm:$0xff]
        %v433 = vld [vmem:[%s203 + $0x418] sm:$0xff]
        %v434 = vld [vmem:[%s203 + $0x420] sm:$0xff]
        %v435 = vld [vmem:[%s203 + $0x428] sm:$0xff]
        %v436 = vld [vmem:[%s203 + $0x430] sm:$0xff]
        %v437 = vld [vmem:[%s203 + $0x438] sm:$0xff]
        %v438 = vld [vmem:[%s203 + $0x440] sm:$0xff]
        %v439 = vld [vmem:[%s203 + $0x448] sm:$0xff]
        %v440 = vld [vmem:[%s203 + $0x450] sm:$0xff]
        %v441 = vld [vmem:[%s203 + $0x458] sm:$0xff]
        %v442 = vld [vmem:[%s203 + $0x460] sm:$0xff]
        %v443 = vld [vmem:[%s203 + $0x468] sm:$0xff]
        %v444 = vld [vmem:[%s203 + $0x470] sm:$0xff]
        %v445 = vld [vmem:[%s203 + $0x478] sm:$0xff]
        %v446 = vld [vmem:[%s203 + $0x480] sm:$0xff]
        %v447 = vld [vmem:[%s203 + $0x488] sm:$0xff]
        %v448 = vld [vmem:[%s203 + $0x490] sm:$0xff]
        %v449 = vld [vmem:[%s203 + $0x498] sm:$0xff]
        %v450 = vld [vmem:[%s203 + $0x4a0] sm:$0xff]
        %v451 = vld [vmem:[%s203 + $0x4a8] sm:$0xff]
        %v452 = vld [vmem:[%s203 + $0x4b0] sm:$0xff]
        %v453 = vld [vmem:[%s203 + $0x4b8] sm:$0xff]
        %v454 = vld [vmem:[%s203 + $0x4c0] sm:$0xff]
        %v455 = vld [vmem:[%s203 + $0x4c8] sm:$0xff]
        %v456 = vld [vmem:[%s203 + $0x4d0] sm:$0xff]
        %v457 = vld [vmem:[%s203 + $0x4d8] sm:$0xff]
        %v458 = vld [vmem:[%s203 + $0x4e0] sm:$0xff]
        %v459 = vld [vmem:[%s203 + $0x4e8] sm:$0xff]
        %v460 = vld [vmem:[%s203 + $0x4f0] sm:$0xff]
        %v461 = vld [vmem:[%s203 + $0x4f8] sm:$0xff]
        %v462 = vld [vmem:[%s203 + $0x500] sm:$0xff]
        %v463 = vld [vmem:[%s203 + $0x508] sm:$0xff]
        %v464 = vld [vmem:[%s203 + $0x510] sm:$0xff]
        %v465 = vld [vmem:[%s203 + $0x518] sm:$0xff]
        %v466 = vld [vmem:[%s203 + $0x520] sm:$0xff]
        %v467 = vld [vmem:[%s203 + $0x528] sm:$0xff]
        %v468 = vld [vmem:[%s203 + $0x530] sm:$0xff]
        %v469 = vld [vmem:[%s203 + $0x538] sm:$0xff]
        %v470 = vld [vmem:[%s203 + $0x540] sm:$0xff]
        %v471 = vld [vmem:[%s203 + $0x548] sm:$0xff]
        %v472 = vld [vmem:[%s203 + $0x550] sm:$0xff]
        %v473 = vld [vmem:[%s203 + $0x558] sm:$0xff]
        %v474 = vld [vmem:[%s203 + $0x560] sm:$0xff]
        %v475 = vld [vmem:[%s203 + $0x568] sm:$0xff]
        %v476 = vld [vmem:[%s203 + $0x570] sm:$0xff]
        %v477 = vld [vmem:[%s203 + $0x578] sm:$0xff]
        %v478 = vld [vmem:[%s203 + $0x580] sm:$0xff]
        %v479 = vld [vmem:[%s203 + $0x588] sm:$0xff]
        %v480 = vld [vmem:[%s203 + $0x590] sm:$0xff]
        %v481 = vld [vmem:[%s203 + $0x598] sm:$0xff]
        %v482 = vld [vmem:[%s203 + $0x5a0] sm:$0xff]
        %v483 = vld [vmem:[%s203 + $0x5a8] sm:$0xff]
        %v484 = vld [vmem:[%s203 + $0x5b0] sm:$0xff]
        %v485 = vld [vmem:[%s203 + $0x5b8] sm:$0xff]
        %v486 = vld [vmem:[%s203 + $0x5c0] sm:$0xff]
        %v487 = vld [vmem:[%s203 + $0x5c8] sm:$0xff]
        %v488 = vld [vmem:[%s203 + $0x5d0] sm:$0xff]
        %v489 = vld [vmem:[%s203 + $0x5d8] sm:$0xff]
        %v490 = vld [vmem:[%s203 + $0x5e0] sm:$0xff]
        %v491 = vld [vmem:[%s203 + $0x5e8] sm:$0xff]
        %v492 = vld [vmem:[%s203 + $0x5f0] sm:$0xff]
        %v493 = vld [vmem:[%s203 + $0x5f8] sm:$0xff]
        %v494 = vld [vmem:[%s203 + $0x600] sm:$0xff]
        %v495 = vld [vmem:[%s203 + $0x608] sm:$0xff]
        %v496 = vld [vmem:[%s203 + $0x610] sm:$0xff]
        %v497 = vld [vmem:[%s203 + $0x618] sm:$0xff]
        %v498 = vld [vmem:[%s203 + $0x620] sm:$0xff]
        %v499 = vld [vmem:[%s203 + $0x628] sm:$0xff]
        %v500 = vld [vmem:[%s203 + $0x630] sm:$0xff]
        %v501 = vld [vmem:[%s203 + $0x638] sm:$0xff]
        %v502 = vld [vmem:[%s203 + $0x640] sm:$0xff]
        %v503 = vld [vmem:[%s203 + $0x648] sm:$0xff]
        %v504 = vld [vmem:[%s203 + $0x650] sm:$0xff]
        %v505 = vld [vmem:[%s203 + $0x658] sm:$0xff]
        %v506 = vld [vmem:[%s203 + $0x660] sm:$0xff]
        %v507 = vld [vmem:[%s203 + $0x668] sm:$0xff]
        %v508 = vld [vmem:[%s203 + $0x670] sm:$0xff]
        %v509 = vld [vmem:[%s203 + $0x678] sm:$0xff]
        %v510 = vld [vmem:[%s203 + $0x680] sm:$0xff]
        %v511 = vld [vmem:[%s203 + $0x688] sm:$0xff]
        %v512 = vld [vmem:[%s203 + $0x690] sm:$0xff]
        %v513 = vld [vmem:[%s203 + $0x698] sm:$0xff]
        %v514 = vld [vmem:[%s203 + $0x6a0] sm:$0xff]
        %v515 = vld [vmem:[%s203 + $0x6a8] sm:$0xff]
        %v516 = vld [vmem:[%s203 + $0x6b0] sm:$0xff]
        %v517 = vld [vmem:[%s203 + $0x6b8] sm:$0xff]
        %v518 = vld [vmem:[%s203 + $0x6c0] sm:$0xff]
        %v519 = vld [vmem:[%s203 + $0x6c8] sm:$0xff]
        %v520 = vld [vmem:[%s203 + $0x6d0] sm:$0xff]
        %v521 = vld [vmem:[%s203 + $0x6d8] sm:$0xff]
        %v522 = vld [vmem:[%s203 + $0x6e0] sm:$0xff]
        %v523 = vld [vmem:[%s203 + $0x6e8] sm:$0xff]
        %v524 = vld [vmem:[%s203 + $0x6f0] sm:$0xff]
        %v525 = vld [vmem:[%s203 + $0x6f8] sm:$0xff]
        %v526 = vld [vmem:[%s203 + $0x700] sm:$0xff]
        %v527 = vld [vmem:[%s203 + $0x708] sm:$0xff]
        %v528 = vld [vmem:[%s203 + $0x710] sm:$0xff]
        %v529 = vld [vmem:[%s203 + $0x718] sm:$0xff]
        %v530 = vld [vmem:[%s203 + $0x720] sm:$0xff]
        %v531 = vld [vmem:[%s203 + $0x728] sm:$0xff]
        %v532 = vld [vmem:[%s203 + $0x730] sm:$0xff]
        %v533 = vld [vmem:[%s203 + $0x738] sm:$0xff]
        %v534 = vld [vmem:[%s203 + $0x740] sm:$0xff]
        %v535 = vld [vmem:[%s203 + $0x748] sm:$0xff]
        %v536 = vld [vmem:[%s203 + $0x750] sm:$0xff]
        %v537 = vld [vmem:[%s203 + $0x758] sm:$0xff]
        %v538 = vld [vmem:[%s203 + $0x760] sm:$0xff]
        %v539 = vld [vmem:[%s203 + $0x768] sm:$0xff]
        %v540 = vld [vmem:[%s203 + $0x770] sm:$0xff]
        %v541 = vld [vmem:[%s203 + $0x778] sm:$0xff]
        %v542 = vld [vmem:[%s203 + $0x780] sm:$0xff]
        %v543 = vld [vmem:[%s203 + $0x788] sm:$0xff]
        %v544 = vld [vmem:[%s203 + $0x790] sm:$0xff]
        %v545 = vld [vmem:[%s203 + $0x798] sm:$0xff]
        %v546 = vld [vmem:[%s203 + $0x7a0] sm:$0xff]
        %v547 = vld [vmem:[%s203 + $0x7a8] sm:$0xff]
        %v548 = vld [vmem:[%s203 + $0x7b0] sm:$0xff]
        %v549 = vld [vmem:[%s203 + $0x7b8] sm:$0xff]
        %v550 = vld [vmem:[%s203 + $0x7c0] sm:$0xff]
        %v551 = vld [vmem:[%s203 + $0x7c8] sm:$0xff]
        %v552 = vld [vmem:[%s203 + $0x7d0] sm:$0xff]
        %v553 = vld [vmem:[%s203 + $0x7d8] sm:$0xff]
        %v554 = vld [vmem:[%s203 + $0x7e0] sm:$0xff]
        %v555 = vld [vmem:[%s203 + $0x7e8] sm:$0xff]
        %v556 = vld [vmem:[%s203 + $0x7f0] sm:$0xff]
        %v557 = vld [vmem:[%s203 + $0x7f8] sm:$0xff]
        %v558 = vld [vmem:[%s203 + $0x800] sm:$0xff]
        %v559 = vld [vmem:[%s203 + $0x808] sm:$0xff]
        %v560 = vld [vmem:[%s203 + $0x810] sm:$0xff]
        %v561 = vld [vmem:[%s203 + $0x818] sm:$0xff]
        %v562 = vld [vmem:[%s203 + $0x820] sm:$0xff]
        %v563 = vld [vmem:[%s203 + $0x828] sm:$0xff]
        %v564 = vld [vmem:[%s203 + $0x830] sm:$0xff]
        %v565 = vld [vmem:[%s203 + $0x838] sm:$0xff]
        %v566 = vld [vmem:[%s203 + $0x840] sm:$0xff]
        %v567 = vld [vmem:[%s203 + $0x848] sm:$0xff]
        %v568 = vld [vmem:[%s203 + $0x850] sm:$0xff]
        %v569 = vld [vmem:[%s203 + $0x858] sm:$0xff]
        %v570 = vld [vmem:[%s203 + $0x860] sm:$0xff]
        %v571 = vld [vmem:[%s203 + $0x868] sm:$0xff]
        %v572 = vld [vmem:[%s203 + $0x870] sm:$0xff]
        %v573 = vld [vmem:[%s203 + $0x878] sm:$0xff]
        %v574 = vld [vmem:[%s203 + $0x880] sm:$0xff]
        %v575 = vld [vmem:[%s203 + $0x888] sm:$0xff]
        %v576 = vld [vmem:[%s203 + $0x890] sm:$0xff]
        %v577 = vld [vmem:[%s203 + $0x898] sm:$0xff]
        %v578 = vld [vmem:[%s203 + $0x8a0] sm:$0xff]
        %v579 = vld [vmem:[%s203 + $0x8a8] sm:$0xff]
        %v580 = vld [vmem:[%s203 + $0x8b0] sm:$0xff]
        %v581 = vld [vmem:[%s203 + $0x8b8] sm:$0xff]
        %v582 = vld [vmem:[%s203 + $0x8c0] sm:$0xff]
        %v583 = vld [vmem:[%s203 + $0x8c8] sm:$0xff]
        %v584 = vld [vmem:[%s203 + $0x8d0] sm:$0xff]
        %v585 = vld [vmem:[%s203 + $0x8d8] sm:$0xff]
        %v586 = vld [vmem:[%s203 + $0x8e0] sm:$0xff]
        %v587 = vld [vmem:[%s203 + $0x8e8] sm:$0xff]
        %v588 = vld [vmem:[%s203 + $0x8f0] sm:$0xff]
        %v589 = vld [vmem:[%s203 + $0x8f8] sm:$0xff]
        %v590 = vld [vmem:[%s203 + $0x900] sm:$0xff]
        %v591 = vld [vmem:[%s203 + $0x908] sm:$0xff]
        %v592 = vld [vmem:[%s203 + $0x910] sm:$0xff]
        %v593 = vld [vmem:[%s203 + $0x918] sm:$0xff]
        %v594 = vld [vmem:[%s203 + $0x920] sm:$0xff]
        %v595 = vld [vmem:[%s203 + $0x928] sm:$0xff]
        %v596 = vld [vmem:[%s203 + $0x930] sm:$0xff]
        %v597 = vld [vmem:[%s203 + $0x938] sm:$0xff]
        %v598 = vld [vmem:[%s203 + $0x940] sm:$0xff]
        %v599 = vld [vmem:[%s203 + $0x948] sm:$0xff]
        %v600 = vld [vmem:[%s203 + $0x950] sm:$0xff]
        %v601 = vld [vmem:[%s203 + $0x958] sm:$0xff]
        %v602 = vld [vmem:[%s203 + $0x960] sm:$0xff]
        %v603 = vld [vmem:[%s203 + $0x968] sm:$0xff]
        %v604 = vld [vmem:[%s203 + $0x970] sm:$0xff]
        %v605 = vld [vmem:[%s203 + $0x978] sm:$0xff]
        %v606 = vld [vmem:[%s203 + $0x980] sm:$0xff]
        %v607 = vld [vmem:[%s203 + $0x988] sm:$0xff]
        %v608 = vld [vmem:[%s203 + $0x990] sm:$0xff]
        %v609 = vld [vmem:[%s203 + $0x998] sm:$0xff]
        %v610 = vld [vmem:[%s203 + $0x9a0] sm:$0xff]
        %v611 = vld [vmem:[%s203 + $0x9a8] sm:$0xff]
        %v612 = vld [vmem:[%s203 + $0x9b0] sm:$0xff]
        %v613 = vld [vmem:[%s203 + $0x9b8] sm:$0xff]
        %v614 = vld [vmem:[%s203 + $0x9c0] sm:$0xff]
        %v615 = vld [vmem:[%s203 + $0x9c8] sm:$0xff]
        %v616 = vld [vmem:[%s203 + $0x9d0] sm:$0xff]
        %v617 = vld [vmem:[%s203 + $0x9d8] sm:$0xff]
        %v618 = vld [vmem:[%s203 + $0x9e0] sm:$0xff]
        %v619 = vld [vmem:[%s203 + $0x9e8] sm:$0xff]
        %v620 = vld [vmem:[%s203 + $0x9f0] sm:$0xff]
        %v621 = vld [vmem:[%s203 + $0x9f8] sm:$0xff]
        %v622 = vld [vmem:[%s203 + $0xa00] sm:$0xff]
        %v623 = vld [vmem:[%s203 + $0xa08] sm:$0xff]
        %v624 = vld [vmem:[%s203 + $0xa10] sm:$0xff]
        %v625 = vld [vmem:[%s203 + $0xa18] sm:$0xff]
        %v626 = vld [vmem:[%s203 + $0xa20] sm:$0xff]
        %v627 = vld [vmem:[%s203 + $0xa28] sm:$0xff]
        %v628 = vld [vmem:[%s203 + $0xa30] sm:$0xff]
        %v629 = vld [vmem:[%s203 + $0xa38] sm:$0xff]
        %v630 = vld [vmem:[%s203 + $0xa40] sm:$0xff]
        %v631 = vld [vmem:[%s203 + $0xa48] sm:$0xff]
        %v632 = vld [vmem:[%s203 + $0xa50] sm:$0xff]
        %v633 = vld [vmem:[%s203 + $0xa58] sm:$0xff]
        %v634 = vld [vmem:[%s203 + $0xa60] sm:$0xff]
        %v635 = vld [vmem:[%s203 + $0xa68] sm:$0xff]
        %v636 = vld [vmem:[%s203 + $0xa70] sm:$0xff]
        %v637 = vld [vmem:[%s203 + $0xa78] sm:$0xff]
        %v638 = vld [vmem:[%s203 + $0xa80] sm:$0xff]
        %v639 = vld [vmem:[%s203 + $0xa88] sm:$0xff]
        %v640 = vld [vmem:[%s203 + $0xa90] sm:$0xff]
        %v641 = vld [vmem:[%s203 + $0xa98] sm:$0xff]
        %v642 = vld [vmem:[%s203 + $0xaa0] sm:$0xff]
        %v643 = vld [vmem:[%s203 + $0xaa8] sm:$0xff]
        %v644 = vld [vmem:[%s203 + $0xab0] sm:$0xff]
        %v645 = vld [vmem:[%s203 + $0xab8] sm:$0xff]
        %v646 = vld [vmem:[%s203 + $0xac0] sm:$0xff]
        %v647 = vld [vmem:[%s203 + $0xac8] sm:$0xff]
        %v648 = vld [vmem:[%s203 + $0xad0] sm:$0xff]
        %v649 = vld [vmem:[%s203 + $0xad8] sm:$0xff]
        %v650 = vld [vmem:[%s203 + $0xae0] sm:$0xff]
        %v651 = vld [vmem:[%s203 + $0xae8] sm:$0xff]
        %v652 = vld [vmem:[%s203 + $0xaf0] sm:$0xff]
        %v653 = vld [vmem:[%s203 + $0xaf8] sm:$0xff]
        %v654 = vld [vmem:[%s203 + $0xb00] sm:$0xff]
        %v655 = vld [vmem:[%s203 + $0xb08] sm:$0xff]
        %v656 = vld [vmem:[%s203 + $0xb10] sm:$0xff]
        %v657 = vld [vmem:[%s203 + $0xb18] sm:$0xff]
        %v658 = vld [vmem:[%s203 + $0xb20] sm:$0xff]
        %v659 = vld [vmem:[%s203 + $0xb28] sm:$0xff]
        %v660 = vld [vmem:[%s203 + $0xb30] sm:$0xff]
        %v661 = vld [vmem:[%s203 + $0xb38] sm:$0xff]
        %v662 = vld [vmem:[%s203 + $0xb40] sm:$0xff]
        %v663 = vld [vmem:[%s203 + $0xb48] sm:$0xff]
        %v664 = vld [vmem:[%s203 + $0xb50] sm:$0xff]
        %v665 = vld [vmem:[%s203 + $0xb58] sm:$0xff]
        %v666 = vld [vmem:[%s203 + $0xb60] sm:$0xff]
        %v667 = vld [vmem:[%s203 + $0xb68] sm:$0xff]
        %v668 = vld [vmem:[%s203 + $0xb70] sm:$0xff]
        %v669 = vld [vmem:[%s203 + $0xb78] sm:$0xff]
        %v670 = vld [vmem:[%s203 + $0xb80] sm:$0xff]
        %v671 = vld [vmem:[%s203 + $0xb88] sm:$0xff]
        %v672 = vld [vmem:[%s203 + $0xb90] sm:$0xff]
        %v673 = vld [vmem:[%s203 + $0xb98] sm:$0xff]
        %v674 = vld [vmem:[%s203 + $0xba0] sm:$0xff]
        %v675 = vld [vmem:[%s203 + $0xba8] sm:$0xff]
        %v676 = vld [vmem:[%s203 + $0xbb0] sm:$0xff]
        %v677 = vld [vmem:[%s203 + $0xbb8] sm:$0xff]
        %v678 = vld [vmem:[%s203 + $0xbc0] sm:$0xff]
        %v679 = vld [vmem:[%s203 + $0xbc8] sm:$0xff]
        %v680 = vld [vmem:[%s203 + $0xbd0] sm:$0xff]
        %v681 = vld [vmem:[%s203 + $0xbd8] sm:$0xff]
        %v682 = vld [vmem:[%s203 + $0xbe0] sm:$0xff]
        %v683 = vld [vmem:[%s203 + $0xbe8] sm:$0xff]
        %v684 = vld [vmem:[%s203 + $0xbf0] sm:$0xff]
        %v685 = vld [vmem:[%s203 + $0xbf8] sm:$0xff]
        %v686 = vld [vmem:[%s203 + $0xc00] sm:$0xff]
        %v687 = vld [vmem:[%s203 + $0xc08] sm:$0xff]
        %v688 = vld [vmem:[%s203 + $0xc10] sm:$0xff]
        %v689 = vld [vmem:[%s203 + $0xc18] sm:$0xff]
        %v690 = vld [vmem:[%s203 + $0xc20] sm:$0xff]
        %v691 = vld [vmem:[%s203 + $0xc28] sm:$0xff]
        %v692 = vld [vmem:[%s203 + $0xc30] sm:$0xff]
        %v693 = vld [vmem:[%s203 + $0xc38] sm:$0xff]
        %v694 = vld [vmem:[%s203 + $0xc40] sm:$0xff]
        %v695 = vld [vmem:[%s203 + $0xc48] sm:$0xff]
        %v696 = vld [vmem:[%s203 + $0xc50] sm:$0xff]
        %v697 = vld [vmem:[%s203 + $0xc58] sm:$0xff]
        %v698 = vld [vmem:[%s203 + $0xc60] sm:$0xff]
        %v699 = vld [vmem:[%s203 + $0xc68] sm:$0xff]
        %v700 = vld [vmem:[%s203 + $0xc70] sm:$0xff]
        %v701 = vld [vmem:[%s203 + $0xc78] sm:$0xff]
        %v702 = vld [vmem:[%s203 + $0xc80] sm:$0xff]
        %v703 = vld [vmem:[%s203 + $0xc88] sm:$0xff]
        %v704 = vld [vmem:[%s203 + $0xc90] sm:$0xff]
        %v705 = vld [vmem:[%s203 + $0xc98] sm:$0xff]
        %v706 = vld [vmem:[%s203 + $0xca0] sm:$0xff]
        %v707 = vld [vmem:[%s203 + $0xca8] sm:$0xff]
        %v708 = vld [vmem:[%s203 + $0xcb0] sm:$0xff]
        %v709 = vld [vmem:[%s203 + $0xcb8] sm:$0xff]
        %v710 = vld [vmem:[%s203 + $0xcc0] sm:$0xff]
        %v711 = vld [vmem:[%s203 + $0xcc8] sm:$0xff]
        %v712 = vld [vmem:[%s203 + $0xcd0] sm:$0xff]
        %v713 = vld [vmem:[%s203 + $0xcd8] sm:$0xff]
        %v714 = vld [vmem:[%s203 + $0xce0] sm:$0xff]
        %v715 = vld [vmem:[%s203 + $0xce8] sm:$0xff]
        %v716 = vld [vmem:[%s203 + $0xcf0] sm:$0xff]
        %v717 = vld [vmem:[%s203 + $0xcf8] sm:$0xff]
        %v718 = vld [vmem:[%s203 + $0xd00] sm:$0xff]
        %v719 = vld [vmem:[%s203 + $0xd08] sm:$0xff]
        %v720 = vld [vmem:[%s203 + $0xd10] sm:$0xff]
        %v721 = vld [vmem:[%s203 + $0xd18] sm:$0xff]
        %v722 = vld [vmem:[%s203 + $0xd20] sm:$0xff]
        %v723 = vld [vmem:[%s203 + $0xd28] sm:$0xff]
        %v724 = vld [vmem:[%s203 + $0xd30] sm:$0xff]
        %v725 = vld [vmem:[%s203 + $0xd38] sm:$0xff]
        %v726 = vld [vmem:[%s203 + $0xd40] sm:$0xff]
        %v727 = vld [vmem:[%s203 + $0xd48] sm:$0xff]
        %v728 = vld [vmem:[%s203 + $0xd50] sm:$0xff]
        %v729 = vld [vmem:[%s203 + $0xd58] sm:$0xff]
        %v730 = vld [vmem:[%s203 + $0xd60] sm:$0xff]
        %v731 = vld [vmem:[%s203 + $0xd68] sm:$0xff]
        %v732 = vld [vmem:[%s203 + $0xd70] sm:$0xff]
        %v733 = vld [vmem:[%s203 + $0xd78] sm:$0xff]
        %v734 = vld [vmem:[%s203 + $0xd80] sm:$0xff]
        %v735 = vld [vmem:[%s203 + $0xd88] sm:$0xff]
        %v736 = vld [vmem:[%s203 + $0xd90] sm:$0xff]
        %v737 = vld [vmem:[%s203 + $0xd98] sm:$0xff]
        %v738 = vld [vmem:[%s203 + $0xda0] sm:$0xff]
        %v739 = vld [vmem:[%s203 + $0xda8] sm:$0xff]
        %v740 = vld [vmem:[%s203 + $0xdb0] sm:$0xff]
        %v741 = vld [vmem:[%s203 + $0xdb8] sm:$0xff]
        %v742 = vld [vmem:[%s203 + $0xdc0] sm:$0xff]
        %v743 = vld [vmem:[%s203 + $0xdc8] sm:$0xff]
        %v744 = vld [vmem:[%s203 + $0xdd0] sm:$0xff]
        %v745 = vld [vmem:[%s203 + $0xdd8] sm:$0xff]
        %v746 = vld [vmem:[%s203 + $0xde0] sm:$0xff]
        %v747 = vld [vmem:[%s203 + $0xde8] sm:$0xff]
        %v748 = vld [vmem:[%s203 + $0xdf0] sm:$0xff]
        %v749 = vld [vmem:[%s203 + $0xdf8] sm:$0xff]
        %v750 = vld [vmem:[%s203 + $0xe00] sm:$0xff]
        %v751 = vld [vmem:[%s203 + $0xe08] sm:$0xff]
        %v752 = vld [vmem:[%s203 + $0xe10] sm:$0xff]
        %v753 = vld [vmem:[%s203 + $0xe18] sm:$0xff]
        %v754 = vld [vmem:[%s203 + $0xe20] sm:$0xff]
        %v755 = vld [vmem:[%s203 + $0xe28] sm:$0xff]
        %v756 = vld [vmem:[%s203 + $0xe30] sm:$0xff]
        %v757 = vld [vmem:[%s203 + $0xe38] sm:$0xff]
        %v758 = vld [vmem:[%s203 + $0xe40] sm:$0xff]
        %v759 = vld [vmem:[%s203 + $0xe48] sm:$0xff]
        %v760 = vld [vmem:[%s203 + $0xe50] sm:$0xff]
        %v761 = vld [vmem:[%s203 + $0xe58] sm:$0xff]
        %v762 = vld [vmem:[%s203 + $0xe60] sm:$0xff]
        %v763 = vld [vmem:[%s203 + $0xe68] sm:$0xff]
        %v764 = vld [vmem:[%s203 + $0xe70] sm:$0xff]
        %v765 = vld [vmem:[%s203 + $0xe78] sm:$0xff]
        %v766 = vld [vmem:[%s203 + $0xe80] sm:$0xff]
        %v767 = vld [vmem:[%s203 + $0xe88] sm:$0xff]
        %v768 = vld [vmem:[%s203 + $0xe90] sm:$0xff]
        %v769 = vld [vmem:[%s203 + $0xe98] sm:$0xff]
        %v770 = vld [vmem:[%s203 + $0xea0] sm:$0xff]
        %v771 = vld [vmem:[%s203 + $0xea8] sm:$0xff]
        %v772 = vld [vmem:[%s203 + $0xeb0] sm:$0xff]
        %v773 = vld [vmem:[%s203 + $0xeb8] sm:$0xff]
        %v774 = vld [vmem:[%s203 + $0xec0] sm:$0xff]
        %v775 = vld [vmem:[%s203 + $0xec8] sm:$0xff]
        %v776 = vld [vmem:[%s203 + $0xed0] sm:$0xff]
        %v777 = vld [vmem:[%s203 + $0xed8] sm:$0xff]
        %v778 = vld [vmem:[%s203 + $0xee0] sm:$0xff]
        %v779 = vld [vmem:[%s203 + $0xee8] sm:$0xff]
        %v780 = vld [vmem:[%s203 + $0xef0] sm:$0xff]
        %v781 = vld [vmem:[%s203 + $0xef8] sm:$0xff]
        %v782 = vld [vmem:[%s203 + $0xf00] sm:$0xff]
        %v783 = vld [vmem:[%s203 + $0xf08] sm:$0xff]
        %v784 = vld [vmem:[%s203 + $0xf10] sm:$0xff]
        %v785 = vld [vmem:[%s203 + $0xf18] sm:$0xff]
        %v786 = vld [vmem:[%s203 + $0xf20] sm:$0xff]
        %v787 = vld [vmem:[%s203 + $0xf28] sm:$0xff]
        %v788 = vld [vmem:[%s203 + $0xf30] sm:$0xff]
        %v789 = vld [vmem:[%s203 + $0xf38] sm:$0xff]
        %v790 = vld [vmem:[%s203 + $0xf40] sm:$0xff]
        %v791 = vld [vmem:[%s203 + $0xf48] sm:$0xff]
        %v792 = vld [vmem:[%s203 + $0xf50] sm:$0xff]
        %v793 = vld [vmem:[%s203 + $0xf58] sm:$0xff]
        %v794 = vld [vmem:[%s203 + $0xf60] sm:$0xff]
        %v795 = vld [vmem:[%s203 + $0xf68] sm:$0xff]
        %v796 = vld [vmem:[%s203 + $0xf70] sm:$0xff]
        %v797 = vld [vmem:[%s203 + $0xf78] sm:$0xff]
        %v798 = vld [vmem:[%s203 + $0xf80] sm:$0xff]
        %v799 = vld [vmem:[%s203 + $0xf88] sm:$0xff]
        %v800 = vld [vmem:[%s203 + $0xf90] sm:$0xff]
        %v801 = vld [vmem:[%s203 + $0xf98] sm:$0xff]
        %v802 = vld [vmem:[%s203 + $0xfa0] sm:$0xff]
        %v803 = vld [vmem:[%s203 + $0xfa8] sm:$0xff]
        %v804 = vld [vmem:[%s203 + $0xfb0] sm:$0xff]
        %v805 = vld [vmem:[%s203 + $0xfb8] sm:$0xff]
        %v806 = vld [vmem:[%s203 + $0xfc0] sm:$0xff]
        %v807 = vld [vmem:[%s203 + $0xfc8] sm:$0xff]
        %v808 = vld [vmem:[%s203 + $0xfd0] sm:$0xff]
        %v809 = vld [vmem:[%s203 + $0xfd8] sm:$0xff]
        %v810 = vld [vmem:[%s203 + $0xfe0] sm:$0xff]
        %v811 = vld [vmem:[%s203 + $0xfe8] sm:$0xff]
        %v812 = vld [vmem:[%s203 + $0xff0] sm:$0xff]
        %v813 = vld [vmem:[%s203 + $0xff8] sm:$0xff]
        %v814 = vld [vmem:[%s203 + $0x1000] sm:$0xff]
        %v815 = vld [vmem:[%s203 + $0x1008] sm:$0xff]
        %v816 = vld [vmem:[%s203 + $0x1010] sm:$0xff]
        %v817 = vld [vmem:[%s203 + $0x1018] sm:$0xff]
        %v818 = vld [vmem:[%s203 + $0x1020] sm:$0xff]
        %v819 = vld [vmem:[%s203 + $0x1028] sm:$0xff]
        %v820 = vld [vmem:[%s203 + $0x1030] sm:$0xff]
        %v821 = vld [vmem:[%s203 + $0x1038] sm:$0xff]
        %v822 = vld [vmem:[%s203 + $0x1040] sm:$0xff]
        %v823 = vld [vmem:[%s203 + $0x1048] sm:$0xff]
        %v824 = vld [vmem:[%s203 + $0x1050] sm:$0xff]
        %v825 = vld [vmem:[%s203 + $0x1058] sm:$0xff]
        %v826 = vld [vmem:[%s203 + $0x1060] sm:$0xff]
        %v827 = vld [vmem:[%s203 + $0x1068] sm:$0xff]
        %v828 = vld [vmem:[%s203 + $0x1070] sm:$0xff]
        %v829 = vld [vmem:[%s203 + $0x1078] sm:$0xff]
        %v830 = vld [vmem:[%s203 + $0x1080] sm:$0xff]
        %v831 = vld [vmem:[%s203 + $0x1088] sm:$0xff]
        %v832 = vld [vmem:[%s203 + $0x1090] sm:$0xff]
        %v833 = vld [vmem:[%s203 + $0x1098] sm:$0xff]
        %v834 = vld [vmem:[%s203 + $0x10a0] sm:$0xff]
        %v835 = vld [vmem:[%s203 + $0x10a8] sm:$0xff]
        %v836 = vld [vmem:[%s203 + $0x10b0] sm:$0xff]
        %v837 = vld [vmem:[%s203 + $0x10b8] sm:$0xff]
        %v838 = vld [vmem:[%s203 + $0x10c0] sm:$0xff]
        %v839 = vld [vmem:[%s203 + $0x10c8] sm:$0xff]
        %v840 = vld [vmem:[%s203 + $0x10d0] sm:$0xff]
        %v841 = vld [vmem:[%s203 + $0x10d8] sm:$0xff]
        %v842 = vld [vmem:[%s203 + $0x10e0] sm:$0xff]
        %v843 = vld [vmem:[%s203 + $0x10e8] sm:$0xff]
        %v844 = vld [vmem:[%s203 + $0x10f0] sm:$0xff]
        %v845 = vld [vmem:[%s203 + $0x10f8] sm:$0xff]
        %v846 = vld [vmem:[%s203 + $0x1100] sm:$0xff]
        %v847 = vld [vmem:[%s203 + $0x1108] sm:$0xff]
        %v848 = vld [vmem:[%s203 + $0x1110] sm:$0xff]
        %v849 = vld [vmem:[%s203 + $0x1118] sm:$0xff]
        %v850 = vld [vmem:[%s203 + $0x1120] sm:$0xff]
        %v851 = vld [vmem:[%s203 + $0x1128] sm:$0xff]
        %v852 = vld [vmem:[%s203 + $0x1130] sm:$0xff]
        %v853 = vld [vmem:[%s203 + $0x1138] sm:$0xff]
        %v854 = vld [vmem:[%s203 + $0x1140] sm:$0xff]
        %v855 = vld [vmem:[%s203 + $0x1148] sm:$0xff]
        %v856 = vld [vmem:[%s203 + $0x1150] sm:$0xff]
        %v857 = vld [vmem:[%s203 + $0x1158] sm:$0xff]
        %v858 = vld [vmem:[%s203 + $0x1160] sm:$0xff]
        %v859 = vld [vmem:[%s203 + $0x1168] sm:$0xff]
        %v860 = vld [vmem:[%s203 + $0x1170] sm:$0xff]
        %v861 = vld [vmem:[%s203 + $0x1178] sm:$0xff]
        %v862 = vld [vmem:[%s203 + $0x1180] sm:$0xff]
        %v863 = vld [vmem:[%s203 + $0x1188] sm:$0xff]
        %v864 = vld [vmem:[%s203 + $0x1190] sm:$0xff]
        %v865 = vld [vmem:[%s203 + $0x1198] sm:$0xff]
        %v866 = vld [vmem:[%s203 + $0x11a0] sm:$0xff]
        %v867 = vld [vmem:[%s203 + $0x11a8] sm:$0xff]
        %v868 = vld [vmem:[%s203 + $0x11b0] sm:$0xff]
        %v869 = vld [vmem:[%s203 + $0x11b8] sm:$0xff]
        %v870 = vld [vmem:[%s203 + $0x11c0] sm:$0xff]
        %v871 = vld [vmem:[%s203 + $0x11c8] sm:$0xff]
        %v872 = vld [vmem:[%s203 + $0x11d0] sm:$0xff]
        %v873 = vld [vmem:[%s203 + $0x11d8] sm:$0xff]
        %v874 = vld [vmem:[%s203 + $0x11e0] sm:$0xff]
        %v875 = vld [vmem:[%s203 + $0x11e8] sm:$0xff]
        %v876 = vld [vmem:[%s203 + $0x11f0] sm:$0xff]
        %v877 = vld [vmem:[%s203 + $0x11f8] sm:$0xff]
        %v878 = vld [vmem:[%s203 + $0x1200] sm:$0xff]
        %v879 = vld [vmem:[%s203 + $0x1208] sm:$0xff]
        %v880 = vld [vmem:[%s203 + $0x1210] sm:$0xff]
        %v881 = vld [vmem:[%s203 + $0x1218] sm:$0xff]
        %v882 = vld [vmem:[%s203 + $0x1220] sm:$0xff]
        %v883 = vld [vmem:[%s203 + $0x1228] sm:$0xff]
        %v884 = vld [vmem:[%s203 + $0x1230] sm:$0xff]
        %v885 = vld [vmem:[%s203 + $0x1238] sm:$0xff]
        %v886 = vld [vmem:[%s203 + $0x1240] sm:$0xff]
        %v887 = vld [vmem:[%s203 + $0x1248] sm:$0xff]
        %v888 = vld [vmem:[%s203 + $0x1250] sm:$0xff]
        %v889 = vld [vmem:[%s203 + $0x1258] sm:$0xff]
        %v890 = vld [vmem:[%s203 + $0x1260] sm:$0xff]
        %v891 = vld [vmem:[%s203 + $0x1268] sm:$0xff]
        %v892 = vld [vmem:[%s203 + $0x1270] sm:$0xff]
        %v893 = vld [vmem:[%s203 + $0x1278] sm:$0xff]
        %v894 = vld [vmem:[%s203 + $0x1280] sm:$0xff]
        %v895 = vld [vmem:[%s203 + $0x1288] sm:$0xff]
        %v896 = vld [vmem:[%s203 + $0x1290] sm:$0xff]
        %v897 = vld [vmem:[%s203 + $0x1298] sm:$0xff]
        %v898 = vld [vmem:[%s203 + $0x12a0] sm:$0xff]
        %v899 = vld [vmem:[%s203 + $0x12a8] sm:$0xff]
        %v900 = vld [vmem:[%s203 + $0x12b0] sm:$0xff]
        %v901 = vld [vmem:[%s203 + $0x12b8] sm:$0xff]
        %v902 = vld [vmem:[%s203 + $0x12c0] sm:$0xff]
        %v903 = vld [vmem:[%s203 + $0x12c8] sm:$0xff]
        %v904 = vld [vmem:[%s203 + $0x12d0] sm:$0xff]
        %v905 = vld [vmem:[%s203 + $0x12d8] sm:$0xff]
        %v906 = vld [vmem:[%s203 + $0x12e0] sm:$0xff]
        %v907 = vld [vmem:[%s203 + $0x12e8] sm:$0xff]
        %v908 = vld [vmem:[%s203 + $0x12f0] sm:$0xff]
        %v909 = vld [vmem:[%s203 + $0x12f8] sm:$0xff]
        %v910 = vld [vmem:[%s203 + $0x1300] sm:$0xff]
        %v911 = vld [vmem:[%s203 + $0x1308] sm:$0xff]
        %v912 = vld [vmem:[%s203 + $0x1310] sm:$0xff]
        %v913 = vld [vmem:[%s203 + $0x1318] sm:$0xff]
        %v914 = vld [vmem:[%s203 + $0x1320] sm:$0xff]
        %v915 = vld [vmem:[%s203 + $0x1328] sm:$0xff]
        %v916 = vld [vmem:[%s203 + $0x1330] sm:$0xff]
        %v917 = vld [vmem:[%s203 + $0x1338] sm:$0xff]
        %v918 = vld [vmem:[%s203 + $0x1340] sm:$0xff]
        %v919 = vld [vmem:[%s203 + $0x1348] sm:$0xff]
        %v920 = vld [vmem:[%s203 + $0x1350] sm:$0xff]
        %v921 = vld [vmem:[%s203 + $0x1358] sm:$0xff]
        %v922 = vld [vmem:[%s203 + $0x1360] sm:$0xff]
        %v923 = vld [vmem:[%s203 + $0x1368] sm:$0xff]
        %v924 = vld [vmem:[%s203 + $0x1370] sm:$0xff]
        %v925 = vld [vmem:[%s203 + $0x1378] sm:$0xff]
        %v926 = vld [vmem:[%s203 + $0x1380] sm:$0xff]
        %v927 = vld [vmem:[%s203 + $0x1388] sm:$0xff]
        %v928 = vld [vmem:[%s203 + $0x1390] sm:$0xff]
        %v929 = vld [vmem:[%s203 + $0x1398] sm:$0xff]
        %v930 = vld [vmem:[%s203 + $0x13a0] sm:$0xff]
        %v931 = vld [vmem:[%s203 + $0x13a8] sm:$0xff]
        %v932 = vld [vmem:[%s203 + $0x13b0] sm:$0xff]
        %v933 = vld [vmem:[%s203 + $0x13b8] sm:$0xff]
        %v934 = vld [vmem:[%s203 + $0x13c0] sm:$0xff]
        %v935 = vld [vmem:[%s203 + $0x13c8] sm:$0xff]
        %v936 = vld [vmem:[%s203 + $0x13d0] sm:$0xff]
        %v937 = vld [vmem:[%s203 + $0x13d8] sm:$0xff]
        %v938 = vld [vmem:[%s203 + $0x13e0] sm:$0xff]
        %v939 = vld [vmem:[%s203 + $0x13e8] sm:$0xff]
        %v940 = vld [vmem:[%s203 + $0x13f0] sm:$0xff]
        %v941 = vld [vmem:[%s203 + $0x13f8] sm:$0xff]
        %v942 = vld [vmem:[%s203 + $0x1400] sm:$0xff]
        %v943 = vld [vmem:[%s203 + $0x1408] sm:$0xff]
        %v944 = vld [vmem:[%s203 + $0x1410] sm:$0xff]
        %v945 = vld [vmem:[%s203 + $0x1418] sm:$0xff]
        %v946 = vld [vmem:[%s203 + $0x1420] sm:$0xff]
        %v947 = vld [vmem:[%s203 + $0x1428] sm:$0xff]
        %v948 = vld [vmem:[%s203 + $0x1430] sm:$0xff]
        %v949 = vld [vmem:[%s203 + $0x1438] sm:$0xff]
        %v950 = vld [vmem:[%s203 + $0x1440] sm:$0xff]
        %v951 = vld [vmem:[%s203 + $0x1448] sm:$0xff]
        %v952 = vld [vmem:[%s203 + $0x1450] sm:$0xff]
        %v953 = vld [vmem:[%s203 + $0x1458] sm:$0xff]
        %v954 = vld [vmem:[%s203 + $0x1460] sm:$0xff]
        %v955 = vld [vmem:[%s203 + $0x1468] sm:$0xff]
        %v956 = vld [vmem:[%s203 + $0x1470] sm:$0xff]
        %v957 = vld [vmem:[%s203 + $0x1478] sm:$0xff]
        %v958 = vld [vmem:[%s203 + $0x1480] sm:$0xff]
        %v959 = vld [vmem:[%s203 + $0x1488] sm:$0xff]
        %v960 = vld [vmem:[%s203 + $0x1490] sm:$0xff]
        %v961 = vld [vmem:[%s203 + $0x1498] sm:$0xff]
        %v962 = vld [vmem:[%s203 + $0x14a0] sm:$0xff]
        %v963 = vld [vmem:[%s203 + $0x14a8] sm:$0xff]
        %v964 = vld [vmem:[%s203 + $0x14b0] sm:$0xff]
        %v965 = vld [vmem:[%s203 + $0x14b8] sm:$0xff]
        %v966 = vld [vmem:[%s203 + $0x14c0] sm:$0xff]
        %v967 = vld [vmem:[%s203 + $0x14c8] sm:$0xff]
        %v968 = vld [vmem:[%s203 + $0x14d0] sm:$0xff]
        %v969 = vld [vmem:[%s203 + $0x14d8] sm:$0xff]
        %v970 = vld [vmem:[%s203 + $0x14e0] sm:$0xff]
        %v971 = vld [vmem:[%s203 + $0x14e8] sm:$0xff]
        %v972 = vld [vmem:[%s203 + $0x14f0] sm:$0xff]
        %v973 = vld [vmem:[%s203 + $0x14f8] sm:$0xff]
        %v974 = vld [vmem:[%s203 + $0x1500] sm:$0xff]
        %v975 = vld [vmem:[%s203 + $0x1508] sm:$0xff]
        %v976 = vld [vmem:[%s203 + $0x1510] sm:$0xff]
        %v977 = vld [vmem:[%s203 + $0x1518] sm:$0xff]
        %v978 = vld [vmem:[%s203 + $0x1520] sm:$0xff]
        %v979 = vld [vmem:[%s203 + $0x1528] sm:$0xff]
        %v980 = vld [vmem:[%s203 + $0x1530] sm:$0xff]
        %v981 = vld [vmem:[%s203 + $0x1538] sm:$0xff]
        %v982 = vld [vmem:[%s203 + $0x1540] sm:$0xff]
        %v983 = vld [vmem:[%s203 + $0x1548] sm:$0xff]
        %v984 = vld [vmem:[%s203 + $0x1550] sm:$0xff]
        %v985 = vld [vmem:[%s203 + $0x1558] sm:$0xff]
        %v986 = vld [vmem:[%s203 + $0x1560] sm:$0xff]
        %v987 = vld [vmem:[%s203 + $0x1568] sm:$0xff]
        %v988 = vld [vmem:[%s203 + $0x1570] sm:$0xff]
        %v989 = vld [vmem:[%s203 + $0x1578] sm:$0xff]
        %v990 = vld [vmem:[%s203 + $0x1580] sm:$0xff]
        %v991 = vld [vmem:[%s203 + $0x1588] sm:$0xff]
        %v992 = vld [vmem:[%s203 + $0x1590] sm:$0xff]
        %v993 = vld [vmem:[%s203 + $0x1598] sm:$0xff]
        %v994 = vld [vmem:[%s203 + $0x15a0] sm:$0xff]
        %v995 = vld [vmem:[%s203 + $0x15a8] sm:$0xff]
        %v996 = vld [vmem:[%s203 + $0x15b0] sm:$0xff]
        %v997 = vld [vmem:[%s203 + $0x15b8] sm:$0xff]
        %v998 = vld [vmem:[%s203 + $0x15c0] sm:$0xff]
        %v999 = vld [vmem:[%s203 + $0x15c8] sm:$0xff]
        %v1000 = vld [vmem:[%s203 + $0x15d0] sm:$0xff]
        %v1001 = vld [vmem:[%s203 + $0x15d8] sm:$0xff]
        %v1002 = vld [vmem:[%s203 + $0x15e0] sm:$0xff]
        %v1003 = vld [vmem:[%s203 + $0x15e8] sm:$0xff]
        %v1004 = vld [vmem:[%s203 + $0x15f0] sm:$0xff]
        %v1005 = vld [vmem:[%s203 + $0x15f8] sm:$0xff]
        %v1006 = vld [vmem:[%s203 + $0x1600] sm:$0xff]
        %v1007 = vld [vmem:[%s203 + $0x1608] sm:$0xff]
        %v1008 = vld [vmem:[%s203 + $0x1610] sm:$0xff]
        %v1009 = vld [vmem:[%s203 + $0x1618] sm:$0xff]
        %v1010 = vld [vmem:[%s203 + $0x1620] sm:$0xff]
        %v1011 = vld [vmem:[%s203 + $0x1628] sm:$0xff]
        %v1012 = vld [vmem:[%s203 + $0x1630] sm:$0xff]
        %v1013 = vld [vmem:[%s203 + $0x1638] sm:$0xff]
        %v1014 = vld [vmem:[%s203 + $0x1640] sm:$0xff]
        %v1015 = vld [vmem:[%s203 + $0x1648] sm:$0xff]
        %v1016 = vld [vmem:[%s203 + $0x1650] sm:$0xff]
        %v1017 = vld [vmem:[%s203 + $0x1658] sm:$0xff]
        %v1018 = vld [vmem:[%s203 + $0x1660] sm:$0xff]
        %v1019 = vld [vmem:[%s203 + $0x1668] sm:$0xff]
        %v1020 = vld [vmem:[%s203 + $0x1670] sm:$0xff]
        %v1021 = vld [vmem:[%s203 + $0x1678] sm:$0xff]
        %v1022 = vld [vmem:[%s203 + $0x1680] sm:$0xff]
        %v1023 = vld [vmem:[%s203 + $0x1688] sm:$0xff]
        %v1024 = vld [vmem:[%s203 + $0x1690] sm:$0xff]
        %v1025 = vld [vmem:[%s203 + $0x1698] sm:$0xff]
        %v1026 = vld [vmem:[%s203 + $0x16a0] sm:$0xff]
        %v1027 = vld [vmem:[%s203 + $0x16a8] sm:$0xff]
        %v1028 = vld [vmem:[%s203 + $0x16b0] sm:$0xff]
        %v1029 = vld [vmem:[%s203 + $0x16b8] sm:$0xff]
        %v1030 = vld [vmem:[%s203 + $0x16c0] sm:$0xff]
        %v1031 = vld [vmem:[%s203 + $0x16c8] sm:$0xff]
        %v1032 = vld [vmem:[%s203 + $0x16d0] sm:$0xff]
        %v1033 = vld [vmem:[%s203 + $0x16d8] sm:$0xff]
        %v1034 = vld [vmem:[%s203 + $0x16e0] sm:$0xff]
        %v1035 = vld [vmem:[%s203 + $0x16e8] sm:$0xff]
        %v1036 = vld [vmem:[%s203 + $0x16f0] sm:$0xff]
        %v1037 = vld [vmem:[%s203 + $0x16f8] sm:$0xff]
        %v1038 = vld [vmem:[%s203 + $0x1700] sm:$0xff]
        %v1039 = vld [vmem:[%s203 + $0x1708] sm:$0xff]
        %v1040 = vld [vmem:[%s203 + $0x1710] sm:$0xff]
        %v1041 = vld [vmem:[%s203 + $0x1718] sm:$0xff]
        %v1042 = vld [vmem:[%s203 + $0x1720] sm:$0xff]
        %v1043 = vld [vmem:[%s203 + $0x1728] sm:$0xff]
        %v1044 = vld [vmem:[%s203 + $0x1730] sm:$0xff]
        %v1045 = vld [vmem:[%s203 + $0x1738] sm:$0xff]
        %v1046 = vld [vmem:[%s203 + $0x1740] sm:$0xff]
        %v1047 = vld [vmem:[%s203 + $0x1748] sm:$0xff]
        %v1048 = vld [vmem:[%s203 + $0x1750] sm:$0xff]
        %v1049 = vld [vmem:[%s203 + $0x1758] sm:$0xff]
        %v1050 = vld [vmem:[%s203 + $0x1760] sm:$0xff]
        %v1051 = vld [vmem:[%s203 + $0x1768] sm:$0xff]
        %v1052 = vld [vmem:[%s203 + $0x1770] sm:$0xff]
        %v1053 = vld [vmem:[%s203 + $0x1778] sm:$0xff]
        %v1054 = vld [vmem:[%s203 + $0x1780] sm:$0xff]
        %v1055 = vld [vmem:[%s203 + $0x1788] sm:$0xff]
        %v1056 = vld [vmem:[%s203 + $0x1790] sm:$0xff]
        %v1057 = vld [vmem:[%s203 + $0x1798] sm:$0xff]
        %v1058 = vld [vmem:[%s203 + $0x17a0] sm:$0xff]
        %v1059 = vld [vmem:[%s203 + $0x17a8] sm:$0xff]
        %v1060 = vld [vmem:[%s203 + $0x17b0] sm:$0xff]
        %v1061 = vld [vmem:[%s203 + $0x17b8] sm:$0xff]
        %v1062 = vld [vmem:[%s203 + $0x17c0] sm:$0xff]
        %v1063 = vld [vmem:[%s203 + $0x17c8] sm:$0xff]
        %v1064 = vld [vmem:[%s203 + $0x17d0] sm:$0xff]
        %v1065 = vld [vmem:[%s203 + $0x17d8] sm:$0xff]
        %v1066 = vld [vmem:[%s203 + $0x17e0] sm:$0xff]
        %v1067 = vld [vmem:[%s203 + $0x17e8] sm:$0xff]
        %v1068 = vld [vmem:[%s203 + $0x17f0] sm:$0xff]
        %v1069 = vld [vmem:[%s203 + $0x17f8] sm:$0xff]
        %v1070 = vld [vmem:[%s203 + $0x1800] sm:$0xff]
        %v1071 = vld [vmem:[%s203 + $0x1808] sm:$0xff]
        %v1072 = vld [vmem:[%s203 + $0x1810] sm:$0xff]
        %v1073 = vld [vmem:[%s203 + $0x1818] sm:$0xff]
        %v1074 = vld [vmem:[%s203 + $0x1820] sm:$0xff]
        %v1075 = vld [vmem:[%s203 + $0x1828] sm:$0xff]
        %v1076 = vld [vmem:[%s203 + $0x1830] sm:$0xff]
        %v1077 = vld [vmem:[%s203 + $0x1838] sm:$0xff]
        %v1078 = vld [vmem:[%s203 + $0x1840] sm:$0xff]
        %v1079 = vld [vmem:[%s203 + $0x1848] sm:$0xff]
        %v1080 = vld [vmem:[%s203 + $0x1850] sm:$0xff]
        %v1081 = vld [vmem:[%s203 + $0x1858] sm:$0xff]
        %v1082 = vld [vmem:[%s203 + $0x1860] sm:$0xff]
        %v1083 = vld [vmem:[%s203 + $0x1868] sm:$0xff]
        %v1084 = vld [vmem:[%s203 + $0x1870] sm:$0xff]
        %v1085 = vld [vmem:[%s203 + $0x1878] sm:$0xff]
        %v1086 = vld [vmem:[%s203 + $0x1880] sm:$0xff]
        %v1087 = vld [vmem:[%s203 + $0x1888] sm:$0xff]
        %v1088 = vld [vmem:[%s203 + $0x1890] sm:$0xff]
        %v1089 = vld [vmem:[%s203 + $0x1898] sm:$0xff]
        %v1090 = vld [vmem:[%s203 + $0x18a0] sm:$0xff]
        %v1091 = vld [vmem:[%s203 + $0x18a8] sm:$0xff]
        %v1092 = vld [vmem:[%s203 + $0x18b0] sm:$0xff]
        %v1093 = vld [vmem:[%s203 + $0x18b8] sm:$0xff]
        %v1094 = vld [vmem:[%s203 + $0x18c0] sm:$0xff]
        %v1095 = vld [vmem:[%s203 + $0x18c8] sm:$0xff]
        %v1096 = vld [vmem:[%s203 + $0x18d0] sm:$0xff]
        %v1097 = vld [vmem:[%s203 + $0x18d8] sm:$0xff]
        %v1098 = vld [vmem:[%s203 + $0x18e0] sm:$0xff]
        %v1099 = vld [vmem:[%s203 + $0x18e8] sm:$0xff]
        %v1100 = vld [vmem:[%s203 + $0x18f0] sm:$0xff]
        %v1101 = vld [vmem:[%s203 + $0x18f8] sm:$0xff]
        %v1102 = vld [vmem:[%s203 + $0x1900] sm:$0xff]
        %v1103 = vld [vmem:[%s203 + $0x1908] sm:$0xff]
        %v1104 = vld [vmem:[%s203 + $0x1910] sm:$0xff]
        %v1105 = vld [vmem:[%s203 + $0x1918] sm:$0xff]
        %v1106 = vld [vmem:[%s203 + $0x1920] sm:$0xff]
        %v1107 = vld [vmem:[%s203 + $0x1928] sm:$0xff]
        %v1108 = vld [vmem:[%s203 + $0x1930] sm:$0xff]
        %v1109 = vld [vmem:[%s203 + $0x1938] sm:$0xff]
        %v1110 = vld [vmem:[%s203 + $0x1940] sm:$0xff]
        %v1111 = vld [vmem:[%s203 + $0x1948] sm:$0xff]
        %v1112 = vld [vmem:[%s203 + $0x1950] sm:$0xff]
        %v1113 = vld [vmem:[%s203 + $0x1958] sm:$0xff]
        %v1114 = vld [vmem:[%s203 + $0x1960] sm:$0xff]
        %v1115 = vld [vmem:[%s203 + $0x1968] sm:$0xff]
        %v1116 = vld [vmem:[%s203 + $0x1970] sm:$0xff]
        %v1117 = vld [vmem:[%s203 + $0x1978] sm:$0xff]
        %v1118 = vld [vmem:[%s203 + $0x1980] sm:$0xff]
        %v1119 = vld [vmem:[%s203 + $0x1988] sm:$0xff]
        %v1120 = vld [vmem:[%s203 + $0x1990] sm:$0xff]
        %v1121 = vld [vmem:[%s203 + $0x1998] sm:$0xff]
        %v1122 = vld [vmem:[%s203 + $0x19a0] sm:$0xff]
        %v1123 = vld [vmem:[%s203 + $0x19a8] sm:$0xff]
        %v1124 = vld [vmem:[%s203 + $0x19b0] sm:$0xff]
        %v1125 = vld [vmem:[%s203 + $0x19b8] sm:$0xff]
        %v1126 = vld [vmem:[%s203 + $0x19c0] sm:$0xff]
        %v1127 = vld [vmem:[%s203 + $0x19c8] sm:$0xff]
        %v1128 = vld [vmem:[%s203 + $0x19d0] sm:$0xff]
        %v1129 = vld [vmem:[%s203 + $0x19d8] sm:$0xff]
        %v1130 = vld [vmem:[%s203 + $0x19e0] sm:$0xff]
        %v1131 = vld [vmem:[%s203 + $0x19e8] sm:$0xff]
        %v1132 = vld [vmem:[%s203 + $0x19f0] sm:$0xff]
        %v1133 = vld [vmem:[%s203 + $0x19f8] sm:$0xff]
        %v1134 = vld [vmem:[%s203 + $0x1a00] sm:$0xff]
        %v1135 = vld [vmem:[%s203 + $0x1a08] sm:$0xff]
        %v1136 = vld [vmem:[%s203 + $0x1a10] sm:$0xff]
        %v1137 = vld [vmem:[%s203 + $0x1a18] sm:$0xff]
        %v1138 = vld [vmem:[%s203 + $0x1a20] sm:$0xff]
        %v1139 = vld [vmem:[%s203 + $0x1a28] sm:$0xff]
        %v1140 = vld [vmem:[%s203 + $0x1a30] sm:$0xff]
        %v1141 = vld [vmem:[%s203 + $0x1a38] sm:$0xff]
        %v1142 = vld [vmem:[%s203 + $0x1a40] sm:$0xff]
        %v1143 = vld [vmem:[%s203 + $0x1a48] sm:$0xff]
        %v1144 = vld [vmem:[%s203 + $0x1a50] sm:$0xff]
        %v1145 = vld [vmem:[%s203 + $0x1a58] sm:$0xff]
        %v1146 = vld [vmem:[%s203 + $0x1a60] sm:$0xff]
        %v1147 = vld [vmem:[%s203 + $0x1a68] sm:$0xff]
        %v1148 = vld [vmem:[%s203 + $0x1a70] sm:$0xff]
        %v1149 = vld [vmem:[%s203 + $0x1a78] sm:$0xff]
        %v1150 = vld [vmem:[%s203 + $0x1a80] sm:$0xff]
        %v1151 = vld [vmem:[%s203 + $0x1a88] sm:$0xff]
        %v1152 = vld [vmem:[%s203 + $0x1a90] sm:$0xff]
        %v1153 = vld [vmem:[%s203 + $0x1a98] sm:$0xff]
        %v1154 = vld [vmem:[%s203 + $0x1aa0] sm:$0xff]
        %v1155 = vld [vmem:[%s203 + $0x1aa8] sm:$0xff]
        %v1156 = vld [vmem:[%s203 + $0x1ab0] sm:$0xff]
        %v1157 = vld [vmem:[%s203 + $0x1ab8] sm:$0xff]
        %v1158 = vld [vmem:[%s203 + $0x1ac0] sm:$0xff]
        %v1159 = vld [vmem:[%s203 + $0x1ac8] sm:$0xff]
        %v1160 = vld [vmem:[%s203 + $0x1ad0] sm:$0xff]
        %v1161 = vld [vmem:[%s203 + $0x1ad8] sm:$0xff]
        %v1162 = vld [vmem:[%s203 + $0x1ae0] sm:$0xff]
        %v1163 = vld [vmem:[%s203 + $0x1ae8] sm:$0xff]
        %v1164 = vld [vmem:[%s203 + $0x1af0] sm:$0xff]
        %v1165 = vld [vmem:[%s203 + $0x1af8] sm:$0xff]
        %v1166 = vld [vmem:[%s203 + $0x1b00] sm:$0xff]
        %v1167 = vld [vmem:[%s203 + $0x1b08] sm:$0xff]
        %v1168 = vld [vmem:[%s203 + $0x1b10] sm:$0xff]
        %v1169 = vld [vmem:[%s203 + $0x1b18] sm:$0xff]
        %v1170 = vld [vmem:[%s203 + $0x1b20] sm:$0xff]
        %v1171 = vld [vmem:[%s203 + $0x1b28] sm:$0xff]
        %v1172 = vld [vmem:[%s203 + $0x1b30] sm:$0xff]
        %v1173 = vld [vmem:[%s203 + $0x1b38] sm:$0xff]
        %v1174 = vld [vmem:[%s203 + $0x1b40] sm:$0xff]
        %v1175 = vld [vmem:[%s203 + $0x1b48] sm:$0xff]
        %v1176 = vld [vmem:[%s203 + $0x1b50] sm:$0xff]
        %v1177 = vld [vmem:[%s203 + $0x1b58] sm:$0xff]
        %v1178 = vld [vmem:[%s203 + $0x1b60] sm:$0xff]
        %v1179 = vld [vmem:[%s203 + $0x1b68] sm:$0xff]
        %v1180 = vld [vmem:[%s203 + $0x1b70] sm:$0xff]
        %v1181 = vld [vmem:[%s203 + $0x1b78] sm:$0xff]
        %v1182 = vld [vmem:[%s203 + $0x1b80] sm:$0xff]
        %v1183 = vld [vmem:[%s203 + $0x1b88] sm:$0xff]
        %v1184 = vld [vmem:[%s203 + $0x1b90] sm:$0xff]
        %v1185 = vld [vmem:[%s203 + $0x1b98] sm:$0xff]
        %v1186 = vld [vmem:[%s203 + $0x1ba0] sm:$0xff]
        %v1187 = vld [vmem:[%s203 + $0x1ba8] sm:$0xff]
        %v1188 = vld [vmem:[%s203 + $0x1bb0] sm:$0xff]
        %v1189 = vld [vmem:[%s203 + $0x1bb8] sm:$0xff]
        %v1190 = vld [vmem:[%s203 + $0x1bc0] sm:$0xff]
        %v1191 = vld [vmem:[%s203 + $0x1bc8] sm:$0xff]
        %v1192 = vld [vmem:[%s203 + $0x1bd0] sm:$0xff]
        %v1193 = vld [vmem:[%s203 + $0x1bd8] sm:$0xff]
        %v1194 = vld [vmem:[%s203 + $0x1be0] sm:$0xff]
        %v1195 = vld [vmem:[%s203 + $0x1be8] sm:$0xff]
        %v1196 = vld [vmem:[%s203 + $0x1bf0] sm:$0xff]
        %v1197 = vld [vmem:[%s203 + $0x1bf8] sm:$0xff]
        %v1240 = vunpack.c.l.b16 %v260
        %v1241 = vunpack.c.h.b16 %v260
        %v1242 = vunpack.c.l.b16 %v261
        %v1243 = vunpack.c.h.b16 %v261
        %v1244 = vunpack.c.l.b16 %v262
        %v1245 = vunpack.c.h.b16 %v262
        %v1246 = vunpack.c.l.b16 %v263
        %v1247 = vunpack.c.h.b16 %v263
        %v1248 = vunpack.c.l.b16 %v264
        %v1249 = vunpack.c.h.b16 %v264
        %v1250 = vunpack.c.l.b16 %v265
        %v1251 = vunpack.c.h.b16 %v265
        %v1252 = vunpack.c.l.b16 %v266
        %v1253 = vunpack.c.h.b16 %v266
        %v1254 = vunpack.c.l.b16 %v267
        %v1255 = vunpack.c.h.b16 %v267
        %v1256 = vunpack.c.l.b16 %v268
        %v1257 = vunpack.c.h.b16 %v268
        %v1258 = vunpack.c.l.b16 %v269
        %v1259 = vunpack.c.h.b16 %v269
        %v1260 = vunpack.c.l.b16 %v270
        %v1261 = vunpack.c.h.b16 %v270
        %v1262 = vunpack.c.l.b16 %v271
        %v1263 = vunpack.c.h.b16 %v271
        %v1264 = vunpack.c.l.b16 %v272
        %v1265 = vunpack.c.h.b16 %v272
        %v1266 = vunpack.c.l.b16 %v273
        %v1267 = vunpack.c.h.b16 %v273
        %v1268 = vunpack.c.l.b16 %v274
        %v1269 = vunpack.c.h.b16 %v274
        %v1270 = vunpack.c.l.b16 %v275
        %v1271 = vunpack.c.h.b16 %v275
        %v1272 = vunpack.c.l.b16 %v276
        %v1273 = vunpack.c.h.b16 %v276
        %v1274 = vunpack.c.l.b16 %v277
        %v1275 = vunpack.c.h.b16 %v277
        %v1276 = vunpack.c.l.b16 %v278
        %v1277 = vunpack.c.h.b16 %v278
        %v1278 = vunpack.c.l.b16 %v279
        %v1279 = vunpack.c.h.b16 %v279
        %v1280 = vunpack.c.l.b16 %v280
        %v1281 = vunpack.c.h.b16 %v280
        %v1282 = vunpack.c.l.b16 %v281
        %v1283 = vunpack.c.h.b16 %v281
        %v1284 = vunpack.c.l.b16 %v282
        %v1285 = vunpack.c.h.b16 %v282
        %v1286 = vunpack.c.l.b16 %v283
        %v1287 = vunpack.c.h.b16 %v283
        %v1288 = vunpack.c.l.b16 %v284
        %v1289 = vunpack.c.h.b16 %v284
        %v1290 = vunpack.c.l.b16 %v285
        %v1291 = vunpack.c.h.b16 %v285
        %v1292 = vunpack.c.l.b16 %v286
        %v1293 = vunpack.c.h.b16 %v286
        %v1294 = vunpack.c.l.b16 %v287
        %v1295 = vunpack.c.h.b16 %v287
        %v1296 = vunpack.c.l.b16 %v288
        %v1297 = vunpack.c.h.b16 %v288
        %v1298 = vunpack.c.l.b16 %v289
        %v1299 = vunpack.c.h.b16 %v289
        %v1300 = vunpack.c.l.b16 %v290
        %v1301 = vunpack.c.h.b16 %v290
        %v1302 = vunpack.c.l.b16 %v291
        %v1303 = vunpack.c.h.b16 %v291
        %v1304 = vunpack.c.l.b16 %v292
        %v1305 = vunpack.c.h.b16 %v292
        %v1306 = vunpack.c.l.b16 %v293
        %v1307 = vunpack.c.h.b16 %v293
        %v1308 = vunpack.c.l.b16 %v294
        %v1309 = vunpack.c.h.b16 %v294
        %v1310 = vunpack.c.l.b16 %v295
        %v1311 = vunpack.c.h.b16 %v295
        %v1312 = vunpack.c.l.b16 %v296
        %v1313 = vunpack.c.h.b16 %v296
        %v1314 = vunpack.c.l.b16 %v297
        %v1315 = vunpack.c.h.b16 %v297
        %v1316 = vunpack.c.l.b16 %v298
        %v1317 = vunpack.c.h.b16 %v298
        %v1318 = vunpack.c.l.b16 %v299
        %v1319 = vunpack.c.h.b16 %v299
        %v1320 = vunpack.c.l.b16 %v300
        %v1321 = vunpack.c.h.b16 %v300
        %v1322 = vunpack.c.l.b16 %v301
        %v1323 = vunpack.c.h.b16 %v301
        %v1324 = vpack.c.b16 %v1268, %v1240
        %v1325 = vpack.c.b16 %v1269, %v1241
        %v1326 = vpack.c.b16 %v1270, %v1242
        %v1327 = vpack.c.b16 %v1271, %v1243
        %v1328 = vpack.c.b16 %v1272, %v1244
        %v1329 = vpack.c.b16 %v1273, %v1245
        %v1330 = vpack.c.b16 %v1274, %v1246
        %v1331 = vpack.c.b16 %v1275, %v1247
        %v1332 = vpack.c.b16 %v1276, %v1248
        %v1333 = vpack.c.b16 %v1277, %v1249
        %v1334 = vpack.c.b16 %v1278, %v1250
        %v1335 = vpack.c.b16 %v1279, %v1251
        %v1336 = vpack.c.b16 %v1280, %v1252
        %v1337 = vpack.c.b16 %v1281, %v1253
        %v1338 = vpack.c.b16 %v1282, %v1254
        %v1339 = vpack.c.b16 %v1283, %v1255
        %v1340 = vpack.c.b16 %v1284, %v1256
        %v1341 = vpack.c.b16 %v1285, %v1257
        %v1342 = vpack.c.b16 %v1286, %v1258
        %v1343 = vpack.c.b16 %v1287, %v1259
        %v1344 = vpack.c.b16 %v1288, %v1260
        %v1345 = vpack.c.b16 %v1289, %v1261
        %v1346 = vpack.c.b16 %v1290, %v1262
        %v1347 = vpack.c.b16 %v1291, %v1263
        %v1348 = vpack.c.b16 %v1292, %v1264
        %v1349 = vpack.c.b16 %v1293, %v1265
        %v1350 = vpack.c.b16 %v1294, %v1266
        %v1351 = vpack.c.b16 %v1295, %v1267
        %v1352 = vpack.c.b16 %v1296, %v1296
        %v1353 = vpack.c.b16 %v1297, %v1297
        %v1354 = vpack.c.b16 %v1298, %v1298
        %v1355 = vpack.c.b16 %v1299, %v1299
        %v1356 = vpack.c.b16 %v1300, %v1300
        %v1357 = vpack.c.b16 %v1301, %v1301
        %v1358 = vpack.c.b16 %v1302, %v1302
        %v1359 = vpack.c.b16 %v1303, %v1303
        %v1360 = vpack.c.b16 %v1304, %v1304
        %v1361 = vpack.c.b16 %v1305, %v1305
        %v1362 = vpack.c.b16 %v1306, %v1306
        %v1363 = vpack.c.b16 %v1307, %v1307
        %v1364 = vpack.c.b16 %v1308, %v1308
        %v1365 = vpack.c.b16 %v1309, %v1309
        %v1366 = vpack.c.b16 %v1310, %v1310
        %v1367 = vpack.c.b16 %v1311, %v1311
        %v1368 = vpack.c.b16 %v1312, %v1312
        %v1369 = vpack.c.b16 %v1313, %v1313
        %v1370 = vpack.c.b16 %v1314, %v1314
        %v1371 = vpack.c.b16 %v1315, %v1315
        %v1372 = vpack.c.b16 %v1316, %v1316
        %v1373 = vpack.c.b16 %v1317, %v1317
        %v1374 = vpack.c.b16 %v1318, %v1318
        %v1375 = vpack.c.b16 %v1319, %v1319
        %v1376 = vpack.c.b16 %v1320, %v1320
        %v1377 = vpack.c.b16 %v1321, %v1321
        %v1378 = vpack.c.b16 %v1322, %v1322
        %v1379 = vpack.c.b16 %v1323, %v1323
        %v2332 = vunpack.c.l.b16 %v302
        %v2333 = vunpack.c.h.b16 %v302
        %v2334 = vunpack.c.l.b16 %v303
        %v2335 = vunpack.c.h.b16 %v303
        %v2336 = vunpack.c.l.b16 %v304
        %v2337 = vunpack.c.h.b16 %v304
        %v2338 = vunpack.c.l.b16 %v305
        %v2339 = vunpack.c.h.b16 %v305
        %v2340 = vunpack.c.l.b16 %v306
        %v2341 = vunpack.c.h.b16 %v306
        %v2342 = vunpack.c.l.b16 %v307
        %v2343 = vunpack.c.h.b16 %v307
        %v2344 = vunpack.c.l.b16 %v308
        %v2345 = vunpack.c.h.b16 %v308
        %v2346 = vunpack.c.l.b16 %v309
        %v2347 = vunpack.c.h.b16 %v309
        %v2348 = vunpack.c.l.b16 %v310
        %v2349 = vunpack.c.h.b16 %v310
        %v2350 = vunpack.c.l.b16 %v311
        %v2351 = vunpack.c.h.b16 %v311
        %v2352 = vunpack.c.l.b16 %v312
        %v2353 = vunpack.c.h.b16 %v312
        %v2354 = vunpack.c.l.b16 %v313
        %v2355 = vunpack.c.h.b16 %v313
        %v2356 = vunpack.c.l.b16 %v314
        %v2357 = vunpack.c.h.b16 %v314
        %v2358 = vunpack.c.l.b16 %v315
        %v2359 = vunpack.c.h.b16 %v315
        %v2360 = vunpack.c.l.b16 %v316
        %v2361 = vunpack.c.h.b16 %v316
        %v2362 = vunpack.c.l.b16 %v317
        %v2363 = vunpack.c.h.b16 %v317
        %v2364 = vunpack.c.l.b16 %v318
        %v2365 = vunpack.c.h.b16 %v318
        %v2366 = vunpack.c.l.b16 %v319
        %v2367 = vunpack.c.h.b16 %v319
        %v2368 = vunpack.c.l.b16 %v320
        %v2369 = vunpack.c.h.b16 %v320
        %v2370 = vunpack.c.l.b16 %v321
        %v2371 = vunpack.c.h.b16 %v321
        %v2372 = vunpack.c.l.b16 %v322
        %v2373 = vunpack.c.h.b16 %v322
        %v2374 = vunpack.c.l.b16 %v323
        %v2375 = vunpack.c.h.b16 %v323
        %v2376 = vunpack.c.l.b16 %v324
        %v2377 = vunpack.c.h.b16 %v324
        %v2378 = vunpack.c.l.b16 %v325
        %v2379 = vunpack.c.h.b16 %v325
        %v2380 = vunpack.c.l.b16 %v326
        %v2381 = vunpack.c.h.b16 %v326
        %v2382 = vunpack.c.l.b16 %v327
        %v2383 = vunpack.c.h.b16 %v327
        %v2384 = vunpack.c.l.b16 %v328
        %v2385 = vunpack.c.h.b16 %v328
        %v2386 = vunpack.c.l.b16 %v329
        %v2387 = vunpack.c.h.b16 %v329
        %v2388 = vunpack.c.l.b16 %v330
        %v2389 = vunpack.c.h.b16 %v330
        %v2390 = vunpack.c.l.b16 %v331
        %v2391 = vunpack.c.h.b16 %v331
        %v2392 = vunpack.c.l.b16 %v332
        %v2393 = vunpack.c.h.b16 %v332
        %v2394 = vunpack.c.l.b16 %v333
        %v2395 = vunpack.c.h.b16 %v333
        %v2396 = vunpack.c.l.b16 %v334
        %v2397 = vunpack.c.h.b16 %v334
        %v2398 = vunpack.c.l.b16 %v335
        %v2399 = vunpack.c.h.b16 %v335
        %v2400 = vunpack.c.l.b16 %v336
        %v2401 = vunpack.c.h.b16 %v336
        %v2402 = vunpack.c.l.b16 %v337
        %v2403 = vunpack.c.h.b16 %v337
        %v2404 = vunpack.c.l.b16 %v338
        %v2405 = vunpack.c.h.b16 %v338
        %v2406 = vunpack.c.l.b16 %v339
        %v2407 = vunpack.c.h.b16 %v339
        %v2408 = vunpack.c.l.b16 %v340
        %v2409 = vunpack.c.h.b16 %v340
        %v2410 = vunpack.c.l.b16 %v341
        %v2411 = vunpack.c.h.b16 %v341
        %v2412 = vunpack.c.l.b16 %v342
        %v2413 = vunpack.c.h.b16 %v342
        %v2414 = vunpack.c.l.b16 %v343
        %v2415 = vunpack.c.h.b16 %v343
        %v2416 = vunpack.c.l.b16 %v344
        %v2417 = vunpack.c.h.b16 %v344
        %v2418 = vunpack.c.l.b16 %v345
        %v2419 = vunpack.c.h.b16 %v345
        %v2420 = vunpack.c.l.b16 %v346
        %v2421 = vunpack.c.h.b16 %v346
        %v2422 = vunpack.c.l.b16 %v347
        %v2423 = vunpack.c.h.b16 %v347
        %v2424 = vunpack.c.l.b16 %v348
        %v2425 = vunpack.c.h.b16 %v348
        %v2426 = vunpack.c.l.b16 %v349
        %v2427 = vunpack.c.h.b16 %v349
        %v2428 = vunpack.c.l.b16 %v350
        %v2429 = vunpack.c.h.b16 %v350
        %v2430 = vunpack.c.l.b16 %v351
        %v2431 = vunpack.c.h.b16 %v351
        %v2432 = vunpack.c.l.b16 %v352
        %v2433 = vunpack.c.h.b16 %v352
        %v2434 = vunpack.c.l.b16 %v353
        %v2435 = vunpack.c.h.b16 %v353
        %v2436 = vunpack.c.l.b16 %v354
        %v2437 = vunpack.c.h.b16 %v354
        %v2438 = vunpack.c.l.b16 %v355
        %v2439 = vunpack.c.h.b16 %v355
        %v2440 = vunpack.c.l.b16 %v356
        %v2441 = vunpack.c.h.b16 %v356
        %v2442 = vunpack.c.l.b16 %v357
        %v2443 = vunpack.c.h.b16 %v357
        %v2444 = vunpack.c.l.b16 %v358
        %v2445 = vunpack.c.h.b16 %v358
        %v2446 = vunpack.c.l.b16 %v359
        %v2447 = vunpack.c.h.b16 %v359
        %v2448 = vunpack.c.l.b16 %v360
        %v2449 = vunpack.c.h.b16 %v360
        %v2450 = vunpack.c.l.b16 %v361
        %v2451 = vunpack.c.h.b16 %v361
        %v2452 = vunpack.c.l.b16 %v362
        %v2453 = vunpack.c.h.b16 %v362
        %v2454 = vunpack.c.l.b16 %v363
        %v2455 = vunpack.c.h.b16 %v363
        %v2456 = vunpack.c.l.b16 %v364
        %v2457 = vunpack.c.h.b16 %v364
        %v2458 = vunpack.c.l.b16 %v365
        %v2459 = vunpack.c.h.b16 %v365
        %v2460 = vunpack.c.l.b16 %v366
        %v2461 = vunpack.c.h.b16 %v366
        %v2462 = vunpack.c.l.b16 %v367
        %v2463 = vunpack.c.h.b16 %v367
        %v2464 = vunpack.c.l.b16 %v368
        %v2465 = vunpack.c.h.b16 %v368
        %v2466 = vunpack.c.l.b16 %v369
        %v2467 = vunpack.c.h.b16 %v369
        %v2468 = vunpack.c.l.b16 %v370
        %v2469 = vunpack.c.h.b16 %v370
        %v2470 = vunpack.c.l.b16 %v371
        %v2471 = vunpack.c.h.b16 %v371
        %v2472 = vunpack.c.l.b16 %v372
        %v2473 = vunpack.c.h.b16 %v372
        %v2474 = vunpack.c.l.b16 %v373
        %v2475 = vunpack.c.h.b16 %v373
        %v2476 = vunpack.c.l.b16 %v374
        %v2477 = vunpack.c.h.b16 %v374
        %v2478 = vunpack.c.l.b16 %v375
        %v2479 = vunpack.c.h.b16 %v375
        %v2480 = vunpack.c.l.b16 %v376
        %v2481 = vunpack.c.h.b16 %v376
        %v2482 = vunpack.c.l.b16 %v377
        %v2483 = vunpack.c.h.b16 %v377
        %v2484 = vunpack.c.l.b16 %v378
        %v2485 = vunpack.c.h.b16 %v378
        %v2486 = vunpack.c.l.b16 %v379
        %v2487 = vunpack.c.h.b16 %v379
        %v2488 = vunpack.c.l.b16 %v380
        %v2489 = vunpack.c.h.b16 %v380
        %v2490 = vunpack.c.l.b16 %v381
        %v2491 = vunpack.c.h.b16 %v381
        %v2492 = vunpack.c.l.b16 %v382
        %v2493 = vunpack.c.h.b16 %v382
        %v2494 = vunpack.c.l.b16 %v383
        %v2495 = vunpack.c.h.b16 %v383
        %v2496 = vunpack.c.l.b16 %v384
        %v2497 = vunpack.c.h.b16 %v384
        %v2498 = vunpack.c.l.b16 %v385
        %v2499 = vunpack.c.h.b16 %v385
        %v2500 = vunpack.c.l.b16 %v386
        %v2501 = vunpack.c.h.b16 %v386
        %v2502 = vunpack.c.l.b16 %v387
        %v2503 = vunpack.c.h.b16 %v387
        %v2504 = vunpack.c.l.b16 %v388
        %v2505 = vunpack.c.h.b16 %v388
        %v2506 = vunpack.c.l.b16 %v389
        %v2507 = vunpack.c.h.b16 %v389
        %v2508 = vunpack.c.l.b16 %v390
        %v2509 = vunpack.c.h.b16 %v390
        %v2510 = vunpack.c.l.b16 %v391
        %v2511 = vunpack.c.h.b16 %v391
        %v2512 = vunpack.c.l.b16 %v392
        %v2513 = vunpack.c.h.b16 %v392
        %v2514 = vunpack.c.l.b16 %v393
        %v2515 = vunpack.c.h.b16 %v393
        %v2516 = vunpack.c.l.b16 %v394
        %v2517 = vunpack.c.h.b16 %v394
        %v2518 = vunpack.c.l.b16 %v395
        %v2519 = vunpack.c.h.b16 %v395
        %v2520 = vunpack.c.l.b16 %v396
        %v2521 = vunpack.c.h.b16 %v396
        %v2522 = vunpack.c.l.b16 %v397
        %v2523 = vunpack.c.h.b16 %v397
        %v2524 = vunpack.c.l.b16 %v398
        %v2525 = vunpack.c.h.b16 %v398
        %v2526 = vunpack.c.l.b16 %v399
        %v2527 = vunpack.c.h.b16 %v399
        %v2528 = vunpack.c.l.b16 %v400
        %v2529 = vunpack.c.h.b16 %v400
        %v2530 = vunpack.c.l.b16 %v401
        %v2531 = vunpack.c.h.b16 %v401
        %v2532 = vunpack.c.l.b16 %v402
        %v2533 = vunpack.c.h.b16 %v402
        %v2534 = vunpack.c.l.b16 %v403
        %v2535 = vunpack.c.h.b16 %v403
        %v2536 = vunpack.c.l.b16 %v404
        %v2537 = vunpack.c.h.b16 %v404
        %v2538 = vunpack.c.l.b16 %v405
        %v2539 = vunpack.c.h.b16 %v405
        %v2540 = vunpack.c.l.b16 %v406
        %v2541 = vunpack.c.h.b16 %v406
        %v2542 = vunpack.c.l.b16 %v407
        %v2543 = vunpack.c.h.b16 %v407
        %v2544 = vunpack.c.l.b16 %v408
        %v2545 = vunpack.c.h.b16 %v408
        %v2546 = vunpack.c.l.b16 %v409
        %v2547 = vunpack.c.h.b16 %v409
        %v2548 = vunpack.c.l.b16 %v410
        %v2549 = vunpack.c.h.b16 %v410
        %v2550 = vunpack.c.l.b16 %v411
        %v2551 = vunpack.c.h.b16 %v411
        %v2552 = vunpack.c.l.b16 %v412
        %v2553 = vunpack.c.h.b16 %v412
        %v2554 = vunpack.c.l.b16 %v413
        %v2555 = vunpack.c.h.b16 %v413
        %v2556 = vunpack.c.l.b16 %v414
        %v2557 = vunpack.c.h.b16 %v414
        %v2558 = vunpack.c.l.b16 %v415
        %v2559 = vunpack.c.h.b16 %v415
        %v2560 = vunpack.c.l.b16 %v416
        %v2561 = vunpack.c.h.b16 %v416
        %v2562 = vunpack.c.l.b16 %v417
        %v2563 = vunpack.c.h.b16 %v417
        %v2564 = vunpack.c.l.b16 %v418
        %v2565 = vunpack.c.h.b16 %v418
        %v2566 = vunpack.c.l.b16 %v419
        %v2567 = vunpack.c.h.b16 %v419
        %v2568 = vunpack.c.l.b16 %v420
        %v2569 = vunpack.c.h.b16 %v420
        %v2570 = vunpack.c.l.b16 %v421
        %v2571 = vunpack.c.h.b16 %v421
        %v2572 = vunpack.c.l.b16 %v422
        %v2573 = vunpack.c.h.b16 %v422
        %v2574 = vunpack.c.l.b16 %v423
        %v2575 = vunpack.c.h.b16 %v423
        %v2576 = vunpack.c.l.b16 %v424
        %v2577 = vunpack.c.h.b16 %v424
        %v2578 = vunpack.c.l.b16 %v425
        %v2579 = vunpack.c.h.b16 %v425
        %v2580 = vunpack.c.l.b16 %v426
        %v2581 = vunpack.c.h.b16 %v426
        %v2582 = vunpack.c.l.b16 %v427
        %v2583 = vunpack.c.h.b16 %v427
        %v2584 = vunpack.c.l.b16 %v428
        %v2585 = vunpack.c.h.b16 %v428
        %v2586 = vunpack.c.l.b16 %v429
        %v2587 = vunpack.c.h.b16 %v429
        %v2588 = vunpack.c.l.b16 %v430
        %v2589 = vunpack.c.h.b16 %v430
        %v2590 = vunpack.c.l.b16 %v431
        %v2591 = vunpack.c.h.b16 %v431
        %v2592 = vunpack.c.l.b16 %v432
        %v2593 = vunpack.c.h.b16 %v432
        %v2594 = vunpack.c.l.b16 %v433
        %v2595 = vunpack.c.h.b16 %v433
        %v2596 = vunpack.c.l.b16 %v434
        %v2597 = vunpack.c.h.b16 %v434
        %v2598 = vunpack.c.l.b16 %v435
        %v2599 = vunpack.c.h.b16 %v435
        %v2600 = vunpack.c.l.b16 %v436
        %v2601 = vunpack.c.h.b16 %v436
        %v2602 = vunpack.c.l.b16 %v437
        %v2603 = vunpack.c.h.b16 %v437
        %v2604 = vunpack.c.l.b16 %v438
        %v2605 = vunpack.c.h.b16 %v438
        %v2606 = vunpack.c.l.b16 %v439
        %v2607 = vunpack.c.h.b16 %v439
        %v2608 = vunpack.c.l.b16 %v440
        %v2609 = vunpack.c.h.b16 %v440
        %v2610 = vunpack.c.l.b16 %v441
        %v2611 = vunpack.c.h.b16 %v441
        %v2612 = vunpack.c.l.b16 %v442
        %v2613 = vunpack.c.h.b16 %v442
        %v2614 = vunpack.c.l.b16 %v443
        %v2615 = vunpack.c.h.b16 %v443
        %v2616 = vunpack.c.l.b16 %v444
        %v2617 = vunpack.c.h.b16 %v444
        %v2618 = vunpack.c.l.b16 %v445
        %v2619 = vunpack.c.h.b16 %v445
        %v2620 = vunpack.c.l.b16 %v446
        %v2621 = vunpack.c.h.b16 %v446
        %v2622 = vunpack.c.l.b16 %v447
        %v2623 = vunpack.c.h.b16 %v447
        %v2624 = vunpack.c.l.b16 %v448
        %v2625 = vunpack.c.h.b16 %v448
        %v2626 = vunpack.c.l.b16 %v449
        %v2627 = vunpack.c.h.b16 %v449
        %v2628 = vunpack.c.l.b16 %v450
        %v2629 = vunpack.c.h.b16 %v450
        %v2630 = vunpack.c.l.b16 %v451
        %v2631 = vunpack.c.h.b16 %v451
        %v2632 = vunpack.c.l.b16 %v452
        %v2633 = vunpack.c.h.b16 %v452
        %v2634 = vunpack.c.l.b16 %v453
        %v2635 = vunpack.c.h.b16 %v453
        %v2636 = vunpack.c.l.b16 %v454
        %v2637 = vunpack.c.h.b16 %v454
        %v2638 = vunpack.c.l.b16 %v455
        %v2639 = vunpack.c.h.b16 %v455
        %v2640 = vunpack.c.l.b16 %v456
        %v2641 = vunpack.c.h.b16 %v456
        %v2642 = vunpack.c.l.b16 %v457
        %v2643 = vunpack.c.h.b16 %v457
        %v2644 = vunpack.c.l.b16 %v458
        %v2645 = vunpack.c.h.b16 %v458
        %v2646 = vunpack.c.l.b16 %v459
        %v2647 = vunpack.c.h.b16 %v459
        %v2648 = vunpack.c.l.b16 %v460
        %v2649 = vunpack.c.h.b16 %v460
        %v2650 = vunpack.c.l.b16 %v461
        %v2651 = vunpack.c.h.b16 %v461
        %v2652 = vunpack.c.l.b16 %v462
        %v2653 = vunpack.c.h.b16 %v462
        %v2654 = vunpack.c.l.b16 %v463
        %v2655 = vunpack.c.h.b16 %v463
        %v2656 = vunpack.c.l.b16 %v464
        %v2657 = vunpack.c.h.b16 %v464
        %v2658 = vunpack.c.l.b16 %v465
        %v2659 = vunpack.c.h.b16 %v465
        %v2660 = vunpack.c.l.b16 %v466
        %v2661 = vunpack.c.h.b16 %v466
        %v2662 = vunpack.c.l.b16 %v467
        %v2663 = vunpack.c.h.b16 %v467
        %v2664 = vunpack.c.l.b16 %v468
        %v2665 = vunpack.c.h.b16 %v468
        %v2666 = vunpack.c.l.b16 %v469
        %v2667 = vunpack.c.h.b16 %v469
        %v2668 = vunpack.c.l.b16 %v470
        %v2669 = vunpack.c.h.b16 %v470
        %v2670 = vunpack.c.l.b16 %v471
        %v2671 = vunpack.c.h.b16 %v471
        %v2672 = vunpack.c.l.b16 %v472
        %v2673 = vunpack.c.h.b16 %v472
        %v2674 = vunpack.c.l.b16 %v473
        %v2675 = vunpack.c.h.b16 %v473
        %v2676 = vunpack.c.l.b16 %v474
        %v2677 = vunpack.c.h.b16 %v474
        %v2678 = vunpack.c.l.b16 %v475
        %v2679 = vunpack.c.h.b16 %v475
        %v2680 = vunpack.c.l.b16 %v476
        %v2681 = vunpack.c.h.b16 %v476
        %v2682 = vunpack.c.l.b16 %v477
        %v2683 = vunpack.c.h.b16 %v477
        %v2684 = vunpack.c.l.b16 %v478
        %v2685 = vunpack.c.h.b16 %v478
        %v2686 = vunpack.c.l.b16 %v479
        %v2687 = vunpack.c.h.b16 %v479
        %v2688 = vunpack.c.l.b16 %v480
        %v2689 = vunpack.c.h.b16 %v480
        %v2690 = vunpack.c.l.b16 %v481
        %v2691 = vunpack.c.h.b16 %v481
        %v2692 = vunpack.c.l.b16 %v482
        %v2693 = vunpack.c.h.b16 %v482
        %v2694 = vunpack.c.l.b16 %v483
        %v2695 = vunpack.c.h.b16 %v483
        %v2696 = vunpack.c.l.b16 %v484
        %v2697 = vunpack.c.h.b16 %v484
        %v2698 = vunpack.c.l.b16 %v485
        %v2699 = vunpack.c.h.b16 %v485
        %v2700 = vunpack.c.l.b16 %v486
        %v2701 = vunpack.c.h.b16 %v486
        %v2702 = vunpack.c.l.b16 %v487
        %v2703 = vunpack.c.h.b16 %v487
        %v2704 = vunpack.c.l.b16 %v488
        %v2705 = vunpack.c.h.b16 %v488
        %v2706 = vunpack.c.l.b16 %v489
        %v2707 = vunpack.c.h.b16 %v489
        %v2708 = vunpack.c.l.b16 %v490
        %v2709 = vunpack.c.h.b16 %v490
        %v2710 = vunpack.c.l.b16 %v491
        %v2711 = vunpack.c.h.b16 %v491
        %v2712 = vunpack.c.l.b16 %v492
        %v2713 = vunpack.c.h.b16 %v492
        %v2714 = vunpack.c.l.b16 %v493
        %v2715 = vunpack.c.h.b16 %v493
        %v2716 = vunpack.c.l.b16 %v494
        %v2717 = vunpack.c.h.b16 %v494
        %v2718 = vunpack.c.l.b16 %v495
        %v2719 = vunpack.c.h.b16 %v495
        %v2720 = vunpack.c.l.b16 %v496
        %v2721 = vunpack.c.h.b16 %v496
        %v2722 = vunpack.c.l.b16 %v497
        %v2723 = vunpack.c.h.b16 %v497
        %v2724 = vunpack.c.l.b16 %v498
        %v2725 = vunpack.c.h.b16 %v498
        %v2726 = vunpack.c.l.b16 %v499
        %v2727 = vunpack.c.h.b16 %v499
        %v2728 = vunpack.c.l.b16 %v500
        %v2729 = vunpack.c.h.b16 %v500
        %v2730 = vunpack.c.l.b16 %v501
        %v2731 = vunpack.c.h.b16 %v501
        %v2732 = vunpack.c.l.b16 %v502
        %v2733 = vunpack.c.h.b16 %v502
        %v2734 = vunpack.c.l.b16 %v503
        %v2735 = vunpack.c.h.b16 %v503
        %v2736 = vunpack.c.l.b16 %v504
        %v2737 = vunpack.c.h.b16 %v504
        %v2738 = vunpack.c.l.b16 %v505
        %v2739 = vunpack.c.h.b16 %v505
        %v2740 = vunpack.c.l.b16 %v506
        %v2741 = vunpack.c.h.b16 %v506
        %v2742 = vunpack.c.l.b16 %v507
        %v2743 = vunpack.c.h.b16 %v507
        %v2744 = vunpack.c.l.b16 %v508
        %v2745 = vunpack.c.h.b16 %v508
        %v2746 = vunpack.c.l.b16 %v509
        %v2747 = vunpack.c.h.b16 %v509
        %v2748 = vunpack.c.l.b16 %v510
        %v2749 = vunpack.c.h.b16 %v510
        %v2750 = vunpack.c.l.b16 %v511
        %v2751 = vunpack.c.h.b16 %v511
        %v2752 = vunpack.c.l.b16 %v512
        %v2753 = vunpack.c.h.b16 %v512
        %v2754 = vunpack.c.l.b16 %v513
        %v2755 = vunpack.c.h.b16 %v513
        %v2756 = vunpack.c.l.b16 %v514
        %v2757 = vunpack.c.h.b16 %v514
        %v2758 = vunpack.c.l.b16 %v515
        %v2759 = vunpack.c.h.b16 %v515
        %v2760 = vunpack.c.l.b16 %v516
        %v2761 = vunpack.c.h.b16 %v516
        %v2762 = vunpack.c.l.b16 %v517
        %v2763 = vunpack.c.h.b16 %v517
        %v2764 = vunpack.c.l.b16 %v518
        %v2765 = vunpack.c.h.b16 %v518
        %v2766 = vunpack.c.l.b16 %v519
        %v2767 = vunpack.c.h.b16 %v519
        %v2768 = vunpack.c.l.b16 %v520
        %v2769 = vunpack.c.h.b16 %v520
        %v2770 = vunpack.c.l.b16 %v521
        %v2771 = vunpack.c.h.b16 %v521
        %v2772 = vunpack.c.l.b16 %v522
        %v2773 = vunpack.c.h.b16 %v522
        %v2774 = vunpack.c.l.b16 %v523
        %v2775 = vunpack.c.h.b16 %v523
        %v2776 = vunpack.c.l.b16 %v524
        %v2777 = vunpack.c.h.b16 %v524
        %v2778 = vunpack.c.l.b16 %v525
        %v2779 = vunpack.c.h.b16 %v525
        %v2780 = vunpack.c.l.b16 %v526
        %v2781 = vunpack.c.h.b16 %v526
        %v2782 = vunpack.c.l.b16 %v527
        %v2783 = vunpack.c.h.b16 %v527
        %v2784 = vunpack.c.l.b16 %v528
        %v2785 = vunpack.c.h.b16 %v528
        %v2786 = vunpack.c.l.b16 %v529
        %v2787 = vunpack.c.h.b16 %v529
        %v2788 = vunpack.c.l.b16 %v530
        %v2789 = vunpack.c.h.b16 %v530
        %v2790 = vunpack.c.l.b16 %v531
        %v2791 = vunpack.c.h.b16 %v531
        %v2792 = vunpack.c.l.b16 %v532
        %v2793 = vunpack.c.h.b16 %v532
        %v2794 = vunpack.c.l.b16 %v533
        %v2795 = vunpack.c.h.b16 %v533
        %v2796 = vunpack.c.l.b16 %v534
        %v2797 = vunpack.c.h.b16 %v534
        %v2798 = vunpack.c.l.b16 %v535
        %v2799 = vunpack.c.h.b16 %v535
        %v2800 = vunpack.c.l.b16 %v536
        %v2801 = vunpack.c.h.b16 %v536
        %v2802 = vunpack.c.l.b16 %v537
        %v2803 = vunpack.c.h.b16 %v537
        %v2804 = vunpack.c.l.b16 %v538
        %v2805 = vunpack.c.h.b16 %v538
        %v2806 = vunpack.c.l.b16 %v539
        %v2807 = vunpack.c.h.b16 %v539
        %v2808 = vunpack.c.l.b16 %v540
        %v2809 = vunpack.c.h.b16 %v540
        %v2810 = vunpack.c.l.b16 %v541
        %v2811 = vunpack.c.h.b16 %v541
        %v2812 = vunpack.c.l.b16 %v542
        %v2813 = vunpack.c.h.b16 %v542
        %v2814 = vunpack.c.l.b16 %v543
        %v2815 = vunpack.c.h.b16 %v543
        %v2816 = vunpack.c.l.b16 %v544
        %v2817 = vunpack.c.h.b16 %v544
        %v2818 = vunpack.c.l.b16 %v545
        %v2819 = vunpack.c.h.b16 %v545
        %v2820 = vunpack.c.l.b16 %v546
        %v2821 = vunpack.c.h.b16 %v546
        %v2822 = vunpack.c.l.b16 %v547
        %v2823 = vunpack.c.h.b16 %v547
        %v2824 = vunpack.c.l.b16 %v548
        %v2825 = vunpack.c.h.b16 %v548
        %v2826 = vunpack.c.l.b16 %v549
        %v2827 = vunpack.c.h.b16 %v549
        %v2828 = vunpack.c.l.b16 %v550
        %v2829 = vunpack.c.h.b16 %v550
        %v2830 = vunpack.c.l.b16 %v551
        %v2831 = vunpack.c.h.b16 %v551
        %v2832 = vunpack.c.l.b16 %v552
        %v2833 = vunpack.c.h.b16 %v552
        %v2834 = vunpack.c.l.b16 %v553
        %v2835 = vunpack.c.h.b16 %v553
        %v2836 = vunpack.c.l.b16 %v554
        %v2837 = vunpack.c.h.b16 %v554
        %v2838 = vunpack.c.l.b16 %v555
        %v2839 = vunpack.c.h.b16 %v555
        %v2840 = vunpack.c.l.b16 %v556
        %v2841 = vunpack.c.h.b16 %v556
        %v2842 = vunpack.c.l.b16 %v557
        %v2843 = vunpack.c.h.b16 %v557
        %v2844 = vunpack.c.l.b16 %v558
        %v2845 = vunpack.c.h.b16 %v558
        %v2846 = vunpack.c.l.b16 %v559
        %v2847 = vunpack.c.h.b16 %v559
        %v2848 = vunpack.c.l.b16 %v560
        %v2849 = vunpack.c.h.b16 %v560
        %v2850 = vunpack.c.l.b16 %v561
        %v2851 = vunpack.c.h.b16 %v561
        %v2852 = vunpack.c.l.b16 %v562
        %v2853 = vunpack.c.h.b16 %v562
        %v2854 = vunpack.c.l.b16 %v563
        %v2855 = vunpack.c.h.b16 %v563
        %v2856 = vunpack.c.l.b16 %v564
        %v2857 = vunpack.c.h.b16 %v564
        %v2858 = vunpack.c.l.b16 %v565
        %v2859 = vunpack.c.h.b16 %v565
        %v2860 = vunpack.c.l.b16 %v566
        %v2861 = vunpack.c.h.b16 %v566
        %v2862 = vunpack.c.l.b16 %v567
        %v2863 = vunpack.c.h.b16 %v567
        %v2864 = vunpack.c.l.b16 %v568
        %v2865 = vunpack.c.h.b16 %v568
        %v2866 = vunpack.c.l.b16 %v569
        %v2867 = vunpack.c.h.b16 %v569
        %v2868 = vunpack.c.l.b16 %v570
        %v2869 = vunpack.c.h.b16 %v570
        %v2870 = vunpack.c.l.b16 %v571
        %v2871 = vunpack.c.h.b16 %v571
        %v2872 = vunpack.c.l.b16 %v572
        %v2873 = vunpack.c.h.b16 %v572
        %v2874 = vunpack.c.l.b16 %v573
        %v2875 = vunpack.c.h.b16 %v573
        %v2876 = vunpack.c.l.b16 %v574
        %v2877 = vunpack.c.h.b16 %v574
        %v2878 = vunpack.c.l.b16 %v575
        %v2879 = vunpack.c.h.b16 %v575
        %v2880 = vunpack.c.l.b16 %v576
        %v2881 = vunpack.c.h.b16 %v576
        %v2882 = vunpack.c.l.b16 %v577
        %v2883 = vunpack.c.h.b16 %v577
        %v2884 = vunpack.c.l.b16 %v578
        %v2885 = vunpack.c.h.b16 %v578
        %v2886 = vunpack.c.l.b16 %v579
        %v2887 = vunpack.c.h.b16 %v579
        %v2888 = vunpack.c.l.b16 %v580
        %v2889 = vunpack.c.h.b16 %v580
        %v2890 = vunpack.c.l.b16 %v581
        %v2891 = vunpack.c.h.b16 %v581
        %v2892 = vunpack.c.l.b16 %v582
        %v2893 = vunpack.c.h.b16 %v582
        %v2894 = vunpack.c.l.b16 %v583
        %v2895 = vunpack.c.h.b16 %v583
        %v2896 = vunpack.c.l.b16 %v584
        %v2897 = vunpack.c.h.b16 %v584
        %v2898 = vunpack.c.l.b16 %v585
        %v2899 = vunpack.c.h.b16 %v585
        %v2900 = vunpack.c.l.b16 %v586
        %v2901 = vunpack.c.h.b16 %v586
        %v2902 = vunpack.c.l.b16 %v587
        %v2903 = vunpack.c.h.b16 %v587
        %v2904 = vunpack.c.l.b16 %v588
        %v2905 = vunpack.c.h.b16 %v588
        %v2906 = vunpack.c.l.b16 %v589
        %v2907 = vunpack.c.h.b16 %v589
        %v2908 = vunpack.c.l.b16 %v590
        %v2909 = vunpack.c.h.b16 %v590
        %v2910 = vunpack.c.l.b16 %v591
        %v2911 = vunpack.c.h.b16 %v591
        %v2912 = vunpack.c.l.b16 %v592
        %v2913 = vunpack.c.h.b16 %v592
        %v2914 = vunpack.c.l.b16 %v593
        %v2915 = vunpack.c.h.b16 %v593
        %v2916 = vunpack.c.l.b16 %v594
        %v2917 = vunpack.c.h.b16 %v594
        %v2918 = vunpack.c.l.b16 %v595
        %v2919 = vunpack.c.h.b16 %v595
        %v2920 = vunpack.c.l.b16 %v596
        %v2921 = vunpack.c.h.b16 %v596
        %v2922 = vunpack.c.l.b16 %v597
        %v2923 = vunpack.c.h.b16 %v597
        %v2924 = vunpack.c.l.b16 %v598
        %v2925 = vunpack.c.h.b16 %v598
        %v2926 = vunpack.c.l.b16 %v599
        %v2927 = vunpack.c.h.b16 %v599
        %v2928 = vunpack.c.l.b16 %v600
        %v2929 = vunpack.c.h.b16 %v600
        %v2930 = vunpack.c.l.b16 %v601
        %v2931 = vunpack.c.h.b16 %v601
        %v2932 = vunpack.c.l.b16 %v602
        %v2933 = vunpack.c.h.b16 %v602
        %v2934 = vunpack.c.l.b16 %v603
        %v2935 = vunpack.c.h.b16 %v603
        %v2936 = vunpack.c.l.b16 %v604
        %v2937 = vunpack.c.h.b16 %v604
        %v2938 = vunpack.c.l.b16 %v605
        %v2939 = vunpack.c.h.b16 %v605
        %v2940 = vunpack.c.l.b16 %v606
        %v2941 = vunpack.c.h.b16 %v606
        %v2942 = vunpack.c.l.b16 %v607
        %v2943 = vunpack.c.h.b16 %v607
        %v2944 = vunpack.c.l.b16 %v608
        %v2945 = vunpack.c.h.b16 %v608
        %v2946 = vunpack.c.l.b16 %v609
        %v2947 = vunpack.c.h.b16 %v609
        %v2948 = vunpack.c.l.b16 %v610
        %v2949 = vunpack.c.h.b16 %v610
        %v2950 = vunpack.c.l.b16 %v611
        %v2951 = vunpack.c.h.b16 %v611
        %v2952 = vunpack.c.l.b16 %v612
        %v2953 = vunpack.c.h.b16 %v612
        %v2954 = vunpack.c.l.b16 %v613
        %v2955 = vunpack.c.h.b16 %v613
        %v2956 = vunpack.c.l.b16 %v614
        %v2957 = vunpack.c.h.b16 %v614
        %v2958 = vunpack.c.l.b16 %v615
        %v2959 = vunpack.c.h.b16 %v615
        %v2960 = vunpack.c.l.b16 %v616
        %v2961 = vunpack.c.h.b16 %v616
        %v2962 = vunpack.c.l.b16 %v617
        %v2963 = vunpack.c.h.b16 %v617
        %v2964 = vunpack.c.l.b16 %v618
        %v2965 = vunpack.c.h.b16 %v618
        %v2966 = vunpack.c.l.b16 %v619
        %v2967 = vunpack.c.h.b16 %v619
        %v2968 = vunpack.c.l.b16 %v620
        %v2969 = vunpack.c.h.b16 %v620
        %v2970 = vunpack.c.l.b16 %v621
        %v2971 = vunpack.c.h.b16 %v621
        %v2972 = vunpack.c.l.b16 %v622
        %v2973 = vunpack.c.h.b16 %v622
        %v2974 = vunpack.c.l.b16 %v623
        %v2975 = vunpack.c.h.b16 %v623
        %v2976 = vunpack.c.l.b16 %v624
        %v2977 = vunpack.c.h.b16 %v624
        %v2978 = vunpack.c.l.b16 %v625
        %v2979 = vunpack.c.h.b16 %v625
        %v2980 = vunpack.c.l.b16 %v626
        %v2981 = vunpack.c.h.b16 %v626
        %v2982 = vunpack.c.l.b16 %v627
        %v2983 = vunpack.c.h.b16 %v627
        %v2984 = vunpack.c.l.b16 %v628
        %v2985 = vunpack.c.h.b16 %v628
        %v2986 = vunpack.c.l.b16 %v629
        %v2987 = vunpack.c.h.b16 %v629
        %v2988 = vunpack.c.l.b16 %v630
        %v2989 = vunpack.c.h.b16 %v630
        %v2990 = vunpack.c.l.b16 %v631
        %v2991 = vunpack.c.h.b16 %v631
        %v2992 = vunpack.c.l.b16 %v632
        %v2993 = vunpack.c.h.b16 %v632
        %v2994 = vunpack.c.l.b16 %v633
        %v2995 = vunpack.c.h.b16 %v633
        %v2996 = vunpack.c.l.b16 %v634
        %v2997 = vunpack.c.h.b16 %v634
        %v2998 = vunpack.c.l.b16 %v635
        %v2999 = vunpack.c.h.b16 %v635
        %v3000 = vunpack.c.l.b16 %v636
        %v3001 = vunpack.c.h.b16 %v636
        %v3002 = vunpack.c.l.b16 %v637
        %v3003 = vunpack.c.h.b16 %v637
        %v3004 = vunpack.c.l.b16 %v638
        %v3005 = vunpack.c.h.b16 %v638
        %v3006 = vunpack.c.l.b16 %v639
        %v3007 = vunpack.c.h.b16 %v639
        %v3008 = vunpack.c.l.b16 %v640
        %v3009 = vunpack.c.h.b16 %v640
        %v3010 = vunpack.c.l.b16 %v641
        %v3011 = vunpack.c.h.b16 %v641
        %v3012 = vunpack.c.l.b16 %v642
        %v3013 = vunpack.c.h.b16 %v642
        %v3014 = vunpack.c.l.b16 %v643
        %v3015 = vunpack.c.h.b16 %v643
        %v3016 = vunpack.c.l.b16 %v644
        %v3017 = vunpack.c.h.b16 %v644
        %v3018 = vunpack.c.l.b16 %v645
        %v3019 = vunpack.c.h.b16 %v645
        %v3020 = vunpack.c.l.b16 %v646
        %v3021 = vunpack.c.h.b16 %v646
        %v3022 = vunpack.c.l.b16 %v647
        %v3023 = vunpack.c.h.b16 %v647
        %v3024 = vunpack.c.l.b16 %v648
        %v3025 = vunpack.c.h.b16 %v648
        %v3026 = vunpack.c.l.b16 %v649
        %v3027 = vunpack.c.h.b16 %v649
        %v3028 = vunpack.c.l.b16 %v650
        %v3029 = vunpack.c.h.b16 %v650
        %v3030 = vunpack.c.l.b16 %v651
        %v3031 = vunpack.c.h.b16 %v651
        %v3032 = vunpack.c.l.b16 %v652
        %v3033 = vunpack.c.h.b16 %v652
        %v3034 = vunpack.c.l.b16 %v653
        %v3035 = vunpack.c.h.b16 %v653
        %v3036 = vunpack.c.l.b16 %v654
        %v3037 = vunpack.c.h.b16 %v654
        %v3038 = vunpack.c.l.b16 %v655
        %v3039 = vunpack.c.h.b16 %v655
        %v3040 = vunpack.c.l.b16 %v656
        %v3041 = vunpack.c.h.b16 %v656
        %v3042 = vunpack.c.l.b16 %v657
        %v3043 = vunpack.c.h.b16 %v657
        %v3044 = vunpack.c.l.b16 %v658
        %v3045 = vunpack.c.h.b16 %v658
        %v3046 = vunpack.c.l.b16 %v659
        %v3047 = vunpack.c.h.b16 %v659
        %v3048 = vunpack.c.l.b16 %v660
        %v3049 = vunpack.c.h.b16 %v660
        %v3050 = vunpack.c.l.b16 %v661
        %v3051 = vunpack.c.h.b16 %v661
        %v3052 = vunpack.c.l.b16 %v662
        %v3053 = vunpack.c.h.b16 %v662
        %v3054 = vunpack.c.l.b16 %v663
        %v3055 = vunpack.c.h.b16 %v663
        %v3056 = vunpack.c.l.b16 %v664
        %v3057 = vunpack.c.h.b16 %v664
        %v3058 = vunpack.c.l.b16 %v665
        %v3059 = vunpack.c.h.b16 %v665
        %v3060 = vunpack.c.l.b16 %v666
        %v3061 = vunpack.c.h.b16 %v666
        %v3062 = vunpack.c.l.b16 %v667
        %v3063 = vunpack.c.h.b16 %v667
        %v3064 = vunpack.c.l.b16 %v668
        %v3065 = vunpack.c.h.b16 %v668
        %v3066 = vunpack.c.l.b16 %v669
        %v3067 = vunpack.c.h.b16 %v669
        %v3068 = vunpack.c.l.b16 %v670
        %v3069 = vunpack.c.h.b16 %v670
        %v3070 = vunpack.c.l.b16 %v671
        %v3071 = vunpack.c.h.b16 %v671
        %v3072 = vunpack.c.l.b16 %v672
        %v3073 = vunpack.c.h.b16 %v672
        %v3074 = vunpack.c.l.b16 %v673
        %v3075 = vunpack.c.h.b16 %v673
        %v3076 = vunpack.c.l.b16 %v674
        %v3077 = vunpack.c.h.b16 %v674
        %v3078 = vunpack.c.l.b16 %v675
        %v3079 = vunpack.c.h.b16 %v675
        %v3080 = vunpack.c.l.b16 %v676
        %v3081 = vunpack.c.h.b16 %v676
        %v3082 = vunpack.c.l.b16 %v677
        %v3083 = vunpack.c.h.b16 %v677
        %v3084 = vunpack.c.l.b16 %v678
        %v3085 = vunpack.c.h.b16 %v678
        %v3086 = vunpack.c.l.b16 %v679
        %v3087 = vunpack.c.h.b16 %v679
        %v3088 = vunpack.c.l.b16 %v680
        %v3089 = vunpack.c.h.b16 %v680
        %v3090 = vunpack.c.l.b16 %v681
        %v3091 = vunpack.c.h.b16 %v681
        %v3092 = vunpack.c.l.b16 %v682
        %v3093 = vunpack.c.h.b16 %v682
        %v3094 = vunpack.c.l.b16 %v683
        %v3095 = vunpack.c.h.b16 %v683
        %v3096 = vunpack.c.l.b16 %v684
        %v3097 = vunpack.c.h.b16 %v684
        %v3098 = vunpack.c.l.b16 %v685
        %v3099 = vunpack.c.h.b16 %v685
        %v3100 = vunpack.c.l.b16 %v686
        %v3101 = vunpack.c.h.b16 %v686
        %v3102 = vunpack.c.l.b16 %v687
        %v3103 = vunpack.c.h.b16 %v687
        %v3104 = vunpack.c.l.b16 %v688
        %v3105 = vunpack.c.h.b16 %v688
        %v3106 = vunpack.c.l.b16 %v689
        %v3107 = vunpack.c.h.b16 %v689
        %v3108 = vunpack.c.l.b16 %v690
        %v3109 = vunpack.c.h.b16 %v690
        %v3110 = vunpack.c.l.b16 %v691
        %v3111 = vunpack.c.h.b16 %v691
        %v3112 = vunpack.c.l.b16 %v692
        %v3113 = vunpack.c.h.b16 %v692
        %v3114 = vunpack.c.l.b16 %v693
        %v3115 = vunpack.c.h.b16 %v693
        %v3116 = vunpack.c.l.b16 %v694
        %v3117 = vunpack.c.h.b16 %v694
        %v3118 = vunpack.c.l.b16 %v695
        %v3119 = vunpack.c.h.b16 %v695
        %v3120 = vunpack.c.l.b16 %v696
        %v3121 = vunpack.c.h.b16 %v696
        %v3122 = vunpack.c.l.b16 %v697
        %v3123 = vunpack.c.h.b16 %v697
        %v3124 = vunpack.c.l.b16 %v698
        %v3125 = vunpack.c.h.b16 %v698
        %v3126 = vunpack.c.l.b16 %v699
        %v3127 = vunpack.c.h.b16 %v699
        %v3128 = vunpack.c.l.b16 %v700
        %v3129 = vunpack.c.h.b16 %v700
        %v3130 = vunpack.c.l.b16 %v701
        %v3131 = vunpack.c.h.b16 %v701
        %v3132 = vunpack.c.l.b16 %v702
        %v3133 = vunpack.c.h.b16 %v702
        %v3134 = vunpack.c.l.b16 %v703
        %v3135 = vunpack.c.h.b16 %v703
        %v3136 = vunpack.c.l.b16 %v704
        %v3137 = vunpack.c.h.b16 %v704
        %v3138 = vunpack.c.l.b16 %v705
        %v3139 = vunpack.c.h.b16 %v705
        %v3140 = vunpack.c.l.b16 %v706
        %v3141 = vunpack.c.h.b16 %v706
        %v3142 = vunpack.c.l.b16 %v707
        %v3143 = vunpack.c.h.b16 %v707
        %v3144 = vunpack.c.l.b16 %v708
        %v3145 = vunpack.c.h.b16 %v708
        %v3146 = vunpack.c.l.b16 %v709
        %v3147 = vunpack.c.h.b16 %v709
        %v3148 = vunpack.c.l.b16 %v710
        %v3149 = vunpack.c.h.b16 %v710
        %v3150 = vunpack.c.l.b16 %v711
        %v3151 = vunpack.c.h.b16 %v711
        %v3152 = vunpack.c.l.b16 %v712
        %v3153 = vunpack.c.h.b16 %v712
        %v3154 = vunpack.c.l.b16 %v713
        %v3155 = vunpack.c.h.b16 %v713
        %v3156 = vunpack.c.l.b16 %v714
        %v3157 = vunpack.c.h.b16 %v714
        %v3158 = vunpack.c.l.b16 %v715
        %v3159 = vunpack.c.h.b16 %v715
        %v3160 = vunpack.c.l.b16 %v716
        %v3161 = vunpack.c.h.b16 %v716
        %v3162 = vunpack.c.l.b16 %v717
        %v3163 = vunpack.c.h.b16 %v717
        %v3164 = vunpack.c.l.b16 %v718
        %v3165 = vunpack.c.h.b16 %v718
        %v3166 = vunpack.c.l.b16 %v719
        %v3167 = vunpack.c.h.b16 %v719
        %v3168 = vunpack.c.l.b16 %v720
        %v3169 = vunpack.c.h.b16 %v720
        %v3170 = vunpack.c.l.b16 %v721
        %v3171 = vunpack.c.h.b16 %v721
        %v3172 = vunpack.c.l.b16 %v722
        %v3173 = vunpack.c.h.b16 %v722
        %v3174 = vunpack.c.l.b16 %v723
        %v3175 = vunpack.c.h.b16 %v723
        %v3176 = vunpack.c.l.b16 %v724
        %v3177 = vunpack.c.h.b16 %v724
        %v3178 = vunpack.c.l.b16 %v725
        %v3179 = vunpack.c.h.b16 %v725
        %v3180 = vunpack.c.l.b16 %v726
        %v3181 = vunpack.c.h.b16 %v726
        %v3182 = vunpack.c.l.b16 %v727
        %v3183 = vunpack.c.h.b16 %v727
        %v3184 = vunpack.c.l.b16 %v728
        %v3185 = vunpack.c.h.b16 %v728
        %v3186 = vunpack.c.l.b16 %v729
        %v3187 = vunpack.c.h.b16 %v729
        %v3188 = vunpack.c.l.b16 %v730
        %v3189 = vunpack.c.h.b16 %v730
        %v3190 = vunpack.c.l.b16 %v731
        %v3191 = vunpack.c.h.b16 %v731
        %v3192 = vunpack.c.l.b16 %v732
        %v3193 = vunpack.c.h.b16 %v732
        %v3194 = vunpack.c.l.b16 %v733
        %v3195 = vunpack.c.h.b16 %v733
        %v3196 = vunpack.c.l.b16 %v734
        %v3197 = vunpack.c.h.b16 %v734
        %v3198 = vunpack.c.l.b16 %v735
        %v3199 = vunpack.c.h.b16 %v735
        %v3200 = vunpack.c.l.b16 %v736
        %v3201 = vunpack.c.h.b16 %v736
        %v3202 = vunpack.c.l.b16 %v737
        %v3203 = vunpack.c.h.b16 %v737
        %v3204 = vunpack.c.l.b16 %v738
        %v3205 = vunpack.c.h.b16 %v738
        %v3206 = vunpack.c.l.b16 %v739
        %v3207 = vunpack.c.h.b16 %v739
        %v3208 = vunpack.c.l.b16 %v740
        %v3209 = vunpack.c.h.b16 %v740
        %v3210 = vunpack.c.l.b16 %v741
        %v3211 = vunpack.c.h.b16 %v741
        %v3212 = vunpack.c.l.b16 %v742
        %v3213 = vunpack.c.h.b16 %v742
        %v3214 = vunpack.c.l.b16 %v743
        %v3215 = vunpack.c.h.b16 %v743
        %v3216 = vunpack.c.l.b16 %v744
        %v3217 = vunpack.c.h.b16 %v744
        %v3218 = vunpack.c.l.b16 %v745
        %v3219 = vunpack.c.h.b16 %v745
        %v3220 = vunpack.c.l.b16 %v746
        %v3221 = vunpack.c.h.b16 %v746
        %v3222 = vunpack.c.l.b16 %v747
        %v3223 = vunpack.c.h.b16 %v747
        %v3224 = vunpack.c.l.b16 %v748
        %v3225 = vunpack.c.h.b16 %v748
        %v3226 = vunpack.c.l.b16 %v749
        %v3227 = vunpack.c.h.b16 %v749
        %v3228 = vunpack.c.l.b16 %v750
        %v3229 = vunpack.c.h.b16 %v750
        %v3230 = vunpack.c.l.b16 %v751
        %v3231 = vunpack.c.h.b16 %v751
        %v3232 = vunpack.c.l.b16 %v752
        %v3233 = vunpack.c.h.b16 %v752
        %v3234 = vunpack.c.l.b16 %v753
        %v3235 = vunpack.c.h.b16 %v753
        %v3236 = vunpack.c.l.b16 %v754
        %v3237 = vunpack.c.h.b16 %v754
        %v3238 = vunpack.c.l.b16 %v755
        %v3239 = vunpack.c.h.b16 %v755
        %v3240 = vunpack.c.l.b16 %v756
        %v3241 = vunpack.c.h.b16 %v756
        %v3242 = vunpack.c.l.b16 %v757
        %v3243 = vunpack.c.h.b16 %v757
        %v3244 = vunpack.c.l.b16 %v758
        %v3245 = vunpack.c.h.b16 %v758
        %v3246 = vunpack.c.l.b16 %v759
        %v3247 = vunpack.c.h.b16 %v759
        %v3248 = vunpack.c.l.b16 %v760
        %v3249 = vunpack.c.h.b16 %v760
        %v3250 = vunpack.c.l.b16 %v761
        %v3251 = vunpack.c.h.b16 %v761
        %v3252 = vunpack.c.l.b16 %v762
        %v3253 = vunpack.c.h.b16 %v762
        %v3254 = vunpack.c.l.b16 %v763
        %v3255 = vunpack.c.h.b16 %v763
        %v3256 = vunpack.c.l.b16 %v764
        %v3257 = vunpack.c.h.b16 %v764
        %v3258 = vunpack.c.l.b16 %v765
        %v3259 = vunpack.c.h.b16 %v765
        %v3260 = vunpack.c.l.b16 %v766
        %v3261 = vunpack.c.h.b16 %v766
        %v3262 = vunpack.c.l.b16 %v767
        %v3263 = vunpack.c.h.b16 %v767
        %v3264 = vunpack.c.l.b16 %v768
        %v3265 = vunpack.c.h.b16 %v768
        %v3266 = vunpack.c.l.b16 %v769
        %v3267 = vunpack.c.h.b16 %v769
        %v3268 = vunpack.c.l.b16 %v770
        %v3269 = vunpack.c.h.b16 %v770
        %v3270 = vunpack.c.l.b16 %v771
        %v3271 = vunpack.c.h.b16 %v771
        %v3272 = vunpack.c.l.b16 %v772
        %v3273 = vunpack.c.h.b16 %v772
        %v3274 = vunpack.c.l.b16 %v773
        %v3275 = vunpack.c.h.b16 %v773
        %v3276 = vunpack.c.l.b16 %v774
        %v3277 = vunpack.c.h.b16 %v774
        %v3278 = vunpack.c.l.b16 %v775
        %v3279 = vunpack.c.h.b16 %v775
        %v3280 = vunpack.c.l.b16 %v776
        %v3281 = vunpack.c.h.b16 %v776
        %v3282 = vunpack.c.l.b16 %v777
        %v3283 = vunpack.c.h.b16 %v777
        %v3284 = vunpack.c.l.b16 %v778
        %v3285 = vunpack.c.h.b16 %v778
        %v3286 = vunpack.c.l.b16 %v779
        %v3287 = vunpack.c.h.b16 %v779
        %v3288 = vunpack.c.l.b16 %v780
        %v3289 = vunpack.c.h.b16 %v780
        %v3290 = vunpack.c.l.b16 %v781
        %v3291 = vunpack.c.h.b16 %v781
        %v3292 = vunpack.c.l.b16 %v782
        %v3293 = vunpack.c.h.b16 %v782
        %v3294 = vunpack.c.l.b16 %v783
        %v3295 = vunpack.c.h.b16 %v783
        %v3296 = vunpack.c.l.b16 %v784
        %v3297 = vunpack.c.h.b16 %v784
        %v3298 = vunpack.c.l.b16 %v785
        %v3299 = vunpack.c.h.b16 %v785
        %v3300 = vunpack.c.l.b16 %v786
        %v3301 = vunpack.c.h.b16 %v786
        %v3302 = vunpack.c.l.b16 %v787
        %v3303 = vunpack.c.h.b16 %v787
        %v3304 = vunpack.c.l.b16 %v788
        %v3305 = vunpack.c.h.b16 %v788
        %v3306 = vunpack.c.l.b16 %v789
        %v3307 = vunpack.c.h.b16 %v789
        %v3308 = vunpack.c.l.b16 %v790
        %v3309 = vunpack.c.h.b16 %v790
        %v3310 = vunpack.c.l.b16 %v791
        %v3311 = vunpack.c.h.b16 %v791
        %v3312 = vunpack.c.l.b16 %v792
        %v3313 = vunpack.c.h.b16 %v792
        %v3314 = vunpack.c.l.b16 %v793
        %v3315 = vunpack.c.h.b16 %v793
        %v3316 = vunpack.c.l.b16 %v794
        %v3317 = vunpack.c.h.b16 %v794
        %v3318 = vunpack.c.l.b16 %v795
        %v3319 = vunpack.c.h.b16 %v795
        %v3320 = vunpack.c.l.b16 %v796
        %v3321 = vunpack.c.h.b16 %v796
        %v3322 = vunpack.c.l.b16 %v797
        %v3323 = vunpack.c.h.b16 %v797
        %v3324 = vunpack.c.l.b16 %v798
        %v3325 = vunpack.c.h.b16 %v798
        %v3326 = vunpack.c.l.b16 %v799
        %v3327 = vunpack.c.h.b16 %v799
        %v3328 = vunpack.c.l.b16 %v800
        %v3329 = vunpack.c.h.b16 %v800
        %v3330 = vunpack.c.l.b16 %v801
        %v3331 = vunpack.c.h.b16 %v801
        %v3332 = vunpack.c.l.b16 %v802
        %v3333 = vunpack.c.h.b16 %v802
        %v3334 = vunpack.c.l.b16 %v803
        %v3335 = vunpack.c.h.b16 %v803
        %v3336 = vunpack.c.l.b16 %v804
        %v3337 = vunpack.c.h.b16 %v804
        %v3338 = vunpack.c.l.b16 %v805
        %v3339 = vunpack.c.h.b16 %v805
        %v3340 = vunpack.c.l.b16 %v806
        %v3341 = vunpack.c.h.b16 %v806
        %v3342 = vunpack.c.l.b16 %v807
        %v3343 = vunpack.c.h.b16 %v807
        %v3344 = vunpack.c.l.b16 %v808
        %v3345 = vunpack.c.h.b16 %v808
        %v3346 = vunpack.c.l.b16 %v809
        %v3347 = vunpack.c.h.b16 %v809
        %v3348 = vunpack.c.l.b16 %v810
        %v3349 = vunpack.c.h.b16 %v810
        %v3350 = vunpack.c.l.b16 %v811
        %v3351 = vunpack.c.h.b16 %v811
        %v3352 = vunpack.c.l.b16 %v812
        %v3353 = vunpack.c.h.b16 %v812
        %v3354 = vunpack.c.l.b16 %v813
        %v3355 = vunpack.c.h.b16 %v813
        %v3356 = vunpack.c.l.b16 %v814
        %v3357 = vunpack.c.h.b16 %v814
        %v3358 = vunpack.c.l.b16 %v815
        %v3359 = vunpack.c.h.b16 %v815
        %v3360 = vunpack.c.l.b16 %v816
        %v3361 = vunpack.c.h.b16 %v816
        %v3362 = vunpack.c.l.b16 %v817
        %v3363 = vunpack.c.h.b16 %v817
        %v3364 = vunpack.c.l.b16 %v818
        %v3365 = vunpack.c.h.b16 %v818
        %v3366 = vunpack.c.l.b16 %v819
        %v3367 = vunpack.c.h.b16 %v819
        %v3368 = vunpack.c.l.b16 %v820
        %v3369 = vunpack.c.h.b16 %v820
        %v3370 = vunpack.c.l.b16 %v821
        %v3371 = vunpack.c.h.b16 %v821
        %v3372 = vunpack.c.l.b16 %v822
        %v3373 = vunpack.c.h.b16 %v822
        %v3374 = vunpack.c.l.b16 %v823
        %v3375 = vunpack.c.h.b16 %v823
        %v3376 = vunpack.c.l.b16 %v824
        %v3377 = vunpack.c.h.b16 %v824
        %v3378 = vunpack.c.l.b16 %v825
        %v3379 = vunpack.c.h.b16 %v825
        %v3380 = vunpack.c.l.b16 %v826
        %v3381 = vunpack.c.h.b16 %v826
        %v3382 = vunpack.c.l.b16 %v827
        %v3383 = vunpack.c.h.b16 %v827
        %v3384 = vunpack.c.l.b16 %v828
        %v3385 = vunpack.c.h.b16 %v828
        %v3386 = vunpack.c.l.b16 %v829
        %v3387 = vunpack.c.h.b16 %v829
        %v3388 = vunpack.c.l.b16 %v830
        %v3389 = vunpack.c.h.b16 %v830
        %v3390 = vunpack.c.l.b16 %v831
        %v3391 = vunpack.c.h.b16 %v831
        %v3392 = vunpack.c.l.b16 %v832
        %v3393 = vunpack.c.h.b16 %v832
        %v3394 = vunpack.c.l.b16 %v833
        %v3395 = vunpack.c.h.b16 %v833
        %v3396 = vunpack.c.l.b16 %v834
        %v3397 = vunpack.c.h.b16 %v834
        %v3398 = vunpack.c.l.b16 %v835
        %v3399 = vunpack.c.h.b16 %v835
        %v3400 = vunpack.c.l.b16 %v836
        %v3401 = vunpack.c.h.b16 %v836
        %v3402 = vunpack.c.l.b16 %v837
        %v3403 = vunpack.c.h.b16 %v837
        %v3404 = vunpack.c.l.b16 %v838
        %v3405 = vunpack.c.h.b16 %v838
        %v3406 = vunpack.c.l.b16 %v839
        %v3407 = vunpack.c.h.b16 %v839
        %v3408 = vunpack.c.l.b16 %v840
        %v3409 = vunpack.c.h.b16 %v840
        %v3410 = vunpack.c.l.b16 %v841
        %v3411 = vunpack.c.h.b16 %v841
        %v3412 = vunpack.c.l.b16 %v842
        %v3413 = vunpack.c.h.b16 %v842
        %v3414 = vunpack.c.l.b16 %v843
        %v3415 = vunpack.c.h.b16 %v843
        %v3416 = vunpack.c.l.b16 %v844
        %v3417 = vunpack.c.h.b16 %v844
        %v3418 = vunpack.c.l.b16 %v845
        %v3419 = vunpack.c.h.b16 %v845
        %v3420 = vunpack.c.l.b16 %v846
        %v3421 = vunpack.c.h.b16 %v846
        %v3422 = vunpack.c.l.b16 %v847
        %v3423 = vunpack.c.h.b16 %v847
        %v3424 = vunpack.c.l.b16 %v848
        %v3425 = vunpack.c.h.b16 %v848
        %v3426 = vunpack.c.l.b16 %v849
        %v3427 = vunpack.c.h.b16 %v849
        %v3428 = vunpack.c.l.b16 %v850
        %v3429 = vunpack.c.h.b16 %v850
        %v3430 = vunpack.c.l.b16 %v851
        %v3431 = vunpack.c.h.b16 %v851
        %v3432 = vunpack.c.l.b16 %v852
        %v3433 = vunpack.c.h.b16 %v852
        %v3434 = vunpack.c.l.b16 %v853
        %v3435 = vunpack.c.h.b16 %v853
        %v3436 = vunpack.c.l.b16 %v854
        %v3437 = vunpack.c.h.b16 %v854
        %v3438 = vunpack.c.l.b16 %v855
        %v3439 = vunpack.c.h.b16 %v855
        %v3440 = vunpack.c.l.b16 %v856
        %v3441 = vunpack.c.h.b16 %v856
        %v3442 = vunpack.c.l.b16 %v857
        %v3443 = vunpack.c.h.b16 %v857
        %v3444 = vunpack.c.l.b16 %v858
        %v3445 = vunpack.c.h.b16 %v858
        %v3446 = vunpack.c.l.b16 %v859
        %v3447 = vunpack.c.h.b16 %v859
        %v3448 = vunpack.c.l.b16 %v860
        %v3449 = vunpack.c.h.b16 %v860
        %v3450 = vunpack.c.l.b16 %v861
        %v3451 = vunpack.c.h.b16 %v861
        %v3452 = vunpack.c.l.b16 %v862
        %v3453 = vunpack.c.h.b16 %v862
        %v3454 = vunpack.c.l.b16 %v863
        %v3455 = vunpack.c.h.b16 %v863
        %v3456 = vunpack.c.l.b16 %v864
        %v3457 = vunpack.c.h.b16 %v864
        %v3458 = vunpack.c.l.b16 %v865
        %v3459 = vunpack.c.h.b16 %v865
        %v3460 = vunpack.c.l.b16 %v866
        %v3461 = vunpack.c.h.b16 %v866
        %v3462 = vunpack.c.l.b16 %v867
        %v3463 = vunpack.c.h.b16 %v867
        %v3464 = vunpack.c.l.b16 %v868
        %v3465 = vunpack.c.h.b16 %v868
        %v3466 = vunpack.c.l.b16 %v869
        %v3467 = vunpack.c.h.b16 %v869
        %v3468 = vunpack.c.l.b16 %v870
        %v3469 = vunpack.c.h.b16 %v870
        %v3470 = vunpack.c.l.b16 %v871
        %v3471 = vunpack.c.h.b16 %v871
        %v3472 = vunpack.c.l.b16 %v872
        %v3473 = vunpack.c.h.b16 %v872
        %v3474 = vunpack.c.l.b16 %v873
        %v3475 = vunpack.c.h.b16 %v873
        %v3476 = vunpack.c.l.b16 %v874
        %v3477 = vunpack.c.h.b16 %v874
        %v3478 = vunpack.c.l.b16 %v875
        %v3479 = vunpack.c.h.b16 %v875
        %v3480 = vunpack.c.l.b16 %v876
        %v3481 = vunpack.c.h.b16 %v876
        %v3482 = vunpack.c.l.b16 %v877
        %v3483 = vunpack.c.h.b16 %v877
        %v3484 = vunpack.c.l.b16 %v878
        %v3485 = vunpack.c.h.b16 %v878
        %v3486 = vunpack.c.l.b16 %v879
        %v3487 = vunpack.c.h.b16 %v879
        %v3488 = vunpack.c.l.b16 %v880
        %v3489 = vunpack.c.h.b16 %v880
        %v3490 = vunpack.c.l.b16 %v881
        %v3491 = vunpack.c.h.b16 %v881
        %v3492 = vunpack.c.l.b16 %v882
        %v3493 = vunpack.c.h.b16 %v882
        %v3494 = vunpack.c.l.b16 %v883
        %v3495 = vunpack.c.h.b16 %v883
        %v3496 = vunpack.c.l.b16 %v884
        %v3497 = vunpack.c.h.b16 %v884
        %v3498 = vunpack.c.l.b16 %v885
        %v3499 = vunpack.c.h.b16 %v885
        %v3500 = vunpack.c.l.b16 %v886
        %v3501 = vunpack.c.h.b16 %v886
        %v3502 = vunpack.c.l.b16 %v887
        %v3503 = vunpack.c.h.b16 %v887
        %v3504 = vunpack.c.l.b16 %v888
        %v3505 = vunpack.c.h.b16 %v888
        %v3506 = vunpack.c.l.b16 %v889
        %v3507 = vunpack.c.h.b16 %v889
        %v3508 = vunpack.c.l.b16 %v890
        %v3509 = vunpack.c.h.b16 %v890
        %v3510 = vunpack.c.l.b16 %v891
        %v3511 = vunpack.c.h.b16 %v891
        %v3512 = vunpack.c.l.b16 %v892
        %v3513 = vunpack.c.h.b16 %v892
        %v3514 = vunpack.c.l.b16 %v893
        %v3515 = vunpack.c.h.b16 %v893
        %v3516 = vunpack.c.l.b16 %v894
        %v3517 = vunpack.c.h.b16 %v894
        %v3518 = vunpack.c.l.b16 %v895
        %v3519 = vunpack.c.h.b16 %v895
        %v3520 = vunpack.c.l.b16 %v896
        %v3521 = vunpack.c.h.b16 %v896
        %v3522 = vunpack.c.l.b16 %v897
        %v3523 = vunpack.c.h.b16 %v897
        %v3524 = vunpack.c.l.b16 %v898
        %v3525 = vunpack.c.h.b16 %v898
        %v3526 = vunpack.c.l.b16 %v899
        %v3527 = vunpack.c.h.b16 %v899
        %v3528 = vunpack.c.l.b16 %v900
        %v3529 = vunpack.c.h.b16 %v900
        %v3530 = vunpack.c.l.b16 %v901
        %v3531 = vunpack.c.h.b16 %v901
        %v3532 = vunpack.c.l.b16 %v902
        %v3533 = vunpack.c.h.b16 %v902
        %v3534 = vunpack.c.l.b16 %v903
        %v3535 = vunpack.c.h.b16 %v903
        %v3536 = vunpack.c.l.b16 %v904
        %v3537 = vunpack.c.h.b16 %v904
        %v3538 = vunpack.c.l.b16 %v905
        %v3539 = vunpack.c.h.b16 %v905
        %v3540 = vunpack.c.l.b16 %v906
        %v3541 = vunpack.c.h.b16 %v906
        %v3542 = vunpack.c.l.b16 %v907
        %v3543 = vunpack.c.h.b16 %v907
        %v3544 = vunpack.c.l.b16 %v908
        %v3545 = vunpack.c.h.b16 %v908
        %v3546 = vunpack.c.l.b16 %v909
        %v3547 = vunpack.c.h.b16 %v909
        %v3548 = vunpack.c.l.b16 %v910
        %v3549 = vunpack.c.h.b16 %v910
        %v3550 = vunpack.c.l.b16 %v911
        %v3551 = vunpack.c.h.b16 %v911
        %v3552 = vunpack.c.l.b16 %v912
        %v3553 = vunpack.c.h.b16 %v912
        %v3554 = vunpack.c.l.b16 %v913
        %v3555 = vunpack.c.h.b16 %v913
        %v3556 = vunpack.c.l.b16 %v914
        %v3557 = vunpack.c.h.b16 %v914
        %v3558 = vunpack.c.l.b16 %v915
        %v3559 = vunpack.c.h.b16 %v915
        %v3560 = vunpack.c.l.b16 %v916
        %v3561 = vunpack.c.h.b16 %v916
        %v3562 = vunpack.c.l.b16 %v917
        %v3563 = vunpack.c.h.b16 %v917
        %v3564 = vunpack.c.l.b16 %v918
        %v3565 = vunpack.c.h.b16 %v918
        %v3566 = vunpack.c.l.b16 %v919
        %v3567 = vunpack.c.h.b16 %v919
        %v3568 = vunpack.c.l.b16 %v920
        %v3569 = vunpack.c.h.b16 %v920
        %v3570 = vunpack.c.l.b16 %v921
        %v3571 = vunpack.c.h.b16 %v921
        %v3572 = vunpack.c.l.b16 %v922
        %v3573 = vunpack.c.h.b16 %v922
        %v3574 = vunpack.c.l.b16 %v923
        %v3575 = vunpack.c.h.b16 %v923
        %v3576 = vunpack.c.l.b16 %v924
        %v3577 = vunpack.c.h.b16 %v924
        %v3578 = vunpack.c.l.b16 %v925
        %v3579 = vunpack.c.h.b16 %v925
        %v3580 = vunpack.c.l.b16 %v926
        %v3581 = vunpack.c.h.b16 %v926
        %v3582 = vunpack.c.l.b16 %v927
        %v3583 = vunpack.c.h.b16 %v927
        %v3584 = vunpack.c.l.b16 %v928
        %v3585 = vunpack.c.h.b16 %v928
        %v3586 = vunpack.c.l.b16 %v929
        %v3587 = vunpack.c.h.b16 %v929
        %v3588 = vunpack.c.l.b16 %v930
        %v3589 = vunpack.c.h.b16 %v930
        %v3590 = vunpack.c.l.b16 %v931
        %v3591 = vunpack.c.h.b16 %v931
        %v3592 = vunpack.c.l.b16 %v932
        %v3593 = vunpack.c.h.b16 %v932
        %v3594 = vunpack.c.l.b16 %v933
        %v3595 = vunpack.c.h.b16 %v933
        %v3596 = vunpack.c.l.b16 %v934
        %v3597 = vunpack.c.h.b16 %v934
        %v3598 = vunpack.c.l.b16 %v935
        %v3599 = vunpack.c.h.b16 %v935
        %v3600 = vunpack.c.l.b16 %v936
        %v3601 = vunpack.c.h.b16 %v936
        %v3602 = vunpack.c.l.b16 %v937
        %v3603 = vunpack.c.h.b16 %v937
        %v3604 = vunpack.c.l.b16 %v938
        %v3605 = vunpack.c.h.b16 %v938
        %v3606 = vunpack.c.l.b16 %v939
        %v3607 = vunpack.c.h.b16 %v939
        %v3608 = vunpack.c.l.b16 %v940
        %v3609 = vunpack.c.h.b16 %v940
        %v3610 = vunpack.c.l.b16 %v941
        %v3611 = vunpack.c.h.b16 %v941
        %v3612 = vunpack.c.l.b16 %v942
        %v3613 = vunpack.c.h.b16 %v942
        %v3614 = vunpack.c.l.b16 %v943
        %v3615 = vunpack.c.h.b16 %v943
        %v3616 = vunpack.c.l.b16 %v944
        %v3617 = vunpack.c.h.b16 %v944
        %v3618 = vunpack.c.l.b16 %v945
        %v3619 = vunpack.c.h.b16 %v945
        %v3620 = vunpack.c.l.b16 %v946
        %v3621 = vunpack.c.h.b16 %v946
        %v3622 = vunpack.c.l.b16 %v947
        %v3623 = vunpack.c.h.b16 %v947
        %v3624 = vunpack.c.l.b16 %v948
        %v3625 = vunpack.c.h.b16 %v948
        %v3626 = vunpack.c.l.b16 %v949
        %v3627 = vunpack.c.h.b16 %v949
        %v3628 = vunpack.c.l.b16 %v950
        %v3629 = vunpack.c.h.b16 %v950
        %v3630 = vunpack.c.l.b16 %v951
        %v3631 = vunpack.c.h.b16 %v951
        %v3632 = vunpack.c.l.b16 %v952
        %v3633 = vunpack.c.h.b16 %v952
        %v3634 = vunpack.c.l.b16 %v953
        %v3635 = vunpack.c.h.b16 %v953
        %v3636 = vunpack.c.l.b16 %v954
        %v3637 = vunpack.c.h.b16 %v954
        %v3638 = vunpack.c.l.b16 %v955
        %v3639 = vunpack.c.h.b16 %v955
        %v3640 = vunpack.c.l.b16 %v956
        %v3641 = vunpack.c.h.b16 %v956
        %v3642 = vunpack.c.l.b16 %v957
        %v3643 = vunpack.c.h.b16 %v957
        %v3644 = vunpack.c.l.b16 %v958
        %v3645 = vunpack.c.h.b16 %v958
        %v3646 = vunpack.c.l.b16 %v959
        %v3647 = vunpack.c.h.b16 %v959
        %v3648 = vunpack.c.l.b16 %v960
        %v3649 = vunpack.c.h.b16 %v960
        %v3650 = vunpack.c.l.b16 %v961
        %v3651 = vunpack.c.h.b16 %v961
        %v3652 = vunpack.c.l.b16 %v962
        %v3653 = vunpack.c.h.b16 %v962
        %v3654 = vunpack.c.l.b16 %v963
        %v3655 = vunpack.c.h.b16 %v963
        %v3656 = vunpack.c.l.b16 %v964
        %v3657 = vunpack.c.h.b16 %v964
        %v3658 = vunpack.c.l.b16 %v965
        %v3659 = vunpack.c.h.b16 %v965
        %v3660 = vunpack.c.l.b16 %v966
        %v3661 = vunpack.c.h.b16 %v966
        %v3662 = vunpack.c.l.b16 %v967
        %v3663 = vunpack.c.h.b16 %v967
        %v3664 = vunpack.c.l.b16 %v968
        %v3665 = vunpack.c.h.b16 %v968
        %v3666 = vunpack.c.l.b16 %v969
        %v3667 = vunpack.c.h.b16 %v969
        %v3668 = vunpack.c.l.b16 %v970
        %v3669 = vunpack.c.h.b16 %v970
        %v3670 = vunpack.c.l.b16 %v971
        %v3671 = vunpack.c.h.b16 %v971
        %v3672 = vunpack.c.l.b16 %v972
        %v3673 = vunpack.c.h.b16 %v972
        %v3674 = vunpack.c.l.b16 %v973
        %v3675 = vunpack.c.h.b16 %v973
        %v3676 = vunpack.c.l.b16 %v974
        %v3677 = vunpack.c.h.b16 %v974
        %v3678 = vunpack.c.l.b16 %v975
        %v3679 = vunpack.c.h.b16 %v975
        %v3680 = vunpack.c.l.b16 %v976
        %v3681 = vunpack.c.h.b16 %v976
        %v3682 = vunpack.c.l.b16 %v977
        %v3683 = vunpack.c.h.b16 %v977
        %v3684 = vunpack.c.l.b16 %v978
        %v3685 = vunpack.c.h.b16 %v978
        %v3686 = vunpack.c.l.b16 %v979
        %v3687 = vunpack.c.h.b16 %v979
        %v3688 = vunpack.c.l.b16 %v980
        %v3689 = vunpack.c.h.b16 %v980
        %v3690 = vunpack.c.l.b16 %v981
        %v3691 = vunpack.c.h.b16 %v981
        %v3692 = vunpack.c.l.b16 %v982
        %v3693 = vunpack.c.h.b16 %v982
        %v3694 = vunpack.c.l.b16 %v983
        %v3695 = vunpack.c.h.b16 %v983
        %v3696 = vunpack.c.l.b16 %v984
        %v3697 = vunpack.c.h.b16 %v984
        %v3698 = vunpack.c.l.b16 %v985
        %v3699 = vunpack.c.h.b16 %v985
        %v3700 = vunpack.c.l.b16 %v986
        %v3701 = vunpack.c.h.b16 %v986
        %v3702 = vunpack.c.l.b16 %v987
        %v3703 = vunpack.c.h.b16 %v987
        %v3704 = vunpack.c.l.b16 %v988
        %v3705 = vunpack.c.h.b16 %v988
        %v3706 = vunpack.c.l.b16 %v989
        %v3707 = vunpack.c.h.b16 %v989
        %v3708 = vunpack.c.l.b16 %v990
        %v3709 = vunpack.c.h.b16 %v990
        %v3710 = vunpack.c.l.b16 %v991
        %v3711 = vunpack.c.h.b16 %v991
        %v3712 = vunpack.c.l.b16 %v992
        %v3713 = vunpack.c.h.b16 %v992
        %v3714 = vunpack.c.l.b16 %v993
        %v3715 = vunpack.c.h.b16 %v993
        %v3716 = vunpack.c.l.b16 %v994
        %v3717 = vunpack.c.h.b16 %v994
        %v3718 = vunpack.c.l.b16 %v995
        %v3719 = vunpack.c.h.b16 %v995
        %v3720 = vunpack.c.l.b16 %v996
        %v3721 = vunpack.c.h.b16 %v996
        %v3722 = vunpack.c.l.b16 %v997
        %v3723 = vunpack.c.h.b16 %v997
        %v3724 = vunpack.c.l.b16 %v998
        %v3725 = vunpack.c.h.b16 %v998
        %v3726 = vunpack.c.l.b16 %v999
        %v3727 = vunpack.c.h.b16 %v999
        %v3728 = vunpack.c.l.b16 %v1000
        %v3729 = vunpack.c.h.b16 %v1000
        %v3730 = vunpack.c.l.b16 %v1001
        %v3731 = vunpack.c.h.b16 %v1001
        %v3732 = vunpack.c.l.b16 %v1002
        %v3733 = vunpack.c.h.b16 %v1002
        %v3734 = vunpack.c.l.b16 %v1003
        %v3735 = vunpack.c.h.b16 %v1003
        %v3736 = vunpack.c.l.b16 %v1004
        %v3737 = vunpack.c.h.b16 %v1004
        %v3738 = vunpack.c.l.b16 %v1005
        %v3739 = vunpack.c.h.b16 %v1005
        %v3740 = vunpack.c.l.b16 %v1006
        %v3741 = vunpack.c.h.b16 %v1006
        %v3742 = vunpack.c.l.b16 %v1007
        %v3743 = vunpack.c.h.b16 %v1007
        %v3744 = vunpack.c.l.b16 %v1008
        %v3745 = vunpack.c.h.b16 %v1008
        %v3746 = vunpack.c.l.b16 %v1009
        %v3747 = vunpack.c.h.b16 %v1009
        %v3748 = vunpack.c.l.b16 %v1010
        %v3749 = vunpack.c.h.b16 %v1010
        %v3750 = vunpack.c.l.b16 %v1011
        %v3751 = vunpack.c.h.b16 %v1011
        %v3752 = vunpack.c.l.b16 %v1012
        %v3753 = vunpack.c.h.b16 %v1012
        %v3754 = vunpack.c.l.b16 %v1013
        %v3755 = vunpack.c.h.b16 %v1013
        %v3756 = vunpack.c.l.b16 %v1014
        %v3757 = vunpack.c.h.b16 %v1014
        %v3758 = vunpack.c.l.b16 %v1015
        %v3759 = vunpack.c.h.b16 %v1015
        %v3760 = vunpack.c.l.b16 %v1016
        %v3761 = vunpack.c.h.b16 %v1016
        %v3762 = vunpack.c.l.b16 %v1017
        %v3763 = vunpack.c.h.b16 %v1017
        %v3764 = vunpack.c.l.b16 %v1018
        %v3765 = vunpack.c.h.b16 %v1018
        %v3766 = vunpack.c.l.b16 %v1019
        %v3767 = vunpack.c.h.b16 %v1019
        %v3768 = vunpack.c.l.b16 %v1020
        %v3769 = vunpack.c.h.b16 %v1020
        %v3770 = vunpack.c.l.b16 %v1021
        %v3771 = vunpack.c.h.b16 %v1021
        %v3772 = vunpack.c.l.b16 %v1022
        %v3773 = vunpack.c.h.b16 %v1022
        %v3774 = vunpack.c.l.b16 %v1023
        %v3775 = vunpack.c.h.b16 %v1023
        %v3776 = vunpack.c.l.b16 %v1024
        %v3777 = vunpack.c.h.b16 %v1024
        %v3778 = vunpack.c.l.b16 %v1025
        %v3779 = vunpack.c.h.b16 %v1025
        %v3780 = vunpack.c.l.b16 %v1026
        %v3781 = vunpack.c.h.b16 %v1026
        %v3782 = vunpack.c.l.b16 %v1027
        %v3783 = vunpack.c.h.b16 %v1027
        %v3784 = vunpack.c.l.b16 %v1028
        %v3785 = vunpack.c.h.b16 %v1028
        %v3786 = vunpack.c.l.b16 %v1029
        %v3787 = vunpack.c.h.b16 %v1029
        %v3788 = vunpack.c.l.b16 %v1030
        %v3789 = vunpack.c.h.b16 %v1030
        %v3790 = vunpack.c.l.b16 %v1031
        %v3791 = vunpack.c.h.b16 %v1031
        %v3792 = vunpack.c.l.b16 %v1032
        %v3793 = vunpack.c.h.b16 %v1032
        %v3794 = vunpack.c.l.b16 %v1033
        %v3795 = vunpack.c.h.b16 %v1033
        %v3796 = vunpack.c.l.b16 %v1034
        %v3797 = vunpack.c.h.b16 %v1034
        %v3798 = vunpack.c.l.b16 %v1035
        %v3799 = vunpack.c.h.b16 %v1035
        %v3800 = vunpack.c.l.b16 %v1036
        %v3801 = vunpack.c.h.b16 %v1036
        %v3802 = vunpack.c.l.b16 %v1037
        %v3803 = vunpack.c.h.b16 %v1037
        %v3804 = vunpack.c.l.b16 %v1038
        %v3805 = vunpack.c.h.b16 %v1038
        %v3806 = vunpack.c.l.b16 %v1039
        %v3807 = vunpack.c.h.b16 %v1039
        %v3808 = vunpack.c.l.b16 %v1040
        %v3809 = vunpack.c.h.b16 %v1040
        %v3810 = vunpack.c.l.b16 %v1041
        %v3811 = vunpack.c.h.b16 %v1041
        %v3812 = vunpack.c.l.b16 %v1042
        %v3813 = vunpack.c.h.b16 %v1042
        %v3814 = vunpack.c.l.b16 %v1043
        %v3815 = vunpack.c.h.b16 %v1043
        %v3816 = vunpack.c.l.b16 %v1044
        %v3817 = vunpack.c.h.b16 %v1044
        %v3818 = vunpack.c.l.b16 %v1045
        %v3819 = vunpack.c.h.b16 %v1045
        %v3820 = vunpack.c.l.b16 %v1046
        %v3821 = vunpack.c.h.b16 %v1046
        %v3822 = vunpack.c.l.b16 %v1047
        %v3823 = vunpack.c.h.b16 %v1047
        %v3824 = vunpack.c.l.b16 %v1048
        %v3825 = vunpack.c.h.b16 %v1048
        %v3826 = vunpack.c.l.b16 %v1049
        %v3827 = vunpack.c.h.b16 %v1049
        %v3828 = vunpack.c.l.b16 %v1050
        %v3829 = vunpack.c.h.b16 %v1050
        %v3830 = vunpack.c.l.b16 %v1051
        %v3831 = vunpack.c.h.b16 %v1051
        %v3832 = vunpack.c.l.b16 %v1052
        %v3833 = vunpack.c.h.b16 %v1052
        %v3834 = vunpack.c.l.b16 %v1053
        %v3835 = vunpack.c.h.b16 %v1053
        %v3836 = vunpack.c.l.b16 %v1054
        %v3837 = vunpack.c.h.b16 %v1054
        %v3838 = vunpack.c.l.b16 %v1055
        %v3839 = vunpack.c.h.b16 %v1055
        %v3840 = vunpack.c.l.b16 %v1056
        %v3841 = vunpack.c.h.b16 %v1056
        %v3842 = vunpack.c.l.b16 %v1057
        %v3843 = vunpack.c.h.b16 %v1057
        %v3844 = vunpack.c.l.b16 %v1058
        %v3845 = vunpack.c.h.b16 %v1058
        %v3846 = vunpack.c.l.b16 %v1059
        %v3847 = vunpack.c.h.b16 %v1059
        %v3848 = vunpack.c.l.b16 %v1060
        %v3849 = vunpack.c.h.b16 %v1060
        %v3850 = vunpack.c.l.b16 %v1061
        %v3851 = vunpack.c.h.b16 %v1061
        %v3852 = vunpack.c.l.b16 %v1062
        %v3853 = vunpack.c.h.b16 %v1062
        %v3854 = vunpack.c.l.b16 %v1063
        %v3855 = vunpack.c.h.b16 %v1063
        %v3856 = vunpack.c.l.b16 %v1064
        %v3857 = vunpack.c.h.b16 %v1064
        %v3858 = vunpack.c.l.b16 %v1065
        %v3859 = vunpack.c.h.b16 %v1065
        %v3860 = vunpack.c.l.b16 %v1066
        %v3861 = vunpack.c.h.b16 %v1066
        %v3862 = vunpack.c.l.b16 %v1067
        %v3863 = vunpack.c.h.b16 %v1067
        %v3864 = vunpack.c.l.b16 %v1068
        %v3865 = vunpack.c.h.b16 %v1068
        %v3866 = vunpack.c.l.b16 %v1069
        %v3867 = vunpack.c.h.b16 %v1069
        %v3868 = vunpack.c.l.b16 %v1070
        %v3869 = vunpack.c.h.b16 %v1070
        %v3870 = vunpack.c.l.b16 %v1071
        %v3871 = vunpack.c.h.b16 %v1071
        %v3872 = vunpack.c.l.b16 %v1072
        %v3873 = vunpack.c.h.b16 %v1072
        %v3874 = vunpack.c.l.b16 %v1073
        %v3875 = vunpack.c.h.b16 %v1073
        %v3876 = vunpack.c.l.b16 %v1074
        %v3877 = vunpack.c.h.b16 %v1074
        %v3878 = vunpack.c.l.b16 %v1075
        %v3879 = vunpack.c.h.b16 %v1075
        %v3880 = vunpack.c.l.b16 %v1076
        %v3881 = vunpack.c.h.b16 %v1076
        %v3882 = vunpack.c.l.b16 %v1077
        %v3883 = vunpack.c.h.b16 %v1077
        %v3884 = vunpack.c.l.b16 %v1078
        %v3885 = vunpack.c.h.b16 %v1078
        %v3886 = vunpack.c.l.b16 %v1079
        %v3887 = vunpack.c.h.b16 %v1079
        %v3888 = vunpack.c.l.b16 %v1080
        %v3889 = vunpack.c.h.b16 %v1080
        %v3890 = vunpack.c.l.b16 %v1081
        %v3891 = vunpack.c.h.b16 %v1081
        %v3892 = vunpack.c.l.b16 %v1082
        %v3893 = vunpack.c.h.b16 %v1082
        %v3894 = vunpack.c.l.b16 %v1083
        %v3895 = vunpack.c.h.b16 %v1083
        %v3896 = vunpack.c.l.b16 %v1084
        %v3897 = vunpack.c.h.b16 %v1084
        %v3898 = vunpack.c.l.b16 %v1085
        %v3899 = vunpack.c.h.b16 %v1085
        %v3900 = vunpack.c.l.b16 %v1086
        %v3901 = vunpack.c.h.b16 %v1086
        %v3902 = vunpack.c.l.b16 %v1087
        %v3903 = vunpack.c.h.b16 %v1087
        %v3904 = vunpack.c.l.b16 %v1088
        %v3905 = vunpack.c.h.b16 %v1088
        %v3906 = vunpack.c.l.b16 %v1089
        %v3907 = vunpack.c.h.b16 %v1089
        %v3908 = vunpack.c.l.b16 %v1090
        %v3909 = vunpack.c.h.b16 %v1090
        %v3910 = vunpack.c.l.b16 %v1091
        %v3911 = vunpack.c.h.b16 %v1091
        %v3912 = vunpack.c.l.b16 %v1092
        %v3913 = vunpack.c.h.b16 %v1092
        %v3914 = vunpack.c.l.b16 %v1093
        %v3915 = vunpack.c.h.b16 %v1093
        %v3916 = vunpack.c.l.b16 %v1094
        %v3917 = vunpack.c.h.b16 %v1094
        %v3918 = vunpack.c.l.b16 %v1095
        %v3919 = vunpack.c.h.b16 %v1095
        %v3920 = vunpack.c.l.b16 %v1096
        %v3921 = vunpack.c.h.b16 %v1096
        %v3922 = vunpack.c.l.b16 %v1097
        %v3923 = vunpack.c.h.b16 %v1097
        %v3924 = vunpack.c.l.b16 %v1098
        %v3925 = vunpack.c.h.b16 %v1098
        %v3926 = vunpack.c.l.b16 %v1099
        %v3927 = vunpack.c.h.b16 %v1099
        %v3928 = vunpack.c.l.b16 %v1100
        %v3929 = vunpack.c.h.b16 %v1100
        %v3930 = vunpack.c.l.b16 %v1101
        %v3931 = vunpack.c.h.b16 %v1101
        %v3932 = vunpack.c.l.b16 %v1102
        %v3933 = vunpack.c.h.b16 %v1102
        %v3934 = vunpack.c.l.b16 %v1103
        %v3935 = vunpack.c.h.b16 %v1103
        %v3936 = vunpack.c.l.b16 %v1104
        %v3937 = vunpack.c.h.b16 %v1104
        %v3938 = vunpack.c.l.b16 %v1105
        %v3939 = vunpack.c.h.b16 %v1105
        %v3940 = vunpack.c.l.b16 %v1106
        %v3941 = vunpack.c.h.b16 %v1106
        %v3942 = vunpack.c.l.b16 %v1107
        %v3943 = vunpack.c.h.b16 %v1107
        %v3944 = vunpack.c.l.b16 %v1108
        %v3945 = vunpack.c.h.b16 %v1108
        %v3946 = vunpack.c.l.b16 %v1109
        %v3947 = vunpack.c.h.b16 %v1109
        %v3948 = vunpack.c.l.b16 %v1110
        %v3949 = vunpack.c.h.b16 %v1110
        %v3950 = vunpack.c.l.b16 %v1111
        %v3951 = vunpack.c.h.b16 %v1111
        %v3952 = vunpack.c.l.b16 %v1112
        %v3953 = vunpack.c.h.b16 %v1112
        %v3954 = vunpack.c.l.b16 %v1113
        %v3955 = vunpack.c.h.b16 %v1113
        %v3956 = vunpack.c.l.b16 %v1114
        %v3957 = vunpack.c.h.b16 %v1114
        %v3958 = vunpack.c.l.b16 %v1115
        %v3959 = vunpack.c.h.b16 %v1115
        %v3960 = vunpack.c.l.b16 %v1116
        %v3961 = vunpack.c.h.b16 %v1116
        %v3962 = vunpack.c.l.b16 %v1117
        %v3963 = vunpack.c.h.b16 %v1117
        %v3964 = vunpack.c.l.b16 %v1118
        %v3965 = vunpack.c.h.b16 %v1118
        %v3966 = vunpack.c.l.b16 %v1119
        %v3967 = vunpack.c.h.b16 %v1119
        %v3968 = vunpack.c.l.b16 %v1120
        %v3969 = vunpack.c.h.b16 %v1120
        %v3970 = vunpack.c.l.b16 %v1121
        %v3971 = vunpack.c.h.b16 %v1121
        %v3972 = vunpack.c.l.b16 %v1122
        %v3973 = vunpack.c.h.b16 %v1122
        %v3974 = vunpack.c.l.b16 %v1123
        %v3975 = vunpack.c.h.b16 %v1123
        %v3976 = vunpack.c.l.b16 %v1124
        %v3977 = vunpack.c.h.b16 %v1124
        %v3978 = vunpack.c.l.b16 %v1125
        %v3979 = vunpack.c.h.b16 %v1125
        %v3980 = vunpack.c.l.b16 %v1126
        %v3981 = vunpack.c.h.b16 %v1126
        %v3982 = vunpack.c.l.b16 %v1127
        %v3983 = vunpack.c.h.b16 %v1127
        %v3984 = vunpack.c.l.b16 %v1128
        %v3985 = vunpack.c.h.b16 %v1128
        %v3986 = vunpack.c.l.b16 %v1129
        %v3987 = vunpack.c.h.b16 %v1129
        %v3988 = vunpack.c.l.b16 %v1130
        %v3989 = vunpack.c.h.b16 %v1130
        %v3990 = vunpack.c.l.b16 %v1131
        %v3991 = vunpack.c.h.b16 %v1131
        %v3992 = vunpack.c.l.b16 %v1132
        %v3993 = vunpack.c.h.b16 %v1132
        %v3994 = vunpack.c.l.b16 %v1133
        %v3995 = vunpack.c.h.b16 %v1133
        %v3996 = vunpack.c.l.b16 %v1134
        %v3997 = vunpack.c.h.b16 %v1134
        %v3998 = vunpack.c.l.b16 %v1135
        %v3999 = vunpack.c.h.b16 %v1135
        %v4000 = vunpack.c.l.b16 %v1136
        %v4001 = vunpack.c.h.b16 %v1136
        %v4002 = vunpack.c.l.b16 %v1137
        %v4003 = vunpack.c.h.b16 %v1137
        %v4004 = vunpack.c.l.b16 %v1138
        %v4005 = vunpack.c.h.b16 %v1138
        %v4006 = vunpack.c.l.b16 %v1139
        %v4007 = vunpack.c.h.b16 %v1139
        %v4008 = vunpack.c.l.b16 %v1140
        %v4009 = vunpack.c.h.b16 %v1140
        %v4010 = vunpack.c.l.b16 %v1141
        %v4011 = vunpack.c.h.b16 %v1141
        %v4012 = vunpack.c.l.b16 %v1142
        %v4013 = vunpack.c.h.b16 %v1142
        %v4014 = vunpack.c.l.b16 %v1143
        %v4015 = vunpack.c.h.b16 %v1143
        %v4016 = vunpack.c.l.b16 %v1144
        %v4017 = vunpack.c.h.b16 %v1144
        %v4018 = vunpack.c.l.b16 %v1145
        %v4019 = vunpack.c.h.b16 %v1145
        %v4020 = vunpack.c.l.b16 %v1146
        %v4021 = vunpack.c.h.b16 %v1146
        %v4022 = vunpack.c.l.b16 %v1147
        %v4023 = vunpack.c.h.b16 %v1147
        %v4024 = vunpack.c.l.b16 %v1148
        %v4025 = vunpack.c.h.b16 %v1148
        %v4026 = vunpack.c.l.b16 %v1149
        %v4027 = vunpack.c.h.b16 %v1149
        %v4028 = vunpack.c.l.b16 %v1150
        %v4029 = vunpack.c.h.b16 %v1150
        %v4030 = vunpack.c.l.b16 %v1151
        %v4031 = vunpack.c.h.b16 %v1151
        %v4032 = vunpack.c.l.b16 %v1152
        %v4033 = vunpack.c.h.b16 %v1152
        %v4034 = vunpack.c.l.b16 %v1153
        %v4035 = vunpack.c.h.b16 %v1153
        %v4036 = vunpack.c.l.b16 %v1154
        %v4037 = vunpack.c.h.b16 %v1154
        %v4038 = vunpack.c.l.b16 %v1155
        %v4039 = vunpack.c.h.b16 %v1155
        %v4040 = vunpack.c.l.b16 %v1156
        %v4041 = vunpack.c.h.b16 %v1156
        %v4042 = vunpack.c.l.b16 %v1157
        %v4043 = vunpack.c.h.b16 %v1157
        %v4044 = vunpack.c.l.b16 %v1158
        %v4045 = vunpack.c.h.b16 %v1158
        %v4046 = vunpack.c.l.b16 %v1159
        %v4047 = vunpack.c.h.b16 %v1159
        %v4048 = vunpack.c.l.b16 %v1160
        %v4049 = vunpack.c.h.b16 %v1160
        %v4050 = vunpack.c.l.b16 %v1161
        %v4051 = vunpack.c.h.b16 %v1161
        %v4052 = vunpack.c.l.b16 %v1162
        %v4053 = vunpack.c.h.b16 %v1162
        %v4054 = vunpack.c.l.b16 %v1163
        %v4055 = vunpack.c.h.b16 %v1163
        %v4056 = vunpack.c.l.b16 %v1164
        %v4057 = vunpack.c.h.b16 %v1164
        %v4058 = vunpack.c.l.b16 %v1165
        %v4059 = vunpack.c.h.b16 %v1165
        %v4060 = vunpack.c.l.b16 %v1166
        %v4061 = vunpack.c.h.b16 %v1166
        %v4062 = vunpack.c.l.b16 %v1167
        %v4063 = vunpack.c.h.b16 %v1167
        %v4064 = vunpack.c.l.b16 %v1168
        %v4065 = vunpack.c.h.b16 %v1168
        %v4066 = vunpack.c.l.b16 %v1169
        %v4067 = vunpack.c.h.b16 %v1169
        %v4068 = vunpack.c.l.b16 %v1170
        %v4069 = vunpack.c.h.b16 %v1170
        %v4070 = vunpack.c.l.b16 %v1171
        %v4071 = vunpack.c.h.b16 %v1171
        %v4072 = vunpack.c.l.b16 %v1172
        %v4073 = vunpack.c.h.b16 %v1172
        %v4074 = vunpack.c.l.b16 %v1173
        %v4075 = vunpack.c.h.b16 %v1173
        %v4076 = vunpack.c.l.b16 %v1174
        %v4077 = vunpack.c.h.b16 %v1174
        %v4078 = vunpack.c.l.b16 %v1175
        %v4079 = vunpack.c.h.b16 %v1175
        %v4080 = vunpack.c.l.b16 %v1176
        %v4081 = vunpack.c.h.b16 %v1176
        %v4082 = vunpack.c.l.b16 %v1177
        %v4083 = vunpack.c.h.b16 %v1177
        %v4084 = vunpack.c.l.b16 %v1178
        %v4085 = vunpack.c.h.b16 %v1178
        %v4086 = vunpack.c.l.b16 %v1179
        %v4087 = vunpack.c.h.b16 %v1179
        %v4088 = vunpack.c.l.b16 %v1180
        %v4089 = vunpack.c.h.b16 %v1180
        %v4090 = vunpack.c.l.b16 %v1181
        %v4091 = vunpack.c.h.b16 %v1181
        %v4092 = vunpack.c.l.b16 %v1182
        %v4093 = vunpack.c.h.b16 %v1182
        %v4094 = vunpack.c.l.b16 %v1183
        %v4095 = vunpack.c.h.b16 %v1183
        %v4096 = vunpack.c.l.b16 %v1184
        %v4097 = vunpack.c.h.b16 %v1184
        %v4098 = vunpack.c.l.b16 %v1185
        %v4099 = vunpack.c.h.b16 %v1185
        %v4100 = vunpack.c.l.b16 %v1186
        %v4101 = vunpack.c.h.b16 %v1186
        %v4102 = vunpack.c.l.b16 %v1187
        %v4103 = vunpack.c.h.b16 %v1187
        %v4104 = vunpack.c.l.b16 %v1188
        %v4105 = vunpack.c.h.b16 %v1188
        %v4106 = vunpack.c.l.b16 %v1189
        %v4107 = vunpack.c.h.b16 %v1189
        %v4108 = vunpack.c.l.b16 %v1190
        %v4109 = vunpack.c.h.b16 %v1190
        %v4110 = vunpack.c.l.b16 %v1191
        %v4111 = vunpack.c.h.b16 %v1191
        %v4112 = vunpack.c.l.b16 %v1192
        %v4113 = vunpack.c.h.b16 %v1192
        %v4114 = vunpack.c.l.b16 %v1193
        %v4115 = vunpack.c.h.b16 %v1193
        %v4116 = vunpack.c.l.b16 %v1194
        %v4117 = vunpack.c.h.b16 %v1194
        %v4118 = vunpack.c.l.b16 %v1195
        %v4119 = vunpack.c.h.b16 %v1195
        %v4120 = vunpack.c.l.b16 %v1196
        %v4121 = vunpack.c.h.b16 %v1196
        %v4122 = vunpack.c.l.b16 %v1197
        %v4123 = vunpack.c.h.b16 %v1197
        %v4124 = vpack.c.b16 %v2336, %v2332
        %v4125 = vpack.c.b16 %v2337, %v2333
        %v4126 = vpack.c.b16 %v2338, %v2334
        %v4127 = vpack.c.b16 %v2339, %v2335
        %v4128 = vpack.c.b16 %v2344, %v2340
        %v4129 = vpack.c.b16 %v2345, %v2341
        %v4130 = vpack.c.b16 %v2346, %v2342
        %v4131 = vpack.c.b16 %v2347, %v2343
        %v4132 = vpack.c.b16 %v2352, %v2348
        %v4133 = vpack.c.b16 %v2353, %v2349
        %v4134 = vpack.c.b16 %v2354, %v2350
        %v4135 = vpack.c.b16 %v2355, %v2351
        %v4136 = vpack.c.b16 %v2360, %v2356
        %v4137 = vpack.c.b16 %v2361, %v2357
        %v4138 = vpack.c.b16 %v2362, %v2358
        %v4139 = vpack.c.b16 %v2363, %v2359
        %v4140 = vpack.c.b16 %v2368, %v2364
        %v4141 = vpack.c.b16 %v2369, %v2365
        %v4142 = vpack.c.b16 %v2370, %v2366
        %v4143 = vpack.c.b16 %v2371, %v2367
        %v4144 = vpack.c.b16 %v2376, %v2372
        %v4145 = vpack.c.b16 %v2377, %v2373
        %v4146 = vpack.c.b16 %v2378, %v2374
        %v4147 = vpack.c.b16 %v2379, %v2375
        %v4148 = vpack.c.b16 %v2384, %v2380
        %v4149 = vpack.c.b16 %v2385, %v2381
        %v4150 = vpack.c.b16 %v2386, %v2382
        %v4151 = vpack.c.b16 %v2387, %v2383
        %v4152 = vpack.c.b16 %v2392, %v2388
        %v4153 = vpack.c.b16 %v2393, %v2389
        %v4154 = vpack.c.b16 %v2394, %v2390
        %v4155 = vpack.c.b16 %v2395, %v2391
        %v4156 = vpack.c.b16 %v2400, %v2396
        %v4157 = vpack.c.b16 %v2401, %v2397
        %v4158 = vpack.c.b16 %v2402, %v2398
        %v4159 = vpack.c.b16 %v2403, %v2399
        %v4160 = vpack.c.b16 %v2408, %v2404
        %v4161 = vpack.c.b16 %v2409, %v2405
        %v4162 = vpack.c.b16 %v2410, %v2406
        %v4163 = vpack.c.b16 %v2411, %v2407
        %v4164 = vpack.c.b16 %v2416, %v2412
        %v4165 = vpack.c.b16 %v2417, %v2413
        %v4166 = vpack.c.b16 %v2418, %v2414
        %v4167 = vpack.c.b16 %v2419, %v2415
        %v4168 = vpack.c.b16 %v2424, %v2420
        %v4169 = vpack.c.b16 %v2425, %v2421
        %v4170 = vpack.c.b16 %v2426, %v2422
        %v4171 = vpack.c.b16 %v2427, %v2423
        %v4172 = vpack.c.b16 %v2432, %v2428
        %v4173 = vpack.c.b16 %v2433, %v2429
        %v4174 = vpack.c.b16 %v2434, %v2430
        %v4175 = vpack.c.b16 %v2435, %v2431
        %v4176 = vpack.c.b16 %v2440, %v2436
        %v4177 = vpack.c.b16 %v2441, %v2437
        %v4178 = vpack.c.b16 %v2442, %v2438
        %v4179 = vpack.c.b16 %v2443, %v2439
        %v4180 = vpack.c.b16 %v2448, %v2444
        %v4181 = vpack.c.b16 %v2449, %v2445
        %v4182 = vpack.c.b16 %v2450, %v2446
        %v4183 = vpack.c.b16 %v2451, %v2447
        %v4184 = vpack.c.b16 %v2456, %v2452
        %v4185 = vpack.c.b16 %v2457, %v2453
        %v4186 = vpack.c.b16 %v2458, %v2454
        %v4187 = vpack.c.b16 %v2459, %v2455
        %v4188 = vpack.c.b16 %v2464, %v2460
        %v4189 = vpack.c.b16 %v2465, %v2461
        %v4190 = vpack.c.b16 %v2466, %v2462
        %v4191 = vpack.c.b16 %v2467, %v2463
        %v4192 = vpack.c.b16 %v2472, %v2468
        %v4193 = vpack.c.b16 %v2473, %v2469
        %v4194 = vpack.c.b16 %v2474, %v2470
        %v4195 = vpack.c.b16 %v2475, %v2471
        %v4196 = vpack.c.b16 %v2480, %v2476
        %v4197 = vpack.c.b16 %v2481, %v2477
        %v4198 = vpack.c.b16 %v2482, %v2478
        %v4199 = vpack.c.b16 %v2483, %v2479
        %v4200 = vpack.c.b16 %v2488, %v2484
        %v4201 = vpack.c.b16 %v2489, %v2485
        %v4202 = vpack.c.b16 %v2490, %v2486
        %v4203 = vpack.c.b16 %v2491, %v2487
        %v4204 = vpack.c.b16 %v2496, %v2492
        %v4205 = vpack.c.b16 %v2497, %v2493
        %v4206 = vpack.c.b16 %v2498, %v2494
        %v4207 = vpack.c.b16 %v2499, %v2495
        %v4208 = vpack.c.b16 %v2504, %v2500
        %v4209 = vpack.c.b16 %v2505, %v2501
        %v4210 = vpack.c.b16 %v2506, %v2502
        %v4211 = vpack.c.b16 %v2507, %v2503
        %v4212 = vpack.c.b16 %v2512, %v2508
        %v4213 = vpack.c.b16 %v2513, %v2509
        %v4214 = vpack.c.b16 %v2514, %v2510
        %v4215 = vpack.c.b16 %v2515, %v2511
        %v4216 = vpack.c.b16 %v2520, %v2516
        %v4217 = vpack.c.b16 %v2521, %v2517
        %v4218 = vpack.c.b16 %v2522, %v2518
        %v4219 = vpack.c.b16 %v2523, %v2519
        %v4220 = vpack.c.b16 %v2528, %v2524
        %v4221 = vpack.c.b16 %v2529, %v2525
        %v4222 = vpack.c.b16 %v2530, %v2526
        %v4223 = vpack.c.b16 %v2531, %v2527
        %v4224 = vpack.c.b16 %v2536, %v2532
        %v4225 = vpack.c.b16 %v2537, %v2533
        %v4226 = vpack.c.b16 %v2538, %v2534
        %v4227 = vpack.c.b16 %v2539, %v2535
        %v4228 = vpack.c.b16 %v2544, %v2540
        %v4229 = vpack.c.b16 %v2545, %v2541
        %v4230 = vpack.c.b16 %v2546, %v2542
        %v4231 = vpack.c.b16 %v2547, %v2543
        %v4232 = vpack.c.b16 %v2552, %v2548
        %v4233 = vpack.c.b16 %v2553, %v2549
        %v4234 = vpack.c.b16 %v2554, %v2550
        %v4235 = vpack.c.b16 %v2555, %v2551
        %v4236 = vpack.c.b16 %v2560, %v2556
        %v4237 = vpack.c.b16 %v2561, %v2557
        %v4238 = vpack.c.b16 %v2562, %v2558
        %v4239 = vpack.c.b16 %v2563, %v2559
        %v4240 = vpack.c.b16 %v2568, %v2564
        %v4241 = vpack.c.b16 %v2569, %v2565
        %v4242 = vpack.c.b16 %v2570, %v2566
        %v4243 = vpack.c.b16 %v2571, %v2567
        %v4244 = vpack.c.b16 %v2576, %v2572
        %v4245 = vpack.c.b16 %v2577, %v2573
        %v4246 = vpack.c.b16 %v2578, %v2574
        %v4247 = vpack.c.b16 %v2579, %v2575
        %v4248 = vpack.c.b16 %v2584, %v2580
        %v4249 = vpack.c.b16 %v2585, %v2581
        %v4250 = vpack.c.b16 %v2586, %v2582
        %v4251 = vpack.c.b16 %v2587, %v2583
        %v4252 = vpack.c.b16 %v2592, %v2588
        %v4253 = vpack.c.b16 %v2593, %v2589
        %v4254 = vpack.c.b16 %v2594, %v2590
        %v4255 = vpack.c.b16 %v2595, %v2591
        %v4256 = vpack.c.b16 %v2600, %v2596
        %v4257 = vpack.c.b16 %v2601, %v2597
        %v4258 = vpack.c.b16 %v2602, %v2598
        %v4259 = vpack.c.b16 %v2603, %v2599
        %v4260 = vpack.c.b16 %v2608, %v2604
        %v4261 = vpack.c.b16 %v2609, %v2605
        %v4262 = vpack.c.b16 %v2610, %v2606
        %v4263 = vpack.c.b16 %v2611, %v2607
        %v4264 = vpack.c.b16 %v2616, %v2612
        %v4265 = vpack.c.b16 %v2617, %v2613
        %v4266 = vpack.c.b16 %v2618, %v2614
        %v4267 = vpack.c.b16 %v2619, %v2615
        %v4268 = vpack.c.b16 %v2624, %v2620
        %v4269 = vpack.c.b16 %v2625, %v2621
        %v4270 = vpack.c.b16 %v2626, %v2622
        %v4271 = vpack.c.b16 %v2627, %v2623
        %v4272 = vpack.c.b16 %v2632, %v2628
        %v4273 = vpack.c.b16 %v2633, %v2629
        %v4274 = vpack.c.b16 %v2634, %v2630
        %v4275 = vpack.c.b16 %v2635, %v2631
        %v4276 = vpack.c.b16 %v2640, %v2636
        %v4277 = vpack.c.b16 %v2641, %v2637
        %v4278 = vpack.c.b16 %v2642, %v2638
        %v4279 = vpack.c.b16 %v2643, %v2639
        %v4280 = vpack.c.b16 %v2648, %v2644
        %v4281 = vpack.c.b16 %v2649, %v2645
        %v4282 = vpack.c.b16 %v2650, %v2646
        %v4283 = vpack.c.b16 %v2651, %v2647
        %v4284 = vpack.c.b16 %v2656, %v2652
        %v4285 = vpack.c.b16 %v2657, %v2653
        %v4286 = vpack.c.b16 %v2658, %v2654
        %v4287 = vpack.c.b16 %v2659, %v2655
        %v4288 = vpack.c.b16 %v2664, %v2660
        %v4289 = vpack.c.b16 %v2665, %v2661
        %v4290 = vpack.c.b16 %v2666, %v2662
        %v4291 = vpack.c.b16 %v2667, %v2663
        %v4292 = vpack.c.b16 %v2672, %v2668
        %v4293 = vpack.c.b16 %v2673, %v2669
        %v4294 = vpack.c.b16 %v2674, %v2670
        %v4295 = vpack.c.b16 %v2675, %v2671
        %v4296 = vpack.c.b16 %v2680, %v2676
        %v4297 = vpack.c.b16 %v2681, %v2677
        %v4298 = vpack.c.b16 %v2682, %v2678
        %v4299 = vpack.c.b16 %v2683, %v2679
        %v4300 = vpack.c.b16 %v2688, %v2684
        %v4301 = vpack.c.b16 %v2689, %v2685
        %v4302 = vpack.c.b16 %v2690, %v2686
        %v4303 = vpack.c.b16 %v2691, %v2687
        %v4304 = vpack.c.b16 %v2696, %v2692
        %v4305 = vpack.c.b16 %v2697, %v2693
        %v4306 = vpack.c.b16 %v2698, %v2694
        %v4307 = vpack.c.b16 %v2699, %v2695
        %v4308 = vpack.c.b16 %v2704, %v2700
        %v4309 = vpack.c.b16 %v2705, %v2701
        %v4310 = vpack.c.b16 %v2706, %v2702
        %v4311 = vpack.c.b16 %v2707, %v2703
        %v4312 = vpack.c.b16 %v2712, %v2708
        %v4313 = vpack.c.b16 %v2713, %v2709
        %v4314 = vpack.c.b16 %v2714, %v2710
        %v4315 = vpack.c.b16 %v2715, %v2711
        %v4316 = vpack.c.b16 %v2720, %v2716
        %v4317 = vpack.c.b16 %v2721, %v2717
        %v4318 = vpack.c.b16 %v2722, %v2718
        %v4319 = vpack.c.b16 %v2723, %v2719
        %v4320 = vpack.c.b16 %v2728, %v2724
        %v4321 = vpack.c.b16 %v2729, %v2725
        %v4322 = vpack.c.b16 %v2730, %v2726
        %v4323 = vpack.c.b16 %v2731, %v2727
        %v4324 = vpack.c.b16 %v2736, %v2732
        %v4325 = vpack.c.b16 %v2737, %v2733
        %v4326 = vpack.c.b16 %v2738, %v2734
        %v4327 = vpack.c.b16 %v2739, %v2735
        %v4328 = vpack.c.b16 %v2744, %v2740
        %v4329 = vpack.c.b16 %v2745, %v2741
        %v4330 = vpack.c.b16 %v2746, %v2742
        %v4331 = vpack.c.b16 %v2747, %v2743
        %v4332 = vpack.c.b16 %v2752, %v2748
        %v4333 = vpack.c.b16 %v2753, %v2749
        %v4334 = vpack.c.b16 %v2754, %v2750
        %v4335 = vpack.c.b16 %v2755, %v2751
        %v4336 = vpack.c.b16 %v2760, %v2756
        %v4337 = vpack.c.b16 %v2761, %v2757
        %v4338 = vpack.c.b16 %v2762, %v2758
        %v4339 = vpack.c.b16 %v2763, %v2759
        %v4340 = vpack.c.b16 %v2768, %v2764
        %v4341 = vpack.c.b16 %v2769, %v2765
        %v4342 = vpack.c.b16 %v2770, %v2766
        %v4343 = vpack.c.b16 %v2771, %v2767
        %v4344 = vpack.c.b16 %v2776, %v2772
        %v4345 = vpack.c.b16 %v2777, %v2773
        %v4346 = vpack.c.b16 %v2778, %v2774
        %v4347 = vpack.c.b16 %v2779, %v2775
        %v4348 = vpack.c.b16 %v2784, %v2780
        %v4349 = vpack.c.b16 %v2785, %v2781
        %v4350 = vpack.c.b16 %v2786, %v2782
        %v4351 = vpack.c.b16 %v2787, %v2783
        %v4352 = vpack.c.b16 %v2792, %v2788
        %v4353 = vpack.c.b16 %v2793, %v2789
        %v4354 = vpack.c.b16 %v2794, %v2790
        %v4355 = vpack.c.b16 %v2795, %v2791
        %v4356 = vpack.c.b16 %v2800, %v2796
        %v4357 = vpack.c.b16 %v2801, %v2797
        %v4358 = vpack.c.b16 %v2802, %v2798
        %v4359 = vpack.c.b16 %v2803, %v2799
        %v4360 = vpack.c.b16 %v2808, %v2804
        %v4361 = vpack.c.b16 %v2809, %v2805
        %v4362 = vpack.c.b16 %v2810, %v2806
        %v4363 = vpack.c.b16 %v2811, %v2807
        %v4364 = vpack.c.b16 %v2816, %v2812
        %v4365 = vpack.c.b16 %v2817, %v2813
        %v4366 = vpack.c.b16 %v2818, %v2814
        %v4367 = vpack.c.b16 %v2819, %v2815
        %v4368 = vpack.c.b16 %v2824, %v2820
        %v4369 = vpack.c.b16 %v2825, %v2821
        %v4370 = vpack.c.b16 %v2826, %v2822
        %v4371 = vpack.c.b16 %v2827, %v2823
        %v4372 = vpack.c.b16 %v2832, %v2828
        %v4373 = vpack.c.b16 %v2833, %v2829
        %v4374 = vpack.c.b16 %v2834, %v2830
        %v4375 = vpack.c.b16 %v2835, %v2831
        %v4376 = vpack.c.b16 %v2840, %v2836
        %v4377 = vpack.c.b16 %v2841, %v2837
        %v4378 = vpack.c.b16 %v2842, %v2838
        %v4379 = vpack.c.b16 %v2843, %v2839
        %v4380 = vpack.c.b16 %v2848, %v2844
        %v4381 = vpack.c.b16 %v2849, %v2845
        %v4382 = vpack.c.b16 %v2850, %v2846
        %v4383 = vpack.c.b16 %v2851, %v2847
        %v4384 = vpack.c.b16 %v2856, %v2852
        %v4385 = vpack.c.b16 %v2857, %v2853
        %v4386 = vpack.c.b16 %v2858, %v2854
        %v4387 = vpack.c.b16 %v2859, %v2855
        %v4388 = vpack.c.b16 %v2864, %v2860
        %v4389 = vpack.c.b16 %v2865, %v2861
        %v4390 = vpack.c.b16 %v2866, %v2862
        %v4391 = vpack.c.b16 %v2867, %v2863
        %v4392 = vpack.c.b16 %v2872, %v2868
        %v4393 = vpack.c.b16 %v2873, %v2869
        %v4394 = vpack.c.b16 %v2874, %v2870
        %v4395 = vpack.c.b16 %v2875, %v2871
        %v4396 = vpack.c.b16 %v2880, %v2876
        %v4397 = vpack.c.b16 %v2881, %v2877
        %v4398 = vpack.c.b16 %v2882, %v2878
        %v4399 = vpack.c.b16 %v2883, %v2879
        %v4400 = vpack.c.b16 %v2888, %v2884
        %v4401 = vpack.c.b16 %v2889, %v2885
        %v4402 = vpack.c.b16 %v2890, %v2886
        %v4403 = vpack.c.b16 %v2891, %v2887
        %v4404 = vpack.c.b16 %v2896, %v2892
        %v4405 = vpack.c.b16 %v2897, %v2893
        %v4406 = vpack.c.b16 %v2898, %v2894
        %v4407 = vpack.c.b16 %v2899, %v2895
        %v4408 = vpack.c.b16 %v2904, %v2900
        %v4409 = vpack.c.b16 %v2905, %v2901
        %v4410 = vpack.c.b16 %v2906, %v2902
        %v4411 = vpack.c.b16 %v2907, %v2903
        %v4412 = vpack.c.b16 %v2912, %v2908
        %v4413 = vpack.c.b16 %v2913, %v2909
        %v4414 = vpack.c.b16 %v2914, %v2910
        %v4415 = vpack.c.b16 %v2915, %v2911
        %v4416 = vpack.c.b16 %v2920, %v2916
        %v4417 = vpack.c.b16 %v2921, %v2917
        %v4418 = vpack.c.b16 %v2922, %v2918
        %v4419 = vpack.c.b16 %v2923, %v2919
        %v4420 = vpack.c.b16 %v2928, %v2924
        %v4421 = vpack.c.b16 %v2929, %v2925
        %v4422 = vpack.c.b16 %v2930, %v2926
        %v4423 = vpack.c.b16 %v2931, %v2927
        %v4424 = vpack.c.b16 %v2936, %v2932
        %v4425 = vpack.c.b16 %v2937, %v2933
        %v4426 = vpack.c.b16 %v2938, %v2934
        %v4427 = vpack.c.b16 %v2939, %v2935
        %v4428 = vpack.c.b16 %v2944, %v2940
        %v4429 = vpack.c.b16 %v2945, %v2941
        %v4430 = vpack.c.b16 %v2946, %v2942
        %v4431 = vpack.c.b16 %v2947, %v2943
        %v4432 = vpack.c.b16 %v2952, %v2948
        %v4433 = vpack.c.b16 %v2953, %v2949
        %v4434 = vpack.c.b16 %v2954, %v2950
        %v4435 = vpack.c.b16 %v2955, %v2951
        %v4436 = vpack.c.b16 %v2960, %v2956
        %v4437 = vpack.c.b16 %v2961, %v2957
        %v4438 = vpack.c.b16 %v2962, %v2958
        %v4439 = vpack.c.b16 %v2963, %v2959
        %v4440 = vpack.c.b16 %v2968, %v2964
        %v4441 = vpack.c.b16 %v2969, %v2965
        %v4442 = vpack.c.b16 %v2970, %v2966
        %v4443 = vpack.c.b16 %v2971, %v2967
        %v4444 = vpack.c.b16 %v2976, %v2972
        %v4445 = vpack.c.b16 %v2977, %v2973
        %v4446 = vpack.c.b16 %v2978, %v2974
        %v4447 = vpack.c.b16 %v2979, %v2975
        %v4448 = vpack.c.b16 %v2984, %v2980
        %v4449 = vpack.c.b16 %v2985, %v2981
        %v4450 = vpack.c.b16 %v2986, %v2982
        %v4451 = vpack.c.b16 %v2987, %v2983
        %v4452 = vpack.c.b16 %v2992, %v2988
        %v4453 = vpack.c.b16 %v2993, %v2989
        %v4454 = vpack.c.b16 %v2994, %v2990
        %v4455 = vpack.c.b16 %v2995, %v2991
        %v4456 = vpack.c.b16 %v3000, %v2996
        %v4457 = vpack.c.b16 %v3001, %v2997
        %v4458 = vpack.c.b16 %v3002, %v2998
        %v4459 = vpack.c.b16 %v3003, %v2999
        %v4460 = vpack.c.b16 %v3008, %v3004
        %v4461 = vpack.c.b16 %v3009, %v3005
        %v4462 = vpack.c.b16 %v3010, %v3006
        %v4463 = vpack.c.b16 %v3011, %v3007
        %v4464 = vpack.c.b16 %v3016, %v3012
        %v4465 = vpack.c.b16 %v3017, %v3013
        %v4466 = vpack.c.b16 %v3018, %v3014
        %v4467 = vpack.c.b16 %v3019, %v3015
        %v4468 = vpack.c.b16 %v3024, %v3020
        %v4469 = vpack.c.b16 %v3025, %v3021
        %v4470 = vpack.c.b16 %v3026, %v3022
        %v4471 = vpack.c.b16 %v3027, %v3023
        %v4472 = vpack.c.b16 %v3032, %v3028
        %v4473 = vpack.c.b16 %v3033, %v3029
        %v4474 = vpack.c.b16 %v3034, %v3030
        %v4475 = vpack.c.b16 %v3035, %v3031
        %v4476 = vpack.c.b16 %v3040, %v3036
        %v4477 = vpack.c.b16 %v3041, %v3037
        %v4478 = vpack.c.b16 %v3042, %v3038
        %v4479 = vpack.c.b16 %v3043, %v3039
        %v4480 = vpack.c.b16 %v3048, %v3044
        %v4481 = vpack.c.b16 %v3049, %v3045
        %v4482 = vpack.c.b16 %v3050, %v3046
        %v4483 = vpack.c.b16 %v3051, %v3047
        %v4484 = vpack.c.b16 %v3056, %v3052
        %v4485 = vpack.c.b16 %v3057, %v3053
        %v4486 = vpack.c.b16 %v3058, %v3054
        %v4487 = vpack.c.b16 %v3059, %v3055
        %v4488 = vpack.c.b16 %v3064, %v3060
        %v4489 = vpack.c.b16 %v3065, %v3061
        %v4490 = vpack.c.b16 %v3066, %v3062
        %v4491 = vpack.c.b16 %v3067, %v3063
        %v4492 = vpack.c.b16 %v3072, %v3068
        %v4493 = vpack.c.b16 %v3073, %v3069
        %v4494 = vpack.c.b16 %v3074, %v3070
        %v4495 = vpack.c.b16 %v3075, %v3071
        %v4496 = vpack.c.b16 %v3080, %v3076
        %v4497 = vpack.c.b16 %v3081, %v3077
        %v4498 = vpack.c.b16 %v3082, %v3078
        %v4499 = vpack.c.b16 %v3083, %v3079
        %v4500 = vpack.c.b16 %v3088, %v3084
        %v4501 = vpack.c.b16 %v3089, %v3085
        %v4502 = vpack.c.b16 %v3090, %v3086
        %v4503 = vpack.c.b16 %v3091, %v3087
        %v4504 = vpack.c.b16 %v3096, %v3092
        %v4505 = vpack.c.b16 %v3097, %v3093
        %v4506 = vpack.c.b16 %v3098, %v3094
        %v4507 = vpack.c.b16 %v3099, %v3095
        %v4508 = vpack.c.b16 %v3104, %v3100
        %v4509 = vpack.c.b16 %v3105, %v3101
        %v4510 = vpack.c.b16 %v3106, %v3102
        %v4511 = vpack.c.b16 %v3107, %v3103
        %v4512 = vpack.c.b16 %v3112, %v3108
        %v4513 = vpack.c.b16 %v3113, %v3109
        %v4514 = vpack.c.b16 %v3114, %v3110
        %v4515 = vpack.c.b16 %v3115, %v3111
        %v4516 = vpack.c.b16 %v3120, %v3116
        %v4517 = vpack.c.b16 %v3121, %v3117
        %v4518 = vpack.c.b16 %v3122, %v3118
        %v4519 = vpack.c.b16 %v3123, %v3119
        %v4520 = vpack.c.b16 %v3128, %v3124
        %v4521 = vpack.c.b16 %v3129, %v3125
        %v4522 = vpack.c.b16 %v3130, %v3126
        %v4523 = vpack.c.b16 %v3131, %v3127
        %v4524 = vpack.c.b16 %v3136, %v3132
        %v4525 = vpack.c.b16 %v3137, %v3133
        %v4526 = vpack.c.b16 %v3138, %v3134
        %v4527 = vpack.c.b16 %v3139, %v3135
        %v4528 = vpack.c.b16 %v3144, %v3140
        %v4529 = vpack.c.b16 %v3145, %v3141
        %v4530 = vpack.c.b16 %v3146, %v3142
        %v4531 = vpack.c.b16 %v3147, %v3143
        %v4532 = vpack.c.b16 %v3152, %v3148
        %v4533 = vpack.c.b16 %v3153, %v3149
        %v4534 = vpack.c.b16 %v3154, %v3150
        %v4535 = vpack.c.b16 %v3155, %v3151
        %v4536 = vpack.c.b16 %v3160, %v3156
        %v4537 = vpack.c.b16 %v3161, %v3157
        %v4538 = vpack.c.b16 %v3162, %v3158
        %v4539 = vpack.c.b16 %v3163, %v3159
        %v4540 = vpack.c.b16 %v3168, %v3164
        %v4541 = vpack.c.b16 %v3169, %v3165
        %v4542 = vpack.c.b16 %v3170, %v3166
        %v4543 = vpack.c.b16 %v3171, %v3167
        %v4544 = vpack.c.b16 %v3176, %v3172
        %v4545 = vpack.c.b16 %v3177, %v3173
        %v4546 = vpack.c.b16 %v3178, %v3174
        %v4547 = vpack.c.b16 %v3179, %v3175
        %v4548 = vpack.c.b16 %v3184, %v3180
        %v4549 = vpack.c.b16 %v3185, %v3181
        %v4550 = vpack.c.b16 %v3186, %v3182
        %v4551 = vpack.c.b16 %v3187, %v3183
        %v4552 = vpack.c.b16 %v3192, %v3188
        %v4553 = vpack.c.b16 %v3193, %v3189
        %v4554 = vpack.c.b16 %v3194, %v3190
        %v4555 = vpack.c.b16 %v3195, %v3191
        %v4556 = vpack.c.b16 %v3200, %v3196
        %v4557 = vpack.c.b16 %v3201, %v3197
        %v4558 = vpack.c.b16 %v3202, %v3198
        %v4559 = vpack.c.b16 %v3203, %v3199
        %v4560 = vpack.c.b16 %v3208, %v3204
        %v4561 = vpack.c.b16 %v3209, %v3205
        %v4562 = vpack.c.b16 %v3210, %v3206
        %v4563 = vpack.c.b16 %v3211, %v3207
        %v4564 = vpack.c.b16 %v3216, %v3212
        %v4565 = vpack.c.b16 %v3217, %v3213
        %v4566 = vpack.c.b16 %v3218, %v3214
        %v4567 = vpack.c.b16 %v3219, %v3215
        %v4568 = vpack.c.b16 %v3224, %v3220
        %v4569 = vpack.c.b16 %v3225, %v3221
        %v4570 = vpack.c.b16 %v3226, %v3222
        %v4571 = vpack.c.b16 %v3227, %v3223
        %v4572 = vpack.c.b16 %v3232, %v3228
        %v4573 = vpack.c.b16 %v3233, %v3229
        %v4574 = vpack.c.b16 %v3234, %v3230
        %v4575 = vpack.c.b16 %v3235, %v3231
        %v4576 = vpack.c.b16 %v3240, %v3236
        %v4577 = vpack.c.b16 %v3241, %v3237
        %v4578 = vpack.c.b16 %v3242, %v3238
        %v4579 = vpack.c.b16 %v3243, %v3239
        %v4580 = vpack.c.b16 %v3248, %v3244
        %v4581 = vpack.c.b16 %v3249, %v3245
        %v4582 = vpack.c.b16 %v3250, %v3246
        %v4583 = vpack.c.b16 %v3251, %v3247
        %v4584 = vpack.c.b16 %v3256, %v3252
        %v4585 = vpack.c.b16 %v3257, %v3253
        %v4586 = vpack.c.b16 %v3258, %v3254
        %v4587 = vpack.c.b16 %v3259, %v3255
        %v4588 = vpack.c.b16 %v3264, %v3260
        %v4589 = vpack.c.b16 %v3265, %v3261
        %v4590 = vpack.c.b16 %v3266, %v3262
        %v4591 = vpack.c.b16 %v3267, %v3263
        %v4592 = vpack.c.b16 %v3272, %v3268
        %v4593 = vpack.c.b16 %v3273, %v3269
        %v4594 = vpack.c.b16 %v3274, %v3270
        %v4595 = vpack.c.b16 %v3275, %v3271
        %v4596 = vpack.c.b16 %v3280, %v3276
        %v4597 = vpack.c.b16 %v3281, %v3277
        %v4598 = vpack.c.b16 %v3282, %v3278
        %v4599 = vpack.c.b16 %v3283, %v3279
        %v4600 = vpack.c.b16 %v3288, %v3284
        %v4601 = vpack.c.b16 %v3289, %v3285
        %v4602 = vpack.c.b16 %v3290, %v3286
        %v4603 = vpack.c.b16 %v3291, %v3287
        %v4604 = vpack.c.b16 %v3296, %v3292
        %v4605 = vpack.c.b16 %v3297, %v3293
        %v4606 = vpack.c.b16 %v3298, %v3294
        %v4607 = vpack.c.b16 %v3299, %v3295
        %v4608 = vpack.c.b16 %v3304, %v3300
        %v4609 = vpack.c.b16 %v3305, %v3301
        %v4610 = vpack.c.b16 %v3306, %v3302
        %v4611 = vpack.c.b16 %v3307, %v3303
        %v4612 = vpack.c.b16 %v3312, %v3308
        %v4613 = vpack.c.b16 %v3313, %v3309
        %v4614 = vpack.c.b16 %v3314, %v3310
        %v4615 = vpack.c.b16 %v3315, %v3311
        %v4616 = vpack.c.b16 %v3320, %v3316
        %v4617 = vpack.c.b16 %v3321, %v3317
        %v4618 = vpack.c.b16 %v3322, %v3318
        %v4619 = vpack.c.b16 %v3323, %v3319
        %v4620 = vpack.c.b16 %v3328, %v3324
        %v4621 = vpack.c.b16 %v3329, %v3325
        %v4622 = vpack.c.b16 %v3330, %v3326
        %v4623 = vpack.c.b16 %v3331, %v3327
        %v4624 = vpack.c.b16 %v3336, %v3332
        %v4625 = vpack.c.b16 %v3337, %v3333
        %v4626 = vpack.c.b16 %v3338, %v3334
        %v4627 = vpack.c.b16 %v3339, %v3335
        %v4628 = vpack.c.b16 %v3344, %v3340
        %v4629 = vpack.c.b16 %v3345, %v3341
        %v4630 = vpack.c.b16 %v3346, %v3342
        %v4631 = vpack.c.b16 %v3347, %v3343
        %v4632 = vpack.c.b16 %v3352, %v3348
        %v4633 = vpack.c.b16 %v3353, %v3349
        %v4634 = vpack.c.b16 %v3354, %v3350
        %v4635 = vpack.c.b16 %v3355, %v3351
        %v4636 = vpack.c.b16 %v3360, %v3356
        %v4637 = vpack.c.b16 %v3361, %v3357
        %v4638 = vpack.c.b16 %v3362, %v3358
        %v4639 = vpack.c.b16 %v3363, %v3359
        %v4640 = vpack.c.b16 %v3368, %v3364
        %v4641 = vpack.c.b16 %v3369, %v3365
        %v4642 = vpack.c.b16 %v3370, %v3366
        %v4643 = vpack.c.b16 %v3371, %v3367
        %v4644 = vpack.c.b16 %v3376, %v3372
        %v4645 = vpack.c.b16 %v3377, %v3373
        %v4646 = vpack.c.b16 %v3378, %v3374
        %v4647 = vpack.c.b16 %v3379, %v3375
        %v4648 = vpack.c.b16 %v3384, %v3380
        %v4649 = vpack.c.b16 %v3385, %v3381
        %v4650 = vpack.c.b16 %v3386, %v3382
        %v4651 = vpack.c.b16 %v3387, %v3383
        %v4652 = vpack.c.b16 %v3392, %v3388
        %v4653 = vpack.c.b16 %v3393, %v3389
        %v4654 = vpack.c.b16 %v3394, %v3390
        %v4655 = vpack.c.b16 %v3395, %v3391
        %v4656 = vpack.c.b16 %v3400, %v3396
        %v4657 = vpack.c.b16 %v3401, %v3397
        %v4658 = vpack.c.b16 %v3402, %v3398
        %v4659 = vpack.c.b16 %v3403, %v3399
        %v4660 = vpack.c.b16 %v3408, %v3404
        %v4661 = vpack.c.b16 %v3409, %v3405
        %v4662 = vpack.c.b16 %v3410, %v3406
        %v4663 = vpack.c.b16 %v3411, %v3407
        %v4664 = vpack.c.b16 %v3416, %v3412
        %v4665 = vpack.c.b16 %v3417, %v3413
        %v4666 = vpack.c.b16 %v3418, %v3414
        %v4667 = vpack.c.b16 %v3419, %v3415
        %v4668 = vpack.c.b16 %v3424, %v3420
        %v4669 = vpack.c.b16 %v3425, %v3421
        %v4670 = vpack.c.b16 %v3426, %v3422
        %v4671 = vpack.c.b16 %v3427, %v3423
        %v4672 = vpack.c.b16 %v3432, %v3428
        %v4673 = vpack.c.b16 %v3433, %v3429
        %v4674 = vpack.c.b16 %v3434, %v3430
        %v4675 = vpack.c.b16 %v3435, %v3431
        %v4676 = vpack.c.b16 %v3440, %v3436
        %v4677 = vpack.c.b16 %v3441, %v3437
        %v4678 = vpack.c.b16 %v3442, %v3438
        %v4679 = vpack.c.b16 %v3443, %v3439
        %v4680 = vpack.c.b16 %v3448, %v3444
        %v4681 = vpack.c.b16 %v3449, %v3445
        %v4682 = vpack.c.b16 %v3450, %v3446
        %v4683 = vpack.c.b16 %v3451, %v3447
        %v4684 = vpack.c.b16 %v3456, %v3452
        %v4685 = vpack.c.b16 %v3457, %v3453
        %v4686 = vpack.c.b16 %v3458, %v3454
        %v4687 = vpack.c.b16 %v3459, %v3455
        %v4688 = vpack.c.b16 %v3464, %v3460
        %v4689 = vpack.c.b16 %v3465, %v3461
        %v4690 = vpack.c.b16 %v3466, %v3462
        %v4691 = vpack.c.b16 %v3467, %v3463
        %v4692 = vpack.c.b16 %v3472, %v3468
        %v4693 = vpack.c.b16 %v3473, %v3469
        %v4694 = vpack.c.b16 %v3474, %v3470
        %v4695 = vpack.c.b16 %v3475, %v3471
        %v4696 = vpack.c.b16 %v3480, %v3476
        %v4697 = vpack.c.b16 %v3481, %v3477
        %v4698 = vpack.c.b16 %v3482, %v3478
        %v4699 = vpack.c.b16 %v3483, %v3479
        %v4700 = vpack.c.b16 %v3488, %v3484
        %v4701 = vpack.c.b16 %v3489, %v3485
        %v4702 = vpack.c.b16 %v3490, %v3486
        %v4703 = vpack.c.b16 %v3491, %v3487
        %v4704 = vpack.c.b16 %v3496, %v3492
        %v4705 = vpack.c.b16 %v3497, %v3493
        %v4706 = vpack.c.b16 %v3498, %v3494
        %v4707 = vpack.c.b16 %v3499, %v3495
        %v4708 = vpack.c.b16 %v3504, %v3500
        %v4709 = vpack.c.b16 %v3505, %v3501
        %v4710 = vpack.c.b16 %v3506, %v3502
        %v4711 = vpack.c.b16 %v3507, %v3503
        %v4712 = vpack.c.b16 %v3512, %v3508
        %v4713 = vpack.c.b16 %v3513, %v3509
        %v4714 = vpack.c.b16 %v3514, %v3510
        %v4715 = vpack.c.b16 %v3515, %v3511
        %v4716 = vpack.c.b16 %v3520, %v3516
        %v4717 = vpack.c.b16 %v3521, %v3517
        %v4718 = vpack.c.b16 %v3522, %v3518
        %v4719 = vpack.c.b16 %v3523, %v3519
        %v4720 = vpack.c.b16 %v3528, %v3524
        %v4721 = vpack.c.b16 %v3529, %v3525
        %v4722 = vpack.c.b16 %v3530, %v3526
        %v4723 = vpack.c.b16 %v3531, %v3527
        %v4724 = vpack.c.b16 %v3536, %v3532
        %v4725 = vpack.c.b16 %v3537, %v3533
        %v4726 = vpack.c.b16 %v3538, %v3534
        %v4727 = vpack.c.b16 %v3539, %v3535
        %v4728 = vpack.c.b16 %v3544, %v3540
        %v4729 = vpack.c.b16 %v3545, %v3541
        %v4730 = vpack.c.b16 %v3546, %v3542
        %v4731 = vpack.c.b16 %v3547, %v3543
        %v4732 = vpack.c.b16 %v3552, %v3548
        %v4733 = vpack.c.b16 %v3553, %v3549
        %v4734 = vpack.c.b16 %v3554, %v3550
        %v4735 = vpack.c.b16 %v3555, %v3551
        %v4736 = vpack.c.b16 %v3560, %v3556
        %v4737 = vpack.c.b16 %v3561, %v3557
        %v4738 = vpack.c.b16 %v3562, %v3558
        %v4739 = vpack.c.b16 %v3563, %v3559
        %v4740 = vpack.c.b16 %v3568, %v3564
        %v4741 = vpack.c.b16 %v3569, %v3565
        %v4742 = vpack.c.b16 %v3570, %v3566
        %v4743 = vpack.c.b16 %v3571, %v3567
        %v4744 = vpack.c.b16 %v3576, %v3572
        %v4745 = vpack.c.b16 %v3577, %v3573
        %v4746 = vpack.c.b16 %v3578, %v3574
        %v4747 = vpack.c.b16 %v3579, %v3575
        %v4748 = vpack.c.b16 %v3584, %v3580
        %v4749 = vpack.c.b16 %v3585, %v3581
        %v4750 = vpack.c.b16 %v3586, %v3582
        %v4751 = vpack.c.b16 %v3587, %v3583
        %v4752 = vpack.c.b16 %v3592, %v3588
        %v4753 = vpack.c.b16 %v3593, %v3589
        %v4754 = vpack.c.b16 %v3594, %v3590
        %v4755 = vpack.c.b16 %v3595, %v3591
        %v4756 = vpack.c.b16 %v3600, %v3596
        %v4757 = vpack.c.b16 %v3601, %v3597
        %v4758 = vpack.c.b16 %v3602, %v3598
        %v4759 = vpack.c.b16 %v3603, %v3599
        %v4760 = vpack.c.b16 %v3608, %v3604
        %v4761 = vpack.c.b16 %v3609, %v3605
        %v4762 = vpack.c.b16 %v3610, %v3606
        %v4763 = vpack.c.b16 %v3611, %v3607
        %v4764 = vpack.c.b16 %v3616, %v3612
        %v4765 = vpack.c.b16 %v3617, %v3613
        %v4766 = vpack.c.b16 %v3618, %v3614
        %v4767 = vpack.c.b16 %v3619, %v3615
        %v4768 = vpack.c.b16 %v3624, %v3620
        %v4769 = vpack.c.b16 %v3625, %v3621
        %v4770 = vpack.c.b16 %v3626, %v3622
        %v4771 = vpack.c.b16 %v3627, %v3623
        %v4772 = vpack.c.b16 %v3632, %v3628
        %v4773 = vpack.c.b16 %v3633, %v3629
        %v4774 = vpack.c.b16 %v3634, %v3630
        %v4775 = vpack.c.b16 %v3635, %v3631
        %v4776 = vpack.c.b16 %v3640, %v3636
        %v4777 = vpack.c.b16 %v3641, %v3637
        %v4778 = vpack.c.b16 %v3642, %v3638
        %v4779 = vpack.c.b16 %v3643, %v3639
        %v4780 = vpack.c.b16 %v3648, %v3644
        %v4781 = vpack.c.b16 %v3649, %v3645
        %v4782 = vpack.c.b16 %v3650, %v3646
        %v4783 = vpack.c.b16 %v3651, %v3647
        %v4784 = vpack.c.b16 %v3656, %v3652
        %v4785 = vpack.c.b16 %v3657, %v3653
        %v4786 = vpack.c.b16 %v3658, %v3654
        %v4787 = vpack.c.b16 %v3659, %v3655
        %v4788 = vpack.c.b16 %v3664, %v3660
        %v4789 = vpack.c.b16 %v3665, %v3661
        %v4790 = vpack.c.b16 %v3666, %v3662
        %v4791 = vpack.c.b16 %v3667, %v3663
        %v4792 = vpack.c.b16 %v3672, %v3668
        %v4793 = vpack.c.b16 %v3673, %v3669
        %v4794 = vpack.c.b16 %v3674, %v3670
        %v4795 = vpack.c.b16 %v3675, %v3671
        %v4796 = vpack.c.b16 %v3680, %v3676
        %v4797 = vpack.c.b16 %v3681, %v3677
        %v4798 = vpack.c.b16 %v3682, %v3678
        %v4799 = vpack.c.b16 %v3683, %v3679
        %v4800 = vpack.c.b16 %v3688, %v3684
        %v4801 = vpack.c.b16 %v3689, %v3685
        %v4802 = vpack.c.b16 %v3690, %v3686
        %v4803 = vpack.c.b16 %v3691, %v3687
        %v4804 = vpack.c.b16 %v3696, %v3692
        %v4805 = vpack.c.b16 %v3697, %v3693
        %v4806 = vpack.c.b16 %v3698, %v3694
        %v4807 = vpack.c.b16 %v3699, %v3695
        %v4808 = vpack.c.b16 %v3704, %v3700
        %v4809 = vpack.c.b16 %v3705, %v3701
        %v4810 = vpack.c.b16 %v3706, %v3702
        %v4811 = vpack.c.b16 %v3707, %v3703
        %v4812 = vpack.c.b16 %v3712, %v3708
        %v4813 = vpack.c.b16 %v3713, %v3709
        %v4814 = vpack.c.b16 %v3714, %v3710
        %v4815 = vpack.c.b16 %v3715, %v3711
        %v4816 = vpack.c.b16 %v3720, %v3716
        %v4817 = vpack.c.b16 %v3721, %v3717
        %v4818 = vpack.c.b16 %v3722, %v3718
        %v4819 = vpack.c.b16 %v3723, %v3719
        %v4820 = vpack.c.b16 %v3728, %v3724
        %v4821 = vpack.c.b16 %v3729, %v3725
        %v4822 = vpack.c.b16 %v3730, %v3726
        %v4823 = vpack.c.b16 %v3731, %v3727
        %v4824 = vpack.c.b16 %v3736, %v3732
        %v4825 = vpack.c.b16 %v3737, %v3733
        %v4826 = vpack.c.b16 %v3738, %v3734
        %v4827 = vpack.c.b16 %v3739, %v3735
        %v4828 = vpack.c.b16 %v3744, %v3740
        %v4829 = vpack.c.b16 %v3745, %v3741
        %v4830 = vpack.c.b16 %v3746, %v3742
        %v4831 = vpack.c.b16 %v3747, %v3743
        %v4832 = vpack.c.b16 %v3752, %v3748
        %v4833 = vpack.c.b16 %v3753, %v3749
        %v4834 = vpack.c.b16 %v3754, %v3750
        %v4835 = vpack.c.b16 %v3755, %v3751
        %v4836 = vpack.c.b16 %v3760, %v3756
        %v4837 = vpack.c.b16 %v3761, %v3757
        %v4838 = vpack.c.b16 %v3762, %v3758
        %v4839 = vpack.c.b16 %v3763, %v3759
        %v4840 = vpack.c.b16 %v3768, %v3764
        %v4841 = vpack.c.b16 %v3769, %v3765
        %v4842 = vpack.c.b16 %v3770, %v3766
        %v4843 = vpack.c.b16 %v3771, %v3767
        %v4844 = vpack.c.b16 %v3776, %v3772
        %v4845 = vpack.c.b16 %v3777, %v3773
        %v4846 = vpack.c.b16 %v3778, %v3774
        %v4847 = vpack.c.b16 %v3779, %v3775
        %v4848 = vpack.c.b16 %v3784, %v3780
        %v4849 = vpack.c.b16 %v3785, %v3781
        %v4850 = vpack.c.b16 %v3786, %v3782
        %v4851 = vpack.c.b16 %v3787, %v3783
        %v4852 = vpack.c.b16 %v3792, %v3788
        %v4853 = vpack.c.b16 %v3793, %v3789
        %v4854 = vpack.c.b16 %v3794, %v3790
        %v4855 = vpack.c.b16 %v3795, %v3791
        %v4856 = vpack.c.b16 %v3800, %v3796
        %v4857 = vpack.c.b16 %v3801, %v3797
        %v4858 = vpack.c.b16 %v3802, %v3798
        %v4859 = vpack.c.b16 %v3803, %v3799
        %v4860 = vpack.c.b16 %v3808, %v3804
        %v4861 = vpack.c.b16 %v3809, %v3805
        %v4862 = vpack.c.b16 %v3810, %v3806
        %v4863 = vpack.c.b16 %v3811, %v3807
        %v4864 = vpack.c.b16 %v3816, %v3812
        %v4865 = vpack.c.b16 %v3817, %v3813
        %v4866 = vpack.c.b16 %v3818, %v3814
        %v4867 = vpack.c.b16 %v3819, %v3815
        %v4868 = vpack.c.b16 %v3824, %v3820
        %v4869 = vpack.c.b16 %v3825, %v3821
        %v4870 = vpack.c.b16 %v3826, %v3822
        %v4871 = vpack.c.b16 %v3827, %v3823
        %v4872 = vpack.c.b16 %v3832, %v3828
        %v4873 = vpack.c.b16 %v3833, %v3829
        %v4874 = vpack.c.b16 %v3834, %v3830
        %v4875 = vpack.c.b16 %v3835, %v3831
        %v4876 = vpack.c.b16 %v3840, %v3836
        %v4877 = vpack.c.b16 %v3841, %v3837
        %v4878 = vpack.c.b16 %v3842, %v3838
        %v4879 = vpack.c.b16 %v3843, %v3839
        %v4880 = vpack.c.b16 %v3848, %v3844
        %v4881 = vpack.c.b16 %v3849, %v3845
        %v4882 = vpack.c.b16 %v3850, %v3846
        %v4883 = vpack.c.b16 %v3851, %v3847
        %v4884 = vpack.c.b16 %v3856, %v3852
        %v4885 = vpack.c.b16 %v3857, %v3853
        %v4886 = vpack.c.b16 %v3858, %v3854
        %v4887 = vpack.c.b16 %v3859, %v3855
        %v4888 = vpack.c.b16 %v3864, %v3860
        %v4889 = vpack.c.b16 %v3865, %v3861
        %v4890 = vpack.c.b16 %v3866, %v3862
        %v4891 = vpack.c.b16 %v3867, %v3863
        %v4892 = vpack.c.b16 %v3872, %v3868
        %v4893 = vpack.c.b16 %v3873, %v3869
        %v4894 = vpack.c.b16 %v3874, %v3870
        %v4895 = vpack.c.b16 %v3875, %v3871
        %v4896 = vpack.c.b16 %v3880, %v3876
        %v4897 = vpack.c.b16 %v3881, %v3877
        %v4898 = vpack.c.b16 %v3882, %v3878
        %v4899 = vpack.c.b16 %v3883, %v3879
        %v4900 = vpack.c.b16 %v3888, %v3884
        %v4901 = vpack.c.b16 %v3889, %v3885
        %v4902 = vpack.c.b16 %v3890, %v3886
        %v4903 = vpack.c.b16 %v3891, %v3887
        %v4904 = vpack.c.b16 %v3896, %v3892
        %v4905 = vpack.c.b16 %v3897, %v3893
        %v4906 = vpack.c.b16 %v3898, %v3894
        %v4907 = vpack.c.b16 %v3899, %v3895
        %v4908 = vpack.c.b16 %v3904, %v3900
        %v4909 = vpack.c.b16 %v3905, %v3901
        %v4910 = vpack.c.b16 %v3906, %v3902
        %v4911 = vpack.c.b16 %v3907, %v3903
        %v4912 = vpack.c.b16 %v3912, %v3908
        %v4913 = vpack.c.b16 %v3913, %v3909
        %v4914 = vpack.c.b16 %v3914, %v3910
        %v4915 = vpack.c.b16 %v3915, %v3911
        %v4916 = vpack.c.b16 %v3920, %v3916
        %v4917 = vpack.c.b16 %v3921, %v3917
        %v4918 = vpack.c.b16 %v3922, %v3918
        %v4919 = vpack.c.b16 %v3923, %v3919
        %v4920 = vpack.c.b16 %v3928, %v3924
        %v4921 = vpack.c.b16 %v3929, %v3925
        %v4922 = vpack.c.b16 %v3930, %v3926
        %v4923 = vpack.c.b16 %v3931, %v3927
        %v4924 = vpack.c.b16 %v3936, %v3932
        %v4925 = vpack.c.b16 %v3937, %v3933
        %v4926 = vpack.c.b16 %v3938, %v3934
        %v4927 = vpack.c.b16 %v3939, %v3935
        %v4928 = vpack.c.b16 %v3944, %v3940
        %v4929 = vpack.c.b16 %v3945, %v3941
        %v4930 = vpack.c.b16 %v3946, %v3942
        %v4931 = vpack.c.b16 %v3947, %v3943
        %v4932 = vpack.c.b16 %v3952, %v3948
        %v4933 = vpack.c.b16 %v3953, %v3949
        %v4934 = vpack.c.b16 %v3954, %v3950
        %v4935 = vpack.c.b16 %v3955, %v3951
        %v4936 = vpack.c.b16 %v3960, %v3956
        %v4937 = vpack.c.b16 %v3961, %v3957
        %v4938 = vpack.c.b16 %v3962, %v3958
        %v4939 = vpack.c.b16 %v3963, %v3959
        %v4940 = vpack.c.b16 %v3968, %v3964
        %v4941 = vpack.c.b16 %v3969, %v3965
        %v4942 = vpack.c.b16 %v3970, %v3966
        %v4943 = vpack.c.b16 %v3971, %v3967
        %v4944 = vpack.c.b16 %v3976, %v3972
        %v4945 = vpack.c.b16 %v3977, %v3973
        %v4946 = vpack.c.b16 %v3978, %v3974
        %v4947 = vpack.c.b16 %v3979, %v3975
        %v4948 = vpack.c.b16 %v3984, %v3980
        %v4949 = vpack.c.b16 %v3985, %v3981
        %v4950 = vpack.c.b16 %v3986, %v3982
        %v4951 = vpack.c.b16 %v3987, %v3983
        %v4952 = vpack.c.b16 %v3992, %v3988
        %v4953 = vpack.c.b16 %v3993, %v3989
        %v4954 = vpack.c.b16 %v3994, %v3990
        %v4955 = vpack.c.b16 %v3995, %v3991
        %v4956 = vpack.c.b16 %v4000, %v3996
        %v4957 = vpack.c.b16 %v4001, %v3997
        %v4958 = vpack.c.b16 %v4002, %v3998
        %v4959 = vpack.c.b16 %v4003, %v3999
        %v4960 = vpack.c.b16 %v4008, %v4004
        %v4961 = vpack.c.b16 %v4009, %v4005
        %v4962 = vpack.c.b16 %v4010, %v4006
        %v4963 = vpack.c.b16 %v4011, %v4007
        %v4964 = vpack.c.b16 %v4016, %v4012
        %v4965 = vpack.c.b16 %v4017, %v4013
        %v4966 = vpack.c.b16 %v4018, %v4014
        %v4967 = vpack.c.b16 %v4019, %v4015
        %v4968 = vpack.c.b16 %v4024, %v4020
        %v4969 = vpack.c.b16 %v4025, %v4021
        %v4970 = vpack.c.b16 %v4026, %v4022
        %v4971 = vpack.c.b16 %v4027, %v4023
        %v4972 = vpack.c.b16 %v4032, %v4028
        %v4973 = vpack.c.b16 %v4033, %v4029
        %v4974 = vpack.c.b16 %v4034, %v4030
        %v4975 = vpack.c.b16 %v4035, %v4031
        %v4976 = vpack.c.b16 %v4040, %v4036
        %v4977 = vpack.c.b16 %v4041, %v4037
        %v4978 = vpack.c.b16 %v4042, %v4038
        %v4979 = vpack.c.b16 %v4043, %v4039
        %v4980 = vpack.c.b16 %v4048, %v4044
        %v4981 = vpack.c.b16 %v4049, %v4045
        %v4982 = vpack.c.b16 %v4050, %v4046
        %v4983 = vpack.c.b16 %v4051, %v4047
        %v4984 = vpack.c.b16 %v4056, %v4052
        %v4985 = vpack.c.b16 %v4057, %v4053
        %v4986 = vpack.c.b16 %v4058, %v4054
        %v4987 = vpack.c.b16 %v4059, %v4055
        %v4988 = vpack.c.b16 %v4064, %v4060
        %v4989 = vpack.c.b16 %v4065, %v4061
        %v4990 = vpack.c.b16 %v4066, %v4062
        %v4991 = vpack.c.b16 %v4067, %v4063
        %v4992 = vpack.c.b16 %v4072, %v4068
        %v4993 = vpack.c.b16 %v4073, %v4069
        %v4994 = vpack.c.b16 %v4074, %v4070
        %v4995 = vpack.c.b16 %v4075, %v4071
        %v4996 = vpack.c.b16 %v4080, %v4076
        %v4997 = vpack.c.b16 %v4081, %v4077
        %v4998 = vpack.c.b16 %v4082, %v4078
        %v4999 = vpack.c.b16 %v4083, %v4079
        %v5000 = vpack.c.b16 %v4088, %v4084
        %v5001 = vpack.c.b16 %v4089, %v4085
        %v5002 = vpack.c.b16 %v4090, %v4086
        %v5003 = vpack.c.b16 %v4091, %v4087
        %v5004 = vpack.c.b16 %v4096, %v4092
        %v5005 = vpack.c.b16 %v4097, %v4093
        %v5006 = vpack.c.b16 %v4098, %v4094
        %v5007 = vpack.c.b16 %v4099, %v4095
        %v5008 = vpack.c.b16 %v4104, %v4100
        %v5009 = vpack.c.b16 %v4105, %v4101
        %v5010 = vpack.c.b16 %v4106, %v4102
        %v5011 = vpack.c.b16 %v4107, %v4103
        %v5012 = vpack.c.b16 %v4112, %v4108
        %v5013 = vpack.c.b16 %v4113, %v4109
        %v5014 = vpack.c.b16 %v4114, %v4110
        %v5015 = vpack.c.b16 %v4115, %v4111
        %v5016 = vpack.c.b16 %v4120, %v4116
        %v5017 = vpack.c.b16 %v4121, %v4117
        %v5018 = vpack.c.b16 %v4122, %v4118
        %v5019 = vpack.c.b16 %v4123, %v4119
        %5916 = vmatprep.subr.bf16.mxu0 %v4153
        %5917 = vmatpush1.bf16.msra.mxu0 %v4152
        %5918 = vmatprep.subr.bf16.mxu0 %v4149
        %5919 = vmatpush1.bf16.msra.mxu0 %v4148
        %5920 = vmatprep.subr.bf16.mxu0 %v4145
        %5921 = vmatpush1.bf16.msra.mxu0 %v4144
        %5922 = vmatprep.subr.bf16.mxu0 %v4141
        %5923 = vmatpush1.bf16.msra.mxu0 %v4140
        %5924 = vmatprep.subr.bf16.mxu0 %v4137
        %5925 = vmatpush1.bf16.msra.mxu0 %v4136
        %5926 = vmatprep.subr.bf16.mxu0 %v4133
        %5927 = vmatpush1.bf16.msra.mxu0 %v4132
        %5928 = vmatprep.subr.bf16.mxu0 %v4129
        %5929 = vmatpush1.bf16.msra.mxu0 %v4128
        %5930 = vmatprep.subr.bf16.mxu0 %v4125
        %5931 = vmatpush1.bf16.msra.mxu0 %v4124
        %5932 = vmatprep.subr.bf16.mxu0 %v4185
        %5933 = vmatpush2.bf16.msra.mxu0 %v4184
        %5934 = vmatprep.subr.bf16.mxu0 %v4181
        %5935 = vmatpush2.bf16.msra.mxu0 %v4180
        %5936 = vmatprep.subr.bf16.mxu0 %v4177
        %5937 = vmatpush2.bf16.msra.mxu0 %v4176
        %5938 = vmatprep.subr.bf16.mxu0 %v4173
        %5939 = vmatpush2.bf16.msra.mxu0 %v4172
        %5940 = vmatprep.subr.bf16.mxu0 %v4169
        %5941 = vmatpush2.bf16.msra.mxu0 %v4168
        %5942 = vmatprep.subr.bf16.mxu0 %v4165
        %5943 = vmatpush2.bf16.msra.mxu0 %v4164
        %5944 = vmatprep.subr.bf16.mxu0 %v4161
        %5945 = vmatpush2.bf16.msra.mxu0 %v4160
        %5946 = vmatprep.subr.bf16.mxu0 %v4157
        %5947 = vmatpush2.bf16.msra.mxu0 %v4156
        %5948 = vmatprep.mubr.bf16.mxu0 %v1325
        %5949 = vmatmul.mubr.bf16.gmra.mxu0 %v1324
        %v5950 = vpop.f32.mrf.mxu0
        %v5951 = vadd.f32 0.0, %v5950
        %v5952 = vpop.f32.mrf.mxu0
        %v5953 = vadd.f32 0.0, %v5952
        %v5954 = vpop.f32.mrf.mxu0
        %v5955 = vadd.f32 0.0, %v5954
        %v5956 = vpop.f32.mrf.mxu0
        %v5957 = vadd.f32 0.0, %v5956
        %5958 = vmatprep.mubr.bf16.mxu0 %v1353
        %5959 = vmatmul.mubr.bf16.gmra.mxu0 %v1352
        %v5960 = vpop.f32.mrf.mxu0
        %v5961 = vadd.f32 0.0, %v5960
        %v5962 = vpop.f32.mrf.mxu0
        %v5963 = vadd.f32 0.0, %v5962
        %v5964 = vpop.f32.mrf.mxu0
        %v5965 = vpop.f32.mrf.mxu0
        %5966 = vdwg.mxu0
        %5967 = vmatprep.subr.bf16.mxu0 %v4217
        %5968 = vmatpush1.bf16.msra.mxu0 %v4216
        %5969 = vmatprep.subr.bf16.mxu0 %v4213
        %5970 = vmatpush1.bf16.msra.mxu0 %v4212
        %5971 = vmatprep.subr.bf16.mxu0 %v4209
        %5972 = vmatpush1.bf16.msra.mxu0 %v4208
        %5973 = vmatprep.subr.bf16.mxu0 %v4205
        %5974 = vmatpush1.bf16.msra.mxu0 %v4204
        %5975 = vmatprep.subr.bf16.mxu0 %v4201
        %5976 = vmatpush1.bf16.msra.mxu0 %v4200
        %5977 = vmatprep.subr.bf16.mxu0 %v4197
        %5978 = vmatpush1.bf16.msra.mxu0 %v4196
        %5979 = vmatprep.subr.bf16.mxu0 %v4193
        %5980 = vmatpush1.bf16.msra.mxu0 %v4192
        %5981 = vmatprep.subr.bf16.mxu0 %v4189
        %5982 = vmatpush1.bf16.msra.mxu0 %v4188
        %5983 = vmatprep.subr.bf16.mxu0 %v4249
        %5984 = vmatpush2.bf16.msra.mxu0 %v4248
        %5985 = vmatprep.subr.bf16.mxu0 %v4245
        %5986 = vmatpush2.bf16.msra.mxu0 %v4244
        %5987 = vmatprep.subr.bf16.mxu0 %v4241
        %5988 = vmatpush2.bf16.msra.mxu0 %v4240
        %5989 = vmatprep.subr.bf16.mxu0 %v4237
        %5990 = vmatpush2.bf16.msra.mxu0 %v4236
        %5991 = vmatprep.subr.bf16.mxu0 %v4233
        %5992 = vmatpush2.bf16.msra.mxu0 %v4232
        %5993 = vmatprep.subr.bf16.mxu0 %v4229
        %5994 = vmatpush2.bf16.msra.mxu0 %v4228
        %5995 = vmatprep.subr.bf16.mxu0 %v4225
        %5996 = vmatpush2.bf16.msra.mxu0 %v4224
        %5997 = vmatprep.subr.bf16.mxu0 %v4221
        %5998 = vmatpush2.bf16.msra.mxu0 %v4220
        %5999 = vmatprep.mubr.bf16.mxu0 %v1327
        %6000 = vmatmul.mubr.bf16.gmra.mxu0 %v1326
        %v6001 = vpop.f32.mrf.mxu0
        %v6002 = vadd.f32 %v5951, %v6001
        %v6003 = vpop.f32.mrf.mxu0
        %v6004 = vadd.f32 %v5953, %v6003
        %v6005 = vpop.f32.mrf.mxu0
        %v6006 = vadd.f32 %v5955, %v6005
        %v6007 = vpop.f32.mrf.mxu0
        %v6008 = vadd.f32 %v5957, %v6007
        %6009 = vmatprep.mubr.bf16.mxu0 %v1355
        %6010 = vmatmul.mubr.bf16.gmra.mxu0 %v1354
        %v6011 = vpop.f32.mrf.mxu0
        %v6012 = vadd.f32 %v5961, %v6011
        %v6013 = vpop.f32.mrf.mxu0
        %v6014 = vadd.f32 %v5963, %v6013
        %v6015 = vpop.f32.mrf.mxu0
        %v6016 = vpop.f32.mrf.mxu0
        %6017 = vdwg.mxu0
        %6018 = vmatprep.subr.bf16.mxu0 %v4281
        %6019 = vmatpush1.bf16.msra.mxu0 %v4280
        %6020 = vmatprep.subr.bf16.mxu0 %v4277
        %6021 = vmatpush1.bf16.msra.mxu0 %v4276
        %6022 = vmatprep.subr.bf16.mxu0 %v4273
        %6023 = vmatpush1.bf16.msra.mxu0 %v4272
        %6024 = vmatprep.subr.bf16.mxu0 %v4269
        %6025 = vmatpush1.bf16.msra.mxu0 %v4268
        %6026 = vmatprep.subr.bf16.mxu0 %v4265
        %6027 = vmatpush1.bf16.msra.mxu0 %v4264
        %6028 = vmatprep.subr.bf16.mxu0 %v4261
        %6029 = vmatpush1.bf16.msra.mxu0 %v4260
        %6030 = vmatprep.subr.bf16.mxu0 %v4257
        %6031 = vmatpush1.bf16.msra.mxu0 %v4256
        %6032 = vmatprep.subr.bf16.mxu0 %v4253
        %6033 = vmatpush1.bf16.msra.mxu0 %v4252
        %6034 = vmatprep.subr.bf16.mxu0 %v4313
        %6035 = vmatpush2.bf16.msra.mxu0 %v4312
        %6036 = vmatprep.subr.bf16.mxu0 %v4309
        %6037 = vmatpush2.bf16.msra.mxu0 %v4308
        %6038 = vmatprep.subr.bf16.mxu0 %v4305
        %6039 = vmatpush2.bf16.msra.mxu0 %v4304
        %6040 = vmatprep.subr.bf16.mxu0 %v4301
        %6041 = vmatpush2.bf16.msra.mxu0 %v4300
        %6042 = vmatprep.subr.bf16.mxu0 %v4297
        %6043 = vmatpush2.bf16.msra.mxu0 %v4296
        %6044 = vmatprep.subr.bf16.mxu0 %v4293
        %6045 = vmatpush2.bf16.msra.mxu0 %v4292
        %6046 = vmatprep.subr.bf16.mxu0 %v4289
        %6047 = vmatpush2.bf16.msra.mxu0 %v4288
        %6048 = vmatprep.subr.bf16.mxu0 %v4285
        %6049 = vmatpush2.bf16.msra.mxu0 %v4284
        %6050 = vmatprep.mubr.bf16.mxu0 %v1329
        %6051 = vmatmul.mubr.bf16.gmra.mxu0 %v1328
        %v6052 = vpop.f32.mrf.mxu0
        %v6053 = vadd.f32 %v6002, %v6052
        %v6054 = vpop.f32.mrf.mxu0
        %v6055 = vadd.f32 %v6004, %v6054
        %v6056 = vpop.f32.mrf.mxu0
        %v6057 = vadd.f32 %v6006, %v6056
        %v6058 = vpop.f32.mrf.mxu0
        %v6059 = vadd.f32 %v6008, %v6058
        %6060 = vmatprep.mubr.bf16.mxu0 %v1357
        %6061 = vmatmul.mubr.bf16.gmra.mxu0 %v1356
        %v6062 = vpop.f32.mrf.mxu0
        %v6063 = vadd.f32 %v6012, %v6062
        %v6064 = vpop.f32.mrf.mxu0
        %v6065 = vadd.f32 %v6014, %v6064
        %v6066 = vpop.f32.mrf.mxu0
        %v6067 = vpop.f32.mrf.mxu0
        %6068 = vdwg.mxu0
        %6069 = vmatprep.subr.bf16.mxu0 %v4345
        %6070 = vmatpush1.bf16.msra.mxu0 %v4344
        %6071 = vmatprep.subr.bf16.mxu0 %v4341
        %6072 = vmatpush1.bf16.msra.mxu0 %v4340
        %6073 = vmatprep.subr.bf16.mxu0 %v4337
        %6074 = vmatpush1.bf16.msra.mxu0 %v4336
        %6075 = vmatprep.subr.bf16.mxu0 %v4333
        %6076 = vmatpush1.bf16.msra.mxu0 %v4332
        %6077 = vmatprep.subr.bf16.mxu0 %v4329
        %6078 = vmatpush1.bf16.msra.mxu0 %v4328
        %6079 = vmatprep.subr.bf16.mxu0 %v4325
        %6080 = vmatpush1.bf16.msra.mxu0 %v4324
        %6081 = vmatprep.subr.bf16.mxu0 %v4321
        %6082 = vmatpush1.bf16.msra.mxu0 %v4320
        %6083 = vmatprep.subr.bf16.mxu0 %v4317
        %6084 = vmatpush1.bf16.msra.mxu0 %v4316
        %6085 = vmatprep.subr.bf16.mxu0 %v4377
        %6086 = vmatpush2.bf16.msra.mxu0 %v4376
        %6087 = vmatprep.subr.bf16.mxu0 %v4373
        %6088 = vmatpush2.bf16.msra.mxu0 %v4372
        %6089 = vmatprep.subr.bf16.mxu0 %v4369
        %6090 = vmatpush2.bf16.msra.mxu0 %v4368
        %6091 = vmatprep.subr.bf16.mxu0 %v4365
        %6092 = vmatpush2.bf16.msra.mxu0 %v4364
        %6093 = vmatprep.subr.bf16.mxu0 %v4361
        %6094 = vmatpush2.bf16.msra.mxu0 %v4360
        %6095 = vmatprep.subr.bf16.mxu0 %v4357
        %6096 = vmatpush2.bf16.msra.mxu0 %v4356
        %6097 = vmatprep.subr.bf16.mxu0 %v4353
        %6098 = vmatpush2.bf16.msra.mxu0 %v4352
        %6099 = vmatprep.subr.bf16.mxu0 %v4349
        %6100 = vmatpush2.bf16.msra.mxu0 %v4348
        %6101 = vmatprep.mubr.bf16.mxu0 %v1331
        %6102 = vmatmul.mubr.bf16.gmra.mxu0 %v1330
        %v6103 = vpop.f32.mrf.mxu0
        %v6104 = vadd.f32 %v6053, %v6103
        %v6105 = vpop.f32.mrf.mxu0
        %v6106 = vadd.f32 %v6055, %v6105
        %v6107 = vpop.f32.mrf.mxu0
        %v6108 = vadd.f32 %v6057, %v6107
        %v6109 = vpop.f32.mrf.mxu0
        %v6110 = vadd.f32 %v6059, %v6109
        %6111 = vmatprep.mubr.bf16.mxu0 %v1359
        %6112 = vmatmul.mubr.bf16.gmra.mxu0 %v1358
        %v6113 = vpop.f32.mrf.mxu0
        %v6114 = vadd.f32 %v6063, %v6113
        %v6115 = vpop.f32.mrf.mxu0
        %v6116 = vadd.f32 %v6065, %v6115
        %v6117 = vpop.f32.mrf.mxu0
        %v6118 = vpop.f32.mrf.mxu0
        %6119 = vdwg.mxu0
        %6120 = vmatprep.subr.bf16.mxu0 %v4409
        %6121 = vmatpush1.bf16.msra.mxu0 %v4408
        %6122 = vmatprep.subr.bf16.mxu0 %v4405
        %6123 = vmatpush1.bf16.msra.mxu0 %v4404
        %6124 = vmatprep.subr.bf16.mxu0 %v4401
        %6125 = vmatpush1.bf16.msra.mxu0 %v4400
        %6126 = vmatprep.subr.bf16.mxu0 %v4397
        %6127 = vmatpush1.bf16.msra.mxu0 %v4396
        %6128 = vmatprep.subr.bf16.mxu0 %v4393
        %6129 = vmatpush1.bf16.msra.mxu0 %v4392
        %6130 = vmatprep.subr.bf16.mxu0 %v4389
        %6131 = vmatpush1.bf16.msra.mxu0 %v4388
        %6132 = vmatprep.subr.bf16.mxu0 %v4385
        %6133 = vmatpush1.bf16.msra.mxu0 %v4384
        %6134 = vmatprep.subr.bf16.mxu0 %v4381
        %6135 = vmatpush1.bf16.msra.mxu0 %v4380
        %6136 = vmatprep.subr.bf16.mxu0 %v4441
        %6137 = vmatpush2.bf16.msra.mxu0 %v4440
        %6138 = vmatprep.subr.bf16.mxu0 %v4437
        %6139 = vmatpush2.bf16.msra.mxu0 %v4436
        %6140 = vmatprep.subr.bf16.mxu0 %v4433
        %6141 = vmatpush2.bf16.msra.mxu0 %v4432
        %6142 = vmatprep.subr.bf16.mxu0 %v4429
        %6143 = vmatpush2.bf16.msra.mxu0 %v4428
        %6144 = vmatprep.subr.bf16.mxu0 %v4425
        %6145 = vmatpush2.bf16.msra.mxu0 %v4424
        %6146 = vmatprep.subr.bf16.mxu0 %v4421
        %6147 = vmatpush2.bf16.msra.mxu0 %v4420
        %6148 = vmatprep.subr.bf16.mxu0 %v4417
        %6149 = vmatpush2.bf16.msra.mxu0 %v4416
        %6150 = vmatprep.subr.bf16.mxu0 %v4413
        %6151 = vmatpush2.bf16.msra.mxu0 %v4412
        %6152 = vmatprep.mubr.bf16.mxu0 %v1333
        %6153 = vmatmul.mubr.bf16.gmra.mxu0 %v1332
        %v6154 = vpop.f32.mrf.mxu0
        %v6155 = vadd.f32 %v6104, %v6154
        %v6156 = vpop.f32.mrf.mxu0
        %v6157 = vadd.f32 %v6106, %v6156
        %v6158 = vpop.f32.mrf.mxu0
        %v6159 = vadd.f32 %v6108, %v6158
        %v6160 = vpop.f32.mrf.mxu0
        %v6161 = vadd.f32 %v6110, %v6160
        %6162 = vmatprep.mubr.bf16.mxu0 %v1361
        %6163 = vmatmul.mubr.bf16.gmra.mxu0 %v1360
        %v6164 = vpop.f32.mrf.mxu0
        %v6165 = vadd.f32 %v6114, %v6164
        %v6166 = vpop.f32.mrf.mxu0
        %v6167 = vadd.f32 %v6116, %v6166
        %v6168 = vpop.f32.mrf.mxu0
        %v6169 = vpop.f32.mrf.mxu0
        %6170 = vdwg.mxu0
        %6171 = vmatprep.subr.bf16.mxu0 %v4473
        %6172 = vmatpush1.bf16.msra.mxu0 %v4472
        %6173 = vmatprep.subr.bf16.mxu0 %v4469
        %6174 = vmatpush1.bf16.msra.mxu0 %v4468
        %6175 = vmatprep.subr.bf16.mxu0 %v4465
        %6176 = vmatpush1.bf16.msra.mxu0 %v4464
        %6177 = vmatprep.subr.bf16.mxu0 %v4461
        %6178 = vmatpush1.bf16.msra.mxu0 %v4460
        %6179 = vmatprep.subr.bf16.mxu0 %v4457
        %6180 = vmatpush1.bf16.msra.mxu0 %v4456
        %6181 = vmatprep.subr.bf16.mxu0 %v4453
        %6182 = vmatpush1.bf16.msra.mxu0 %v4452
        %6183 = vmatprep.subr.bf16.mxu0 %v4449
        %6184 = vmatpush1.bf16.msra.mxu0 %v4448
        %6185 = vmatprep.subr.bf16.mxu0 %v4445
        %6186 = vmatpush1.bf16.msra.mxu0 %v4444
        %6187 = vmatprep.subr.bf16.mxu0 %v4505
        %6188 = vmatpush2.bf16.msra.mxu0 %v4504
        %6189 = vmatprep.subr.bf16.mxu0 %v4501
        %6190 = vmatpush2.bf16.msra.mxu0 %v4500
        %6191 = vmatprep.subr.bf16.mxu0 %v4497
        %6192 = vmatpush2.bf16.msra.mxu0 %v4496
        %6193 = vmatprep.subr.bf16.mxu0 %v4493
        %6194 = vmatpush2.bf16.msra.mxu0 %v4492
        %6195 = vmatprep.subr.bf16.mxu0 %v4489
        %6196 = vmatpush2.bf16.msra.mxu0 %v4488
        %6197 = vmatprep.subr.bf16.mxu0 %v4485
        %6198 = vmatpush2.bf16.msra.mxu0 %v4484
        %6199 = vmatprep.subr.bf16.mxu0 %v4481
        %6200 = vmatpush2.bf16.msra.mxu0 %v4480
        %6201 = vmatprep.subr.bf16.mxu0 %v4477
        %6202 = vmatpush2.bf16.msra.mxu0 %v4476
        %6203 = vmatprep.mubr.bf16.mxu0 %v1335
        %6204 = vmatmul.mubr.bf16.gmra.mxu0 %v1334
        %v6205 = vpop.f32.mrf.mxu0
        %v6206 = vadd.f32 %v6155, %v6205
        %v6207 = vpop.f32.mrf.mxu0
        %v6208 = vadd.f32 %v6157, %v6207
        %v6209 = vpop.f32.mrf.mxu0
        %v6210 = vadd.f32 %v6159, %v6209
        %v6211 = vpop.f32.mrf.mxu0
        %v6212 = vadd.f32 %v6161, %v6211
        %6213 = vmatprep.mubr.bf16.mxu0 %v1363
        %6214 = vmatmul.mubr.bf16.gmra.mxu0 %v1362
        %v6215 = vpop.f32.mrf.mxu0
        %v6216 = vadd.f32 %v6165, %v6215
        %v6217 = vpop.f32.mrf.mxu0
        %v6218 = vadd.f32 %v6167, %v6217
        %v6219 = vpop.f32.mrf.mxu0
        %v6220 = vpop.f32.mrf.mxu0
        %6221 = vdwg.mxu0
        %6222 = vmatprep.subr.bf16.mxu0 %v4537
        %6223 = vmatpush1.bf16.msra.mxu0 %v4536
        %6224 = vmatprep.subr.bf16.mxu0 %v4533
        %6225 = vmatpush1.bf16.msra.mxu0 %v4532
        %6226 = vmatprep.subr.bf16.mxu0 %v4529
        %6227 = vmatpush1.bf16.msra.mxu0 %v4528
        %6228 = vmatprep.subr.bf16.mxu0 %v4525
        %6229 = vmatpush1.bf16.msra.mxu0 %v4524
        %6230 = vmatprep.subr.bf16.mxu0 %v4521
        %6231 = vmatpush1.bf16.msra.mxu0 %v4520
        %6232 = vmatprep.subr.bf16.mxu0 %v4517
        %6233 = vmatpush1.bf16.msra.mxu0 %v4516
        %6234 = vmatprep.subr.bf16.mxu0 %v4513
        %6235 = vmatpush1.bf16.msra.mxu0 %v4512
        %6236 = vmatprep.subr.bf16.mxu0 %v4509
        %6237 = vmatpush1.bf16.msra.mxu0 %v4508
        %6238 = vmatprep.subr.bf16.mxu0 %v4569
        %6239 = vmatpush2.bf16.msra.mxu0 %v4568
        %6240 = vmatprep.subr.bf16.mxu0 %v4565
        %6241 = vmatpush2.bf16.msra.mxu0 %v4564
        %6242 = vmatprep.subr.bf16.mxu0 %v4561
        %6243 = vmatpush2.bf16.msra.mxu0 %v4560
        %6244 = vmatprep.subr.bf16.mxu0 %v4557
        %6245 = vmatpush2.bf16.msra.mxu0 %v4556
        %6246 = vmatprep.subr.bf16.mxu0 %v4553
        %6247 = vmatpush2.bf16.msra.mxu0 %v4552
        %6248 = vmatprep.subr.bf16.mxu0 %v4549
        %6249 = vmatpush2.bf16.msra.mxu0 %v4548
        %6250 = vmatprep.subr.bf16.mxu0 %v4545
        %6251 = vmatpush2.bf16.msra.mxu0 %v4544
        %6252 = vmatprep.subr.bf16.mxu0 %v4541
        %6253 = vmatpush2.bf16.msra.mxu0 %v4540
        %6254 = vmatprep.mubr.bf16.mxu0 %v1337
        %6255 = vmatmul.mubr.bf16.gmra.mxu0 %v1336
        %v6256 = vpop.f32.mrf.mxu0
        %v6257 = vadd.f32 %v6206, %v6256
        %v6258 = vpop.f32.mrf.mxu0
        %v6259 = vadd.f32 %v6208, %v6258
        %v6260 = vpop.f32.mrf.mxu0
        %v6261 = vadd.f32 %v6210, %v6260
        %v6262 = vpop.f32.mrf.mxu0
        %v6263 = vadd.f32 %v6212, %v6262
        %6264 = vmatprep.mubr.bf16.mxu0 %v1365
        %6265 = vmatmul.mubr.bf16.gmra.mxu0 %v1364
        %v6266 = vpop.f32.mrf.mxu0
        %v6267 = vadd.f32 %v6216, %v6266
        %v6268 = vpop.f32.mrf.mxu0
        %v6269 = vadd.f32 %v6218, %v6268
        %v6270 = vpop.f32.mrf.mxu0
        %v6271 = vpop.f32.mrf.mxu0
        %6272 = vdwg.mxu0
        %6273 = vmatprep.subr.bf16.mxu0 %v4601
        %6274 = vmatpush1.bf16.msra.mxu0 %v4600
        %6275 = vmatprep.subr.bf16.mxu0 %v4597
        %6276 = vmatpush1.bf16.msra.mxu0 %v4596
        %6277 = vmatprep.subr.bf16.mxu0 %v4593
        %6278 = vmatpush1.bf16.msra.mxu0 %v4592
        %6279 = vmatprep.subr.bf16.mxu0 %v4589
        %6280 = vmatpush1.bf16.msra.mxu0 %v4588
        %6281 = vmatprep.subr.bf16.mxu0 %v4585
        %6282 = vmatpush1.bf16.msra.mxu0 %v4584
        %6283 = vmatprep.subr.bf16.mxu0 %v4581
        %6284 = vmatpush1.bf16.msra.mxu0 %v4580
        %6285 = vmatprep.subr.bf16.mxu0 %v4577
        %6286 = vmatpush1.bf16.msra.mxu0 %v4576
        %6287 = vmatprep.subr.bf16.mxu0 %v4573
        %6288 = vmatpush1.bf16.msra.mxu0 %v4572
        %6289 = vmatprep.subr.bf16.mxu0 %v4633
        %6290 = vmatpush2.bf16.msra.mxu0 %v4632
        %6291 = vmatprep.subr.bf16.mxu0 %v4629
        %6292 = vmatpush2.bf16.msra.mxu0 %v4628
        %6293 = vmatprep.subr.bf16.mxu0 %v4625
        %6294 = vmatpush2.bf16.msra.mxu0 %v4624
        %6295 = vmatprep.subr.bf16.mxu0 %v4621
        %6296 = vmatpush2.bf16.msra.mxu0 %v4620
        %6297 = vmatprep.subr.bf16.mxu0 %v4617
        %6298 = vmatpush2.bf16.msra.mxu0 %v4616
        %6299 = vmatprep.subr.bf16.mxu0 %v4613
        %6300 = vmatpush2.bf16.msra.mxu0 %v4612
        %6301 = vmatprep.subr.bf16.mxu0 %v4609
        %6302 = vmatpush2.bf16.msra.mxu0 %v4608
        %6303 = vmatprep.subr.bf16.mxu0 %v4605
        %6304 = vmatpush2.bf16.msra.mxu0 %v4604
        %6305 = vmatprep.mubr.bf16.mxu0 %v1339
        %6306 = vmatmul.mubr.bf16.gmra.mxu0 %v1338
        %v6307 = vpop.f32.mrf.mxu0
        %v6308 = vadd.f32 %v6257, %v6307
        %v6309 = vpop.f32.mrf.mxu0
        %v6310 = vadd.f32 %v6259, %v6309
        %v6311 = vpop.f32.mrf.mxu0
        %v6312 = vadd.f32 %v6261, %v6311
        %v6313 = vpop.f32.mrf.mxu0
        %v6314 = vadd.f32 %v6263, %v6313
        %6315 = vmatprep.mubr.bf16.mxu0 %v1367
        %6316 = vmatmul.mubr.bf16.gmra.mxu0 %v1366
        %v6317 = vpop.f32.mrf.mxu0
        %v6318 = vadd.f32 %v6267, %v6317
        %v6319 = vpop.f32.mrf.mxu0
        %v6320 = vadd.f32 %v6269, %v6319
        %v6321 = vpop.f32.mrf.mxu0
        %v6322 = vpop.f32.mrf.mxu0
        %6323 = vdwg.mxu0
        %6324 = vmatprep.subr.bf16.mxu0 %v4665
        %6325 = vmatpush1.bf16.msra.mxu0 %v4664
        %6326 = vmatprep.subr.bf16.mxu0 %v4661
        %6327 = vmatpush1.bf16.msra.mxu0 %v4660
        %6328 = vmatprep.subr.bf16.mxu0 %v4657
        %6329 = vmatpush1.bf16.msra.mxu0 %v4656
        %6330 = vmatprep.subr.bf16.mxu0 %v4653
        %6331 = vmatpush1.bf16.msra.mxu0 %v4652
        %6332 = vmatprep.subr.bf16.mxu0 %v4649
        %6333 = vmatpush1.bf16.msra.mxu0 %v4648
        %6334 = vmatprep.subr.bf16.mxu0 %v4645
        %6335 = vmatpush1.bf16.msra.mxu0 %v4644
        %6336 = vmatprep.subr.bf16.mxu0 %v4641
        %6337 = vmatpush1.bf16.msra.mxu0 %v4640
        %6338 = vmatprep.subr.bf16.mxu0 %v4637
        %6339 = vmatpush1.bf16.msra.mxu0 %v4636
        %6340 = vmatprep.subr.bf16.mxu0 %v4697
        %6341 = vmatpush2.bf16.msra.mxu0 %v4696
        %6342 = vmatprep.subr.bf16.mxu0 %v4693
        %6343 = vmatpush2.bf16.msra.mxu0 %v4692
        %6344 = vmatprep.subr.bf16.mxu0 %v4689
        %6345 = vmatpush2.bf16.msra.mxu0 %v4688
        %6346 = vmatprep.subr.bf16.mxu0 %v4685
        %6347 = vmatpush2.bf16.msra.mxu0 %v4684
        %6348 = vmatprep.subr.bf16.mxu0 %v4681
        %6349 = vmatpush2.bf16.msra.mxu0 %v4680
        %6350 = vmatprep.subr.bf16.mxu0 %v4677
        %6351 = vmatpush2.bf16.msra.mxu0 %v4676
        %6352 = vmatprep.subr.bf16.mxu0 %v4673
        %6353 = vmatpush2.bf16.msra.mxu0 %v4672
        %6354 = vmatprep.subr.bf16.mxu0 %v4669
        %6355 = vmatpush2.bf16.msra.mxu0 %v4668
        %6356 = vmatprep.mubr.bf16.mxu0 %v1341
        %6357 = vmatmul.mubr.bf16.gmra.mxu0 %v1340
        %v6358 = vpop.f32.mrf.mxu0
        %v6359 = vadd.f32 %v6308, %v6358
        %v6360 = vpop.f32.mrf.mxu0
        %v6361 = vadd.f32 %v6310, %v6360
        %v6362 = vpop.f32.mrf.mxu0
        %v6363 = vadd.f32 %v6312, %v6362
        %v6364 = vpop.f32.mrf.mxu0
        %v6365 = vadd.f32 %v6314, %v6364
        %6366 = vmatprep.mubr.bf16.mxu0 %v1369
        %6367 = vmatmul.mubr.bf16.gmra.mxu0 %v1368
        %v6368 = vpop.f32.mrf.mxu0
        %v6369 = vadd.f32 %v6318, %v6368
        %v6370 = vpop.f32.mrf.mxu0
        %v6371 = vadd.f32 %v6320, %v6370
        %v6372 = vpop.f32.mrf.mxu0
        %v6373 = vpop.f32.mrf.mxu0
        %6374 = vdwg.mxu0
        %6375 = vmatprep.subr.bf16.mxu0 %v4729
        %6376 = vmatpush1.bf16.msra.mxu0 %v4728
        %6377 = vmatprep.subr.bf16.mxu0 %v4725
        %6378 = vmatpush1.bf16.msra.mxu0 %v4724
        %6379 = vmatprep.subr.bf16.mxu0 %v4721
        %6380 = vmatpush1.bf16.msra.mxu0 %v4720
        %6381 = vmatprep.subr.bf16.mxu0 %v4717
        %6382 = vmatpush1.bf16.msra.mxu0 %v4716
        %6383 = vmatprep.subr.bf16.mxu0 %v4713
        %6384 = vmatpush1.bf16.msra.mxu0 %v4712
        %6385 = vmatprep.subr.bf16.mxu0 %v4709
        %6386 = vmatpush1.bf16.msra.mxu0 %v4708
        %6387 = vmatprep.subr.bf16.mxu0 %v4705
        %6388 = vmatpush1.bf16.msra.mxu0 %v4704
        %6389 = vmatprep.subr.bf16.mxu0 %v4701
        %6390 = vmatpush1.bf16.msra.mxu0 %v4700
        %6391 = vmatprep.subr.bf16.mxu0 %v4761
        %6392 = vmatpush2.bf16.msra.mxu0 %v4760
        %6393 = vmatprep.subr.bf16.mxu0 %v4757
        %6394 = vmatpush2.bf16.msra.mxu0 %v4756
        %6395 = vmatprep.subr.bf16.mxu0 %v4753
        %6396 = vmatpush2.bf16.msra.mxu0 %v4752
        %6397 = vmatprep.subr.bf16.mxu0 %v4749
        %6398 = vmatpush2.bf16.msra.mxu0 %v4748
        %6399 = vmatprep.subr.bf16.mxu0 %v4745
        %6400 = vmatpush2.bf16.msra.mxu0 %v4744
        %6401 = vmatprep.subr.bf16.mxu0 %v4741
        %6402 = vmatpush2.bf16.msra.mxu0 %v4740
        %6403 = vmatprep.subr.bf16.mxu0 %v4737
        %6404 = vmatpush2.bf16.msra.mxu0 %v4736
        %6405 = vmatprep.subr.bf16.mxu0 %v4733
        %6406 = vmatpush2.bf16.msra.mxu0 %v4732
        %6407 = vmatprep.mubr.bf16.mxu0 %v1343
        %6408 = vmatmul.mubr.bf16.gmra.mxu0 %v1342
        %v6409 = vpop.f32.mrf.mxu0
        %v6410 = vadd.f32 %v6359, %v6409
        %v6411 = vpop.f32.mrf.mxu0
        %v6412 = vadd.f32 %v6361, %v6411
        %v6413 = vpop.f32.mrf.mxu0
        %v6414 = vadd.f32 %v6363, %v6413
        %v6415 = vpop.f32.mrf.mxu0
        %v6416 = vadd.f32 %v6365, %v6415
        %6417 = vmatprep.mubr.bf16.mxu0 %v1371
        %6418 = vmatmul.mubr.bf16.gmra.mxu0 %v1370
        %v6419 = vpop.f32.mrf.mxu0
        %v6420 = vadd.f32 %v6369, %v6419
        %v6421 = vpop.f32.mrf.mxu0
        %v6422 = vadd.f32 %v6371, %v6421
        %v6423 = vpop.f32.mrf.mxu0
        %v6424 = vpop.f32.mrf.mxu0
        %6425 = vdwg.mxu0
        %6426 = vmatprep.subr.bf16.mxu0 %v4793
        %6427 = vmatpush1.bf16.msra.mxu0 %v4792
        %6428 = vmatprep.subr.bf16.mxu0 %v4789
        %6429 = vmatpush1.bf16.msra.mxu0 %v4788
        %6430 = vmatprep.subr.bf16.mxu0 %v4785
        %6431 = vmatpush1.bf16.msra.mxu0 %v4784
        %6432 = vmatprep.subr.bf16.mxu0 %v4781
        %6433 = vmatpush1.bf16.msra.mxu0 %v4780
        %6434 = vmatprep.subr.bf16.mxu0 %v4777
        %6435 = vmatpush1.bf16.msra.mxu0 %v4776
        %6436 = vmatprep.subr.bf16.mxu0 %v4773
        %6437 = vmatpush1.bf16.msra.mxu0 %v4772
        %6438 = vmatprep.subr.bf16.mxu0 %v4769
        %6439 = vmatpush1.bf16.msra.mxu0 %v4768
        %6440 = vmatprep.subr.bf16.mxu0 %v4765
        %6441 = vmatpush1.bf16.msra.mxu0 %v4764
        %6442 = vmatprep.subr.bf16.mxu0 %v4825
        %6443 = vmatpush2.bf16.msra.mxu0 %v4824
        %6444 = vmatprep.subr.bf16.mxu0 %v4821
        %6445 = vmatpush2.bf16.msra.mxu0 %v4820
        %6446 = vmatprep.subr.bf16.mxu0 %v4817
        %6447 = vmatpush2.bf16.msra.mxu0 %v4816
        %6448 = vmatprep.subr.bf16.mxu0 %v4813
        %6449 = vmatpush2.bf16.msra.mxu0 %v4812
        %6450 = vmatprep.subr.bf16.mxu0 %v4809
        %6451 = vmatpush2.bf16.msra.mxu0 %v4808
        %6452 = vmatprep.subr.bf16.mxu0 %v4805
        %6453 = vmatpush2.bf16.msra.mxu0 %v4804
        %6454 = vmatprep.subr.bf16.mxu0 %v4801
        %6455 = vmatpush2.bf16.msra.mxu0 %v4800
        %6456 = vmatprep.subr.bf16.mxu0 %v4797
        %6457 = vmatpush2.bf16.msra.mxu0 %v4796
        %6458 = vmatprep.mubr.bf16.mxu0 %v1345
        %6459 = vmatmul.mubr.bf16.gmra.mxu0 %v1344
        %v6460 = vpop.f32.mrf.mxu0
        %v6461 = vadd.f32 %v6410, %v6460
        %v6462 = vpop.f32.mrf.mxu0
        %v6463 = vadd.f32 %v6412, %v6462
        %v6464 = vpop.f32.mrf.mxu0
        %v6465 = vadd.f32 %v6414, %v6464
        %v6466 = vpop.f32.mrf.mxu0
        %v6467 = vadd.f32 %v6416, %v6466
        %6468 = vmatprep.mubr.bf16.mxu0 %v1373
        %6469 = vmatmul.mubr.bf16.gmra.mxu0 %v1372
        %v6470 = vpop.f32.mrf.mxu0
        %v6471 = vadd.f32 %v6420, %v6470
        %v6472 = vpop.f32.mrf.mxu0
        %v6473 = vadd.f32 %v6422, %v6472
        %v6474 = vpop.f32.mrf.mxu0
        %v6475 = vpop.f32.mrf.mxu0
        %6476 = vdwg.mxu0
        %6477 = vmatprep.subr.bf16.mxu0 %v4857
        %6478 = vmatpush1.bf16.msra.mxu0 %v4856
        %6479 = vmatprep.subr.bf16.mxu0 %v4853
        %6480 = vmatpush1.bf16.msra.mxu0 %v4852
        %6481 = vmatprep.subr.bf16.mxu0 %v4849
        %6482 = vmatpush1.bf16.msra.mxu0 %v4848
        %6483 = vmatprep.subr.bf16.mxu0 %v4845
        %6484 = vmatpush1.bf16.msra.mxu0 %v4844
        %6485 = vmatprep.subr.bf16.mxu0 %v4841
        %6486 = vmatpush1.bf16.msra.mxu0 %v4840
        %6487 = vmatprep.subr.bf16.mxu0 %v4837
        %6488 = vmatpush1.bf16.msra.mxu0 %v4836
        %6489 = vmatprep.subr.bf16.mxu0 %v4833
        %6490 = vmatpush1.bf16.msra.mxu0 %v4832
        %6491 = vmatprep.subr.bf16.mxu0 %v4829
        %6492 = vmatpush1.bf16.msra.mxu0 %v4828
        %6493 = vmatprep.subr.bf16.mxu0 %v4889
        %6494 = vmatpush2.bf16.msra.mxu0 %v4888
        %6495 = vmatprep.subr.bf16.mxu0 %v4885
        %6496 = vmatpush2.bf16.msra.mxu0 %v4884
        %6497 = vmatprep.subr.bf16.mxu0 %v4881
        %6498 = vmatpush2.bf16.msra.mxu0 %v4880
        %6499 = vmatprep.subr.bf16.mxu0 %v4877
        %6500 = vmatpush2.bf16.msra.mxu0 %v4876
        %6501 = vmatprep.subr.bf16.mxu0 %v4873
        %6502 = vmatpush2.bf16.msra.mxu0 %v4872
        %6503 = vmatprep.subr.bf16.mxu0 %v4869
        %6504 = vmatpush2.bf16.msra.mxu0 %v4868
        %6505 = vmatprep.subr.bf16.mxu0 %v4865
        %6506 = vmatpush2.bf16.msra.mxu0 %v4864
        %6507 = vmatprep.subr.bf16.mxu0 %v4861
        %6508 = vmatpush2.bf16.msra.mxu0 %v4860
        %6509 = vmatprep.mubr.bf16.mxu0 %v1347
        %6510 = vmatmul.mubr.bf16.gmra.mxu0 %v1346
        %v6511 = vpop.f32.mrf.mxu0
        %v6512 = vadd.f32 %v6461, %v6511
        %v6513 = vpop.f32.mrf.mxu0
        %v6514 = vadd.f32 %v6463, %v6513
        %v6515 = vpop.f32.mrf.mxu0
        %v6516 = vadd.f32 %v6465, %v6515
        %v6517 = vpop.f32.mrf.mxu0
        %v6518 = vadd.f32 %v6467, %v6517
        %6519 = vmatprep.mubr.bf16.mxu0 %v1375
        %6520 = vmatmul.mubr.bf16.gmra.mxu0 %v1374
        %v6521 = vpop.f32.mrf.mxu0
        %v6522 = vadd.f32 %v6471, %v6521
        %v6523 = vpop.f32.mrf.mxu0
        %v6524 = vadd.f32 %v6473, %v6523
        %v6525 = vpop.f32.mrf.mxu0
        %v6526 = vpop.f32.mrf.mxu0
        %6527 = vdwg.mxu0
        %6528 = vmatprep.subr.bf16.mxu0 %v4921
        %6529 = vmatpush1.bf16.msra.mxu0 %v4920
        %6530 = vmatprep.subr.bf16.mxu0 %v4917
        %6531 = vmatpush1.bf16.msra.mxu0 %v4916
        %6532 = vmatprep.subr.bf16.mxu0 %v4913
        %6533 = vmatpush1.bf16.msra.mxu0 %v4912
        %6534 = vmatprep.subr.bf16.mxu0 %v4909
        %6535 = vmatpush1.bf16.msra.mxu0 %v4908
        %6536 = vmatprep.subr.bf16.mxu0 %v4905
        %6537 = vmatpush1.bf16.msra.mxu0 %v4904
        %6538 = vmatprep.subr.bf16.mxu0 %v4901
        %6539 = vmatpush1.bf16.msra.mxu0 %v4900
        %6540 = vmatprep.subr.bf16.mxu0 %v4897
        %6541 = vmatpush1.bf16.msra.mxu0 %v4896
        %6542 = vmatprep.subr.bf16.mxu0 %v4893
        %6543 = vmatpush1.bf16.msra.mxu0 %v4892
        %6544 = vmatprep.subr.bf16.mxu0 %v4953
        %6545 = vmatpush2.bf16.msra.mxu0 %v4952
        %6546 = vmatprep.subr.bf16.mxu0 %v4949
        %6547 = vmatpush2.bf16.msra.mxu0 %v4948
        %6548 = vmatprep.subr.bf16.mxu0 %v4945
        %6549 = vmatpush2.bf16.msra.mxu0 %v4944
        %6550 = vmatprep.subr.bf16.mxu0 %v4941
        %6551 = vmatpush2.bf16.msra.mxu0 %v4940
        %6552 = vmatprep.subr.bf16.mxu0 %v4937
        %6553 = vmatpush2.bf16.msra.mxu0 %v4936
        %6554 = vmatprep.subr.bf16.mxu0 %v4933
        %6555 = vmatpush2.bf16.msra.mxu0 %v4932
        %6556 = vmatprep.subr.bf16.mxu0 %v4929
        %6557 = vmatpush2.bf16.msra.mxu0 %v4928
        %6558 = vmatprep.subr.bf16.mxu0 %v4925
        %6559 = vmatpush2.bf16.msra.mxu0 %v4924
        %6560 = vmatprep.mubr.bf16.mxu0 %v1349
        %6561 = vmatmul.mubr.bf16.gmra.mxu0 %v1348
        %v6562 = vpop.f32.mrf.mxu0
        %v6563 = vadd.f32 %v6512, %v6562
        %v6564 = vpop.f32.mrf.mxu0
        %v6565 = vadd.f32 %v6514, %v6564
        %v6566 = vpop.f32.mrf.mxu0
        %v6567 = vadd.f32 %v6516, %v6566
        %v6568 = vpop.f32.mrf.mxu0
        %v6569 = vadd.f32 %v6518, %v6568
        %6570 = vmatprep.mubr.bf16.mxu0 %v1377
        %6571 = vmatmul.mubr.bf16.gmra.mxu0 %v1376
        %v6572 = vpop.f32.mrf.mxu0
        %v6573 = vadd.f32 %v6522, %v6572
        %v6574 = vpop.f32.mrf.mxu0
        %v6575 = vadd.f32 %v6524, %v6574
        %v6576 = vpop.f32.mrf.mxu0
        %v6577 = vpop.f32.mrf.mxu0
        %6578 = vdwg.mxu0
        %6579 = vmatprep.subr.bf16.mxu0 %v4985
        %6580 = vmatpush1.bf16.msra.mxu0 %v4984
        %6581 = vmatprep.subr.bf16.mxu0 %v4981
        %6582 = vmatpush1.bf16.msra.mxu0 %v4980
        %6583 = vmatprep.subr.bf16.mxu0 %v4977
        %6584 = vmatpush1.bf16.msra.mxu0 %v4976
        %6585 = vmatprep.subr.bf16.mxu0 %v4973
        %6586 = vmatpush1.bf16.msra.mxu0 %v4972
        %6587 = vmatprep.subr.bf16.mxu0 %v4969
        %6588 = vmatpush1.bf16.msra.mxu0 %v4968
        %6589 = vmatprep.subr.bf16.mxu0 %v4965
        %6590 = vmatpush1.bf16.msra.mxu0 %v4964
        %6591 = vmatprep.subr.bf16.mxu0 %v4961
        %6592 = vmatpush1.bf16.msra.mxu0 %v4960
        %6593 = vmatprep.subr.bf16.mxu0 %v4957
        %6594 = vmatpush1.bf16.msra.mxu0 %v4956
        %6595 = vmatprep.subr.bf16.mxu0 %v5017
        %6596 = vmatpush2.bf16.msra.mxu0 %v5016
        %6597 = vmatprep.subr.bf16.mxu0 %v5013
        %6598 = vmatpush2.bf16.msra.mxu0 %v5012
        %6599 = vmatprep.subr.bf16.mxu0 %v5009
        %6600 = vmatpush2.bf16.msra.mxu0 %v5008
        %6601 = vmatprep.subr.bf16.mxu0 %v5005
        %6602 = vmatpush2.bf16.msra.mxu0 %v5004
        %6603 = vmatprep.subr.bf16.mxu0 %v5001
        %6604 = vmatpush2.bf16.msra.mxu0 %v5000
        %6605 = vmatprep.subr.bf16.mxu0 %v4997
        %6606 = vmatpush2.bf16.msra.mxu0 %v4996
        %6607 = vmatprep.subr.bf16.mxu0 %v4993
        %6608 = vmatpush2.bf16.msra.mxu0 %v4992
        %6609 = vmatprep.subr.bf16.mxu0 %v4989
        %6610 = vmatpush2.bf16.msra.mxu0 %v4988
        %6611 = vmatprep.mubr.bf16.mxu0 %v1351
        %6612 = vmatmul.mubr.bf16.gmra.mxu0 %v1350
        %v6613 = vpop.f32.mrf.mxu0
        %v6614 = vadd.f32 %v6563, %v6613
        %v6615 = vpop.f32.mrf.mxu0
        %v6616 = vadd.f32 %v6565, %v6615
        %v6617 = vpop.f32.mrf.mxu0
        %v6618 = vadd.f32 %v6567, %v6617
        %v6619 = vpop.f32.mrf.mxu0
        %v6620 = vadd.f32 %v6569, %v6619
        %6621 = vmatprep.mubr.bf16.mxu0 %v1379
        %6622 = vmatmul.mubr.bf16.gmra.mxu0 %v1378
        %v6623 = vpop.f32.mrf.mxu0
        %v6624 = vadd.f32 %v6573, %v6623
        %v6625 = vpop.f32.mrf.mxu0
        %v6626 = vadd.f32 %v6575, %v6625
        %v6627 = vpop.f32.mrf.mxu0
        %v6628 = vpop.f32.mrf.mxu0
        %6629 = vdwg.mxu0
        %6630 = vmatprep.subr.bf16.mxu0 %v4155
        %6631 = vmatpush1.bf16.msra.mxu0 %v4154
        %6632 = vmatprep.subr.bf16.mxu0 %v4151
        %6633 = vmatpush1.bf16.msra.mxu0 %v4150
        %6634 = vmatprep.subr.bf16.mxu0 %v4147
        %6635 = vmatpush1.bf16.msra.mxu0 %v4146
        %6636 = vmatprep.subr.bf16.mxu0 %v4143
        %6637 = vmatpush1.bf16.msra.mxu0 %v4142
        %6638 = vmatprep.subr.bf16.mxu0 %v4139
        %6639 = vmatpush1.bf16.msra.mxu0 %v4138
        %6640 = vmatprep.subr.bf16.mxu0 %v4135
        %6641 = vmatpush1.bf16.msra.mxu0 %v4134
        %6642 = vmatprep.subr.bf16.mxu0 %v4131
        %6643 = vmatpush1.bf16.msra.mxu0 %v4130
        %6644 = vmatprep.subr.bf16.mxu0 %v4127
        %6645 = vmatpush1.bf16.msra.mxu0 %v4126
        %6646 = vmatprep.subr.bf16.mxu0 %v4187
        %6647 = vmatpush2.bf16.msra.mxu0 %v4186
        %6648 = vmatprep.subr.bf16.mxu0 %v4183
        %6649 = vmatpush2.bf16.msra.mxu0 %v4182
        %6650 = vmatprep.subr.bf16.mxu0 %v4179
        %6651 = vmatpush2.bf16.msra.mxu0 %v4178
        %6652 = vmatprep.subr.bf16.mxu0 %v4175
        %6653 = vmatpush2.bf16.msra.mxu0 %v4174
        %6654 = vmatprep.subr.bf16.mxu0 %v4171
        %6655 = vmatpush2.bf16.msra.mxu0 %v4170
        %6656 = vmatprep.subr.bf16.mxu0 %v4167
        %6657 = vmatpush2.bf16.msra.mxu0 %v4166
        %6658 = vmatprep.subr.bf16.mxu0 %v4163
        %6659 = vmatpush2.bf16.msra.mxu0 %v4162
        %6660 = vmatprep.subr.bf16.mxu0 %v4159
        %6661 = vmatpush2.bf16.msra.mxu0 %v4158
        %6662 = vmatprep.mubr.bf16.mxu0 %v1325
        %6663 = vmatmul.mubr.bf16.gmra.mxu0 %v1324
        %v6664 = vpop.f32.mrf.mxu0
        %v6665 = vadd.f32 0.0, %v6664
        %v6666 = vpop.f32.mrf.mxu0
        %v6667 = vadd.f32 0.0, %v6666
        %v6668 = vpop.f32.mrf.mxu0
        %v6669 = vadd.f32 0.0, %v6668
        %v6670 = vpop.f32.mrf.mxu0
        %v6671 = vadd.f32 0.0, %v6670
        %6672 = vmatprep.mubr.bf16.mxu0 %v1353
        %6673 = vmatmul.mubr.bf16.gmra.mxu0 %v1352
        %v6674 = vpop.f32.mrf.mxu0
        %v6675 = vadd.f32 0.0, %v6674
        %v6676 = vpop.f32.mrf.mxu0
        %v6677 = vadd.f32 0.0, %v6676
        %v6678 = vpop.f32.mrf.mxu0
        %v6679 = vpop.f32.mrf.mxu0
        %6680 = vdwg.mxu0
        %6681 = vmatprep.subr.bf16.mxu0 %v4219
        %6682 = vmatpush1.bf16.msra.mxu0 %v4218
        %6683 = vmatprep.subr.bf16.mxu0 %v4215
        %6684 = vmatpush1.bf16.msra.mxu0 %v4214
        %6685 = vmatprep.subr.bf16.mxu0 %v4211
        %6686 = vmatpush1.bf16.msra.mxu0 %v4210
        %6687 = vmatprep.subr.bf16.mxu0 %v4207
        %6688 = vmatpush1.bf16.msra.mxu0 %v4206
        %6689 = vmatprep.subr.bf16.mxu0 %v4203
        %6690 = vmatpush1.bf16.msra.mxu0 %v4202
        %6691 = vmatprep.subr.bf16.mxu0 %v4199
        %6692 = vmatpush1.bf16.msra.mxu0 %v4198
        %6693 = vmatprep.subr.bf16.mxu0 %v4195
        %6694 = vmatpush1.bf16.msra.mxu0 %v4194
        %6695 = vmatprep.subr.bf16.mxu0 %v4191
        %6696 = vmatpush1.bf16.msra.mxu0 %v4190
        %6697 = vmatprep.subr.bf16.mxu0 %v4251
        %6698 = vmatpush2.bf16.msra.mxu0 %v4250
        %6699 = vmatprep.subr.bf16.mxu0 %v4247
        %6700 = vmatpush2.bf16.msra.mxu0 %v4246
        %6701 = vmatprep.subr.bf16.mxu0 %v4243
        %6702 = vmatpush2.bf16.msra.mxu0 %v4242
        %6703 = vmatprep.subr.bf16.mxu0 %v4239
        %6704 = vmatpush2.bf16.msra.mxu0 %v4238
        %6705 = vmatprep.subr.bf16.mxu0 %v4235
        %6706 = vmatpush2.bf16.msra.mxu0 %v4234
        %6707 = vmatprep.subr.bf16.mxu0 %v4231
        %6708 = vmatpush2.bf16.msra.mxu0 %v4230
        %6709 = vmatprep.subr.bf16.mxu0 %v4227
        %6710 = vmatpush2.bf16.msra.mxu0 %v4226
        %6711 = vmatprep.subr.bf16.mxu0 %v4223
        %6712 = vmatpush2.bf16.msra.mxu0 %v4222
        %6713 = vmatprep.mubr.bf16.mxu0 %v1327
        %6714 = vmatmul.mubr.bf16.gmra.mxu0 %v1326
        %v6715 = vpop.f32.mrf.mxu0
        %v6716 = vadd.f32 %v6665, %v6715
        %v6717 = vpop.f32.mrf.mxu0
        %v6718 = vadd.f32 %v6667, %v6717
        %v6719 = vpop.f32.mrf.mxu0
        %v6720 = vadd.f32 %v6669, %v6719
        %v6721 = vpop.f32.mrf.mxu0
        %v6722 = vadd.f32 %v6671, %v6721
        %6723 = vmatprep.mubr.bf16.mxu0 %v1355
        %6724 = vmatmul.mubr.bf16.gmra.mxu0 %v1354
        %v6725 = vpop.f32.mrf.mxu0
        %v6726 = vadd.f32 %v6675, %v6725
        %v6727 = vpop.f32.mrf.mxu0
        %v6728 = vadd.f32 %v6677, %v6727
        %v6729 = vpop.f32.mrf.mxu0
        %v6730 = vpop.f32.mrf.mxu0
        %6731 = vdwg.mxu0
        %6732 = vmatprep.subr.bf16.mxu0 %v4283
        %6733 = vmatpush1.bf16.msra.mxu0 %v4282
        %6734 = vmatprep.subr.bf16.mxu0 %v4279
        %6735 = vmatpush1.bf16.msra.mxu0 %v4278
        %6736 = vmatprep.subr.bf16.mxu0 %v4275
        %6737 = vmatpush1.bf16.msra.mxu0 %v4274
        %6738 = vmatprep.subr.bf16.mxu0 %v4271
        %6739 = vmatpush1.bf16.msra.mxu0 %v4270
        %6740 = vmatprep.subr.bf16.mxu0 %v4267
        %6741 = vmatpush1.bf16.msra.mxu0 %v4266
        %6742 = vmatprep.subr.bf16.mxu0 %v4263
        %6743 = vmatpush1.bf16.msra.mxu0 %v4262
        %6744 = vmatprep.subr.bf16.mxu0 %v4259
        %6745 = vmatpush1.bf16.msra.mxu0 %v4258
        %6746 = vmatprep.subr.bf16.mxu0 %v4255
        %6747 = vmatpush1.bf16.msra.mxu0 %v4254
        %6748 = vmatprep.subr.bf16.mxu0 %v4315
        %6749 = vmatpush2.bf16.msra.mxu0 %v4314
        %6750 = vmatprep.subr.bf16.mxu0 %v4311
        %6751 = vmatpush2.bf16.msra.mxu0 %v4310
        %6752 = vmatprep.subr.bf16.mxu0 %v4307
        %6753 = vmatpush2.bf16.msra.mxu0 %v4306
        %6754 = vmatprep.subr.bf16.mxu0 %v4303
        %6755 = vmatpush2.bf16.msra.mxu0 %v4302
        %6756 = vmatprep.subr.bf16.mxu0 %v4299
        %6757 = vmatpush2.bf16.msra.mxu0 %v4298
        %6758 = vmatprep.subr.bf16.mxu0 %v4295
        %6759 = vmatpush2.bf16.msra.mxu0 %v4294
        %6760 = vmatprep.subr.bf16.mxu0 %v4291
        %6761 = vmatpush2.bf16.msra.mxu0 %v4290
        %6762 = vmatprep.subr.bf16.mxu0 %v4287
        %6763 = vmatpush2.bf16.msra.mxu0 %v4286
        %6764 = vmatprep.mubr.bf16.mxu0 %v1329
        %6765 = vmatmul.mubr.bf16.gmra.mxu0 %v1328
        %v6766 = vpop.f32.mrf.mxu0
        %v6767 = vadd.f32 %v6716, %v6766
        %v6768 = vpop.f32.mrf.mxu0
        %v6769 = vadd.f32 %v6718, %v6768
        %v6770 = vpop.f32.mrf.mxu0
        %v6771 = vadd.f32 %v6720, %v6770
        %v6772 = vpop.f32.mrf.mxu0
        %v6773 = vadd.f32 %v6722, %v6772
        %6774 = vmatprep.mubr.bf16.mxu0 %v1357
        %6775 = vmatmul.mubr.bf16.gmra.mxu0 %v1356
        %v6776 = vpop.f32.mrf.mxu0
        %v6777 = vadd.f32 %v6726, %v6776
        %v6778 = vpop.f32.mrf.mxu0
        %v6779 = vadd.f32 %v6728, %v6778
        %v6780 = vpop.f32.mrf.mxu0
        %v6781 = vpop.f32.mrf.mxu0
        %6782 = vdwg.mxu0
        %6783 = vmatprep.subr.bf16.mxu0 %v4347
        %6784 = vmatpush1.bf16.msra.mxu0 %v4346
        %6785 = vmatprep.subr.bf16.mxu0 %v4343
        %6786 = vmatpush1.bf16.msra.mxu0 %v4342
        %6787 = vmatprep.subr.bf16.mxu0 %v4339
        %6788 = vmatpush1.bf16.msra.mxu0 %v4338
        %6789 = vmatprep.subr.bf16.mxu0 %v4335
        %6790 = vmatpush1.bf16.msra.mxu0 %v4334
        %6791 = vmatprep.subr.bf16.mxu0 %v4331
        %6792 = vmatpush1.bf16.msra.mxu0 %v4330
        %6793 = vmatprep.subr.bf16.mxu0 %v4327
        %6794 = vmatpush1.bf16.msra.mxu0 %v4326
        %6795 = vmatprep.subr.bf16.mxu0 %v4323
        %6796 = vmatpush1.bf16.msra.mxu0 %v4322
        %6797 = vmatprep.subr.bf16.mxu0 %v4319
        %6798 = vmatpush1.bf16.msra.mxu0 %v4318
        %6799 = vmatprep.subr.bf16.mxu0 %v4379
        %6800 = vmatpush2.bf16.msra.mxu0 %v4378
        %6801 = vmatprep.subr.bf16.mxu0 %v4375
        %6802 = vmatpush2.bf16.msra.mxu0 %v4374
        %6803 = vmatprep.subr.bf16.mxu0 %v4371
        %6804 = vmatpush2.bf16.msra.mxu0 %v4370
        %6805 = vmatprep.subr.bf16.mxu0 %v4367
        %6806 = vmatpush2.bf16.msra.mxu0 %v4366
        %6807 = vmatprep.subr.bf16.mxu0 %v4363
        %6808 = vmatpush2.bf16.msra.mxu0 %v4362
        %6809 = vmatprep.subr.bf16.mxu0 %v4359
        %6810 = vmatpush2.bf16.msra.mxu0 %v4358
        %6811 = vmatprep.subr.bf16.mxu0 %v4355
        %6812 = vmatpush2.bf16.msra.mxu0 %v4354
        %6813 = vmatprep.subr.bf16.mxu0 %v4351
        %6814 = vmatpush2.bf16.msra.mxu0 %v4350
        %6815 = vmatprep.mubr.bf16.mxu0 %v1331
        %6816 = vmatmul.mubr.bf16.gmra.mxu0 %v1330
        %v6817 = vpop.f32.mrf.mxu0
        %v6818 = vadd.f32 %v6767, %v6817
        %v6819 = vpop.f32.mrf.mxu0
        %v6820 = vadd.f32 %v6769, %v6819
        %v6821 = vpop.f32.mrf.mxu0
        %v6822 = vadd.f32 %v6771, %v6821
        %v6823 = vpop.f32.mrf.mxu0
        %v6824 = vadd.f32 %v6773, %v6823
        %6825 = vmatprep.mubr.bf16.mxu0 %v1359
        %6826 = vmatmul.mubr.bf16.gmra.mxu0 %v1358
        %v6827 = vpop.f32.mrf.mxu0
        %v6828 = vadd.f32 %v6777, %v6827
        %v6829 = vpop.f32.mrf.mxu0
        %v6830 = vadd.f32 %v6779, %v6829
        %v6831 = vpop.f32.mrf.mxu0
        %v6832 = vpop.f32.mrf.mxu0
        %6833 = vdwg.mxu0
        %6834 = vmatprep.subr.bf16.mxu0 %v4411
        %6835 = vmatpush1.bf16.msra.mxu0 %v4410
        %6836 = vmatprep.subr.bf16.mxu0 %v4407
        %6837 = vmatpush1.bf16.msra.mxu0 %v4406
        %6838 = vmatprep.subr.bf16.mxu0 %v4403
        %6839 = vmatpush1.bf16.msra.mxu0 %v4402
        %6840 = vmatprep.subr.bf16.mxu0 %v4399
        %6841 = vmatpush1.bf16.msra.mxu0 %v4398
        %6842 = vmatprep.subr.bf16.mxu0 %v4395
        %6843 = vmatpush1.bf16.msra.mxu0 %v4394
        %6844 = vmatprep.subr.bf16.mxu0 %v4391
        %6845 = vmatpush1.bf16.msra.mxu0 %v4390
        %6846 = vmatprep.subr.bf16.mxu0 %v4387
        %6847 = vmatpush1.bf16.msra.mxu0 %v4386
        %6848 = vmatprep.subr.bf16.mxu0 %v4383
        %6849 = vmatpush1.bf16.msra.mxu0 %v4382
        %6850 = vmatprep.subr.bf16.mxu0 %v4443
        %6851 = vmatpush2.bf16.msra.mxu0 %v4442
        %6852 = vmatprep.subr.bf16.mxu0 %v4439
        %6853 = vmatpush2.bf16.msra.mxu0 %v4438
        %6854 = vmatprep.subr.bf16.mxu0 %v4435
        %6855 = vmatpush2.bf16.msra.mxu0 %v4434
        %6856 = vmatprep.subr.bf16.mxu0 %v4431
        %6857 = vmatpush2.bf16.msra.mxu0 %v4430
        %6858 = vmatprep.subr.bf16.mxu0 %v4427
        %6859 = vmatpush2.bf16.msra.mxu0 %v4426
        %6860 = vmatprep.subr.bf16.mxu0 %v4423
        %6861 = vmatpush2.bf16.msra.mxu0 %v4422
        %6862 = vmatprep.subr.bf16.mxu0 %v4419
        %6863 = vmatpush2.bf16.msra.mxu0 %v4418
        %6864 = vmatprep.subr.bf16.mxu0 %v4415
        %6865 = vmatpush2.bf16.msra.mxu0 %v4414
        %6866 = vmatprep.mubr.bf16.mxu0 %v1333
        %6867 = vmatmul.mubr.bf16.gmra.mxu0 %v1332
        %v6868 = vpop.f32.mrf.mxu0
        %v6869 = vadd.f32 %v6818, %v6868
        %v6870 = vpop.f32.mrf.mxu0
        %v6871 = vadd.f32 %v6820, %v6870
        %v6872 = vpop.f32.mrf.mxu0
        %v6873 = vadd.f32 %v6822, %v6872
        %v6874 = vpop.f32.mrf.mxu0
        %v6875 = vadd.f32 %v6824, %v6874
        %6876 = vmatprep.mubr.bf16.mxu0 %v1361
        %6877 = vmatmul.mubr.bf16.gmra.mxu0 %v1360
        %v6878 = vpop.f32.mrf.mxu0
        %v6879 = vadd.f32 %v6828, %v6878
        %v6880 = vpop.f32.mrf.mxu0
        %v6881 = vadd.f32 %v6830, %v6880
        %v6882 = vpop.f32.mrf.mxu0
        %v6883 = vpop.f32.mrf.mxu0
        %6884 = vdwg.mxu0
        %6885 = vmatprep.subr.bf16.mxu0 %v4475
        %6886 = vmatpush1.bf16.msra.mxu0 %v4474
        %6887 = vmatprep.subr.bf16.mxu0 %v4471
        %6888 = vmatpush1.bf16.msra.mxu0 %v4470
        %6889 = vmatprep.subr.bf16.mxu0 %v4467
        %6890 = vmatpush1.bf16.msra.mxu0 %v4466
        %6891 = vmatprep.subr.bf16.mxu0 %v4463
        %6892 = vmatpush1.bf16.msra.mxu0 %v4462
        %6893 = vmatprep.subr.bf16.mxu0 %v4459
        %6894 = vmatpush1.bf16.msra.mxu0 %v4458
        %6895 = vmatprep.subr.bf16.mxu0 %v4455
        %6896 = vmatpush1.bf16.msra.mxu0 %v4454
        %6897 = vmatprep.subr.bf16.mxu0 %v4451
        %6898 = vmatpush1.bf16.msra.mxu0 %v4450
        %6899 = vmatprep.subr.bf16.mxu0 %v4447
        %6900 = vmatpush1.bf16.msra.mxu0 %v4446
        %6901 = vmatprep.subr.bf16.mxu0 %v4507
        %6902 = vmatpush2.bf16.msra.mxu0 %v4506
        %6903 = vmatprep.subr.bf16.mxu0 %v4503
        %6904 = vmatpush2.bf16.msra.mxu0 %v4502
        %6905 = vmatprep.subr.bf16.mxu0 %v4499
        %6906 = vmatpush2.bf16.msra.mxu0 %v4498
        %6907 = vmatprep.subr.bf16.mxu0 %v4495
        %6908 = vmatpush2.bf16.msra.mxu0 %v4494
        %6909 = vmatprep.subr.bf16.mxu0 %v4491
        %6910 = vmatpush2.bf16.msra.mxu0 %v4490
        %6911 = vmatprep.subr.bf16.mxu0 %v4487
        %6912 = vmatpush2.bf16.msra.mxu0 %v4486
        %6913 = vmatprep.subr.bf16.mxu0 %v4483
        %6914 = vmatpush2.bf16.msra.mxu0 %v4482
        %6915 = vmatprep.subr.bf16.mxu0 %v4479
        %6916 = vmatpush2.bf16.msra.mxu0 %v4478
        %6917 = vmatprep.mubr.bf16.mxu0 %v1335
        %6918 = vmatmul.mubr.bf16.gmra.mxu0 %v1334
        %v6919 = vpop.f32.mrf.mxu0
        %v6920 = vadd.f32 %v6869, %v6919
        %v6921 = vpop.f32.mrf.mxu0
        %v6922 = vadd.f32 %v6871, %v6921
        %v6923 = vpop.f32.mrf.mxu0
        %v6924 = vadd.f32 %v6873, %v6923
        %v6925 = vpop.f32.mrf.mxu0
        %v6926 = vadd.f32 %v6875, %v6925
        %6927 = vmatprep.mubr.bf16.mxu0 %v1363
        %6928 = vmatmul.mubr.bf16.gmra.mxu0 %v1362
        %v6929 = vpop.f32.mrf.mxu0
        %v6930 = vadd.f32 %v6879, %v6929
        %v6931 = vpop.f32.mrf.mxu0
        %v6932 = vadd.f32 %v6881, %v6931
        %v6933 = vpop.f32.mrf.mxu0
        %v6934 = vpop.f32.mrf.mxu0
        %6935 = vdwg.mxu0
        %6936 = vmatprep.subr.bf16.mxu0 %v4539
        %6937 = vmatpush1.bf16.msra.mxu0 %v4538
        %6938 = vmatprep.subr.bf16.mxu0 %v4535
        %6939 = vmatpush1.bf16.msra.mxu0 %v4534
        %6940 = vmatprep.subr.bf16.mxu0 %v4531
        %6941 = vmatpush1.bf16.msra.mxu0 %v4530
        %6942 = vmatprep.subr.bf16.mxu0 %v4527
        %6943 = vmatpush1.bf16.msra.mxu0 %v4526
        %6944 = vmatprep.subr.bf16.mxu0 %v4523
        %6945 = vmatpush1.bf16.msra.mxu0 %v4522
        %6946 = vmatprep.subr.bf16.mxu0 %v4519
        %6947 = vmatpush1.bf16.msra.mxu0 %v4518
        %6948 = vmatprep.subr.bf16.mxu0 %v4515
        %6949 = vmatpush1.bf16.msra.mxu0 %v4514
        %6950 = vmatprep.subr.bf16.mxu0 %v4511
        %6951 = vmatpush1.bf16.msra.mxu0 %v4510
        %6952 = vmatprep.subr.bf16.mxu0 %v4571
        %6953 = vmatpush2.bf16.msra.mxu0 %v4570
        %6954 = vmatprep.subr.bf16.mxu0 %v4567
        %6955 = vmatpush2.bf16.msra.mxu0 %v4566
        %6956 = vmatprep.subr.bf16.mxu0 %v4563
        %6957 = vmatpush2.bf16.msra.mxu0 %v4562
        %6958 = vmatprep.subr.bf16.mxu0 %v4559
        %6959 = vmatpush2.bf16.msra.mxu0 %v4558
        %6960 = vmatprep.subr.bf16.mxu0 %v4555
        %6961 = vmatpush2.bf16.msra.mxu0 %v4554
        %6962 = vmatprep.subr.bf16.mxu0 %v4551
        %6963 = vmatpush2.bf16.msra.mxu0 %v4550
        %6964 = vmatprep.subr.bf16.mxu0 %v4547
        %6965 = vmatpush2.bf16.msra.mxu0 %v4546
        %6966 = vmatprep.subr.bf16.mxu0 %v4543
        %6967 = vmatpush2.bf16.msra.mxu0 %v4542
        %6968 = vmatprep.mubr.bf16.mxu0 %v1337
        %6969 = vmatmul.mubr.bf16.gmra.mxu0 %v1336
        %v6970 = vpop.f32.mrf.mxu0
        %v6971 = vadd.f32 %v6920, %v6970
        %v6972 = vpop.f32.mrf.mxu0
        %v6973 = vadd.f32 %v6922, %v6972
        %v6974 = vpop.f32.mrf.mxu0
        %v6975 = vadd.f32 %v6924, %v6974
        %v6976 = vpop.f32.mrf.mxu0
        %v6977 = vadd.f32 %v6926, %v6976
        %6978 = vmatprep.mubr.bf16.mxu0 %v1365
        %6979 = vmatmul.mubr.bf16.gmra.mxu0 %v1364
        %v6980 = vpop.f32.mrf.mxu0
        %v6981 = vadd.f32 %v6930, %v6980
        %v6982 = vpop.f32.mrf.mxu0
        %v6983 = vadd.f32 %v6932, %v6982
        %v6984 = vpop.f32.mrf.mxu0
        %v6985 = vpop.f32.mrf.mxu0
        %6986 = vdwg.mxu0
        %6987 = vmatprep.subr.bf16.mxu0 %v4603
        %6988 = vmatpush1.bf16.msra.mxu0 %v4602
        %6989 = vmatprep.subr.bf16.mxu0 %v4599
        %6990 = vmatpush1.bf16.msra.mxu0 %v4598
        %6991 = vmatprep.subr.bf16.mxu0 %v4595
        %6992 = vmatpush1.bf16.msra.mxu0 %v4594
        %6993 = vmatprep.subr.bf16.mxu0 %v4591
        %6994 = vmatpush1.bf16.msra.mxu0 %v4590
        %6995 = vmatprep.subr.bf16.mxu0 %v4587
        %6996 = vmatpush1.bf16.msra.mxu0 %v4586
        %6997 = vmatprep.subr.bf16.mxu0 %v4583
        %6998 = vmatpush1.bf16.msra.mxu0 %v4582
        %6999 = vmatprep.subr.bf16.mxu0 %v4579
        %7000 = vmatpush1.bf16.msra.mxu0 %v4578
        %7001 = vmatprep.subr.bf16.mxu0 %v4575
        %7002 = vmatpush1.bf16.msra.mxu0 %v4574
        %7003 = vmatprep.subr.bf16.mxu0 %v4635
        %7004 = vmatpush2.bf16.msra.mxu0 %v4634
        %7005 = vmatprep.subr.bf16.mxu0 %v4631
        %7006 = vmatpush2.bf16.msra.mxu0 %v4630
        %7007 = vmatprep.subr.bf16.mxu0 %v4627
        %7008 = vmatpush2.bf16.msra.mxu0 %v4626
        %7009 = vmatprep.subr.bf16.mxu0 %v4623
        %7010 = vmatpush2.bf16.msra.mxu0 %v4622
        %7011 = vmatprep.subr.bf16.mxu0 %v4619
        %7012 = vmatpush2.bf16.msra.mxu0 %v4618
        %7013 = vmatprep.subr.bf16.mxu0 %v4615
        %7014 = vmatpush2.bf16.msra.mxu0 %v4614
        %7015 = vmatprep.subr.bf16.mxu0 %v4611
        %7016 = vmatpush2.bf16.msra.mxu0 %v4610
        %7017 = vmatprep.subr.bf16.mxu0 %v4607
        %7018 = vmatpush2.bf16.msra.mxu0 %v4606
        %7019 = vmatprep.mubr.bf16.mxu0 %v1339
        %7020 = vmatmul.mubr.bf16.gmra.mxu0 %v1338
        %v7021 = vpop.f32.mrf.mxu0
        %v7022 = vadd.f32 %v6971, %v7021
        %v7023 = vpop.f32.mrf.mxu0
        %v7024 = vadd.f32 %v6973, %v7023
        %v7025 = vpop.f32.mrf.mxu0
        %v7026 = vadd.f32 %v6975, %v7025
        %v7027 = vpop.f32.mrf.mxu0
        %v7028 = vadd.f32 %v6977, %v7027
        %7029 = vmatprep.mubr.bf16.mxu0 %v1367
        %7030 = vmatmul.mubr.bf16.gmra.mxu0 %v1366
        %v7031 = vpop.f32.mrf.mxu0
        %v7032 = vadd.f32 %v6981, %v7031
        %v7033 = vpop.f32.mrf.mxu0
        %v7034 = vadd.f32 %v6983, %v7033
        %v7035 = vpop.f32.mrf.mxu0
        %v7036 = vpop.f32.mrf.mxu0
        %7037 = vdwg.mxu0
        %7038 = vmatprep.subr.bf16.mxu0 %v4667
        %7039 = vmatpush1.bf16.msra.mxu0 %v4666
        %7040 = vmatprep.subr.bf16.mxu0 %v4663
        %7041 = vmatpush1.bf16.msra.mxu0 %v4662
        %7042 = vmatprep.subr.bf16.mxu0 %v4659
        %7043 = vmatpush1.bf16.msra.mxu0 %v4658
        %7044 = vmatprep.subr.bf16.mxu0 %v4655
        %7045 = vmatpush1.bf16.msra.mxu0 %v4654
        %7046 = vmatprep.subr.bf16.mxu0 %v4651
        %7047 = vmatpush1.bf16.msra.mxu0 %v4650
        %7048 = vmatprep.subr.bf16.mxu0 %v4647
        %7049 = vmatpush1.bf16.msra.mxu0 %v4646
        %7050 = vmatprep.subr.bf16.mxu0 %v4643
        %7051 = vmatpush1.bf16.msra.mxu0 %v4642
        %7052 = vmatprep.subr.bf16.mxu0 %v4639
        %7053 = vmatpush1.bf16.msra.mxu0 %v4638
        %7054 = vmatprep.subr.bf16.mxu0 %v4699
        %7055 = vmatpush2.bf16.msra.mxu0 %v4698
        %7056 = vmatprep.subr.bf16.mxu0 %v4695
        %7057 = vmatpush2.bf16.msra.mxu0 %v4694
        %7058 = vmatprep.subr.bf16.mxu0 %v4691
        %7059 = vmatpush2.bf16.msra.mxu0 %v4690
        %7060 = vmatprep.subr.bf16.mxu0 %v4687
        %7061 = vmatpush2.bf16.msra.mxu0 %v4686
        %7062 = vmatprep.subr.bf16.mxu0 %v4683
        %7063 = vmatpush2.bf16.msra.mxu0 %v4682
        %7064 = vmatprep.subr.bf16.mxu0 %v4679
        %7065 = vmatpush2.bf16.msra.mxu0 %v4678
        %7066 = vmatprep.subr.bf16.mxu0 %v4675
        %7067 = vmatpush2.bf16.msra.mxu0 %v4674
        %7068 = vmatprep.subr.bf16.mxu0 %v4671
        %7069 = vmatpush2.bf16.msra.mxu0 %v4670
        %7070 = vmatprep.mubr.bf16.mxu0 %v1341
        %7071 = vmatmul.mubr.bf16.gmra.mxu0 %v1340
        %v7072 = vpop.f32.mrf.mxu0
        %v7073 = vadd.f32 %v7022, %v7072
        %v7074 = vpop.f32.mrf.mxu0
        %v7075 = vadd.f32 %v7024, %v7074
        %v7076 = vpop.f32.mrf.mxu0
        %v7077 = vadd.f32 %v7026, %v7076
        %v7078 = vpop.f32.mrf.mxu0
        %v7079 = vadd.f32 %v7028, %v7078
        %7080 = vmatprep.mubr.bf16.mxu0 %v1369
        %7081 = vmatmul.mubr.bf16.gmra.mxu0 %v1368
        %v7082 = vpop.f32.mrf.mxu0
        %v7083 = vadd.f32 %v7032, %v7082
        %v7084 = vpop.f32.mrf.mxu0
        %v7085 = vadd.f32 %v7034, %v7084
        %v7086 = vpop.f32.mrf.mxu0
        %v7087 = vpop.f32.mrf.mxu0
        %7088 = vdwg.mxu0
        %7089 = vmatprep.subr.bf16.mxu0 %v4731
        %7090 = vmatpush1.bf16.msra.mxu0 %v4730
        %7091 = vmatprep.subr.bf16.mxu0 %v4727
        %7092 = vmatpush1.bf16.msra.mxu0 %v4726
        %7093 = vmatprep.subr.bf16.mxu0 %v4723
        %7094 = vmatpush1.bf16.msra.mxu0 %v4722
        %7095 = vmatprep.subr.bf16.mxu0 %v4719
        %7096 = vmatpush1.bf16.msra.mxu0 %v4718
        %7097 = vmatprep.subr.bf16.mxu0 %v4715
        %7098 = vmatpush1.bf16.msra.mxu0 %v4714
        %7099 = vmatprep.subr.bf16.mxu0 %v4711
        %7100 = vmatpush1.bf16.msra.mxu0 %v4710
        %7101 = vmatprep.subr.bf16.mxu0 %v4707
        %7102 = vmatpush1.bf16.msra.mxu0 %v4706
        %7103 = vmatprep.subr.bf16.mxu0 %v4703
        %7104 = vmatpush1.bf16.msra.mxu0 %v4702
        %7105 = vmatprep.subr.bf16.mxu0 %v4763
        %7106 = vmatpush2.bf16.msra.mxu0 %v4762
        %7107 = vmatprep.subr.bf16.mxu0 %v4759
        %7108 = vmatpush2.bf16.msra.mxu0 %v4758
        %7109 = vmatprep.subr.bf16.mxu0 %v4755
        %7110 = vmatpush2.bf16.msra.mxu0 %v4754
        %7111 = vmatprep.subr.bf16.mxu0 %v4751
        %7112 = vmatpush2.bf16.msra.mxu0 %v4750
        %7113 = vmatprep.subr.bf16.mxu0 %v4747
        %7114 = vmatpush2.bf16.msra.mxu0 %v4746
        %7115 = vmatprep.subr.bf16.mxu0 %v4743
        %7116 = vmatpush2.bf16.msra.mxu0 %v4742
        %7117 = vmatprep.subr.bf16.mxu0 %v4739
        %7118 = vmatpush2.bf16.msra.mxu0 %v4738
        %7119 = vmatprep.subr.bf16.mxu0 %v4735
        %7120 = vmatpush2.bf16.msra.mxu0 %v4734
        %7121 = vmatprep.mubr.bf16.mxu0 %v1343
        %7122 = vmatmul.mubr.bf16.gmra.mxu0 %v1342
        %v7123 = vpop.f32.mrf.mxu0
        %v7124 = vadd.f32 %v7073, %v7123
        %v7125 = vpop.f32.mrf.mxu0
        %v7126 = vadd.f32 %v7075, %v7125
        %v7127 = vpop.f32.mrf.mxu0
        %v7128 = vadd.f32 %v7077, %v7127
        %v7129 = vpop.f32.mrf.mxu0
        %v7130 = vadd.f32 %v7079, %v7129
        %7131 = vmatprep.mubr.bf16.mxu0 %v1371
        %7132 = vmatmul.mubr.bf16.gmra.mxu0 %v1370
        %v7133 = vpop.f32.mrf.mxu0
        %v7134 = vadd.f32 %v7083, %v7133
        %v7135 = vpop.f32.mrf.mxu0
        %v7136 = vadd.f32 %v7085, %v7135
        %v7137 = vpop.f32.mrf.mxu0
        %v7138 = vpop.f32.mrf.mxu0
        %7139 = vdwg.mxu0
        %7140 = vmatprep.subr.bf16.mxu0 %v4795
        %7141 = vmatpush1.bf16.msra.mxu0 %v4794
        %7142 = vmatprep.subr.bf16.mxu0 %v4791
        %7143 = vmatpush1.bf16.msra.mxu0 %v4790
        %7144 = vmatprep.subr.bf16.mxu0 %v4787
        %7145 = vmatpush1.bf16.msra.mxu0 %v4786
        %7146 = vmatprep.subr.bf16.mxu0 %v4783
        %7147 = vmatpush1.bf16.msra.mxu0 %v4782
        %7148 = vmatprep.subr.bf16.mxu0 %v4779
        %7149 = vmatpush1.bf16.msra.mxu0 %v4778
        %7150 = vmatprep.subr.bf16.mxu0 %v4775
        %7151 = vmatpush1.bf16.msra.mxu0 %v4774
        %7152 = vmatprep.subr.bf16.mxu0 %v4771
        %7153 = vmatpush1.bf16.msra.mxu0 %v4770
        %7154 = vmatprep.subr.bf16.mxu0 %v4767
        %7155 = vmatpush1.bf16.msra.mxu0 %v4766
        %7156 = vmatprep.subr.bf16.mxu0 %v4827
        %7157 = vmatpush2.bf16.msra.mxu0 %v4826
        %7158 = vmatprep.subr.bf16.mxu0 %v4823
        %7159 = vmatpush2.bf16.msra.mxu0 %v4822
        %7160 = vmatprep.subr.bf16.mxu0 %v4819
        %7161 = vmatpush2.bf16.msra.mxu0 %v4818
        %7162 = vmatprep.subr.bf16.mxu0 %v4815
        %7163 = vmatpush2.bf16.msra.mxu0 %v4814
        %7164 = vmatprep.subr.bf16.mxu0 %v4811
        %7165 = vmatpush2.bf16.msra.mxu0 %v4810
        %7166 = vmatprep.subr.bf16.mxu0 %v4807
        %7167 = vmatpush2.bf16.msra.mxu0 %v4806
        %7168 = vmatprep.subr.bf16.mxu0 %v4803
        %7169 = vmatpush2.bf16.msra.mxu0 %v4802
        %7170 = vmatprep.subr.bf16.mxu0 %v4799
        %7171 = vmatpush2.bf16.msra.mxu0 %v4798
        %7172 = vmatprep.mubr.bf16.mxu0 %v1345
        %7173 = vmatmul.mubr.bf16.gmra.mxu0 %v1344
        %v7174 = vpop.f32.mrf.mxu0
        %v7175 = vadd.f32 %v7124, %v7174
        %v7176 = vpop.f32.mrf.mxu0
        %v7177 = vadd.f32 %v7126, %v7176
        %v7178 = vpop.f32.mrf.mxu0
        %v7179 = vadd.f32 %v7128, %v7178
        %v7180 = vpop.f32.mrf.mxu0
        %v7181 = vadd.f32 %v7130, %v7180
        %7182 = vmatprep.mubr.bf16.mxu0 %v1373
        %7183 = vmatmul.mubr.bf16.gmra.mxu0 %v1372
        %v7184 = vpop.f32.mrf.mxu0
        %v7185 = vadd.f32 %v7134, %v7184
        %v7186 = vpop.f32.mrf.mxu0
        %v7187 = vadd.f32 %v7136, %v7186
        %v7188 = vpop.f32.mrf.mxu0
        %v7189 = vpop.f32.mrf.mxu0
        %7190 = vdwg.mxu0
        %7191 = vmatprep.subr.bf16.mxu0 %v4859
        %7192 = vmatpush1.bf16.msra.mxu0 %v4858
        %7193 = vmatprep.subr.bf16.mxu0 %v4855
        %7194 = vmatpush1.bf16.msra.mxu0 %v4854
        %7195 = vmatprep.subr.bf16.mxu0 %v4851
        %7196 = vmatpush1.bf16.msra.mxu0 %v4850
        %7197 = vmatprep.subr.bf16.mxu0 %v4847
        %7198 = vmatpush1.bf16.msra.mxu0 %v4846
        %7199 = vmatprep.subr.bf16.mxu0 %v4843
        %7200 = vmatpush1.bf16.msra.mxu0 %v4842
        %7201 = vmatprep.subr.bf16.mxu0 %v4839
        %7202 = vmatpush1.bf16.msra.mxu0 %v4838
        %7203 = vmatprep.subr.bf16.mxu0 %v4835
        %7204 = vmatpush1.bf16.msra.mxu0 %v4834
        %7205 = vmatprep.subr.bf16.mxu0 %v4831
        %7206 = vmatpush1.bf16.msra.mxu0 %v4830
        %7207 = vmatprep.subr.bf16.mxu0 %v4891
        %7208 = vmatpush2.bf16.msra.mxu0 %v4890
        %7209 = vmatprep.subr.bf16.mxu0 %v4887
        %7210 = vmatpush2.bf16.msra.mxu0 %v4886
        %7211 = vmatprep.subr.bf16.mxu0 %v4883
        %7212 = vmatpush2.bf16.msra.mxu0 %v4882
        %7213 = vmatprep.subr.bf16.mxu0 %v4879
        %7214 = vmatpush2.bf16.msra.mxu0 %v4878
        %7215 = vmatprep.subr.bf16.mxu0 %v4875
        %7216 = vmatpush2.bf16.msra.mxu0 %v4874
        %7217 = vmatprep.subr.bf16.mxu0 %v4871
        %7218 = vmatpush2.bf16.msra.mxu0 %v4870
        %7219 = vmatprep.subr.bf16.mxu0 %v4867
        %7220 = vmatpush2.bf16.msra.mxu0 %v4866
        %7221 = vmatprep.subr.bf16.mxu0 %v4863
        %7222 = vmatpush2.bf16.msra.mxu0 %v4862
        %7223 = vmatprep.mubr.bf16.mxu0 %v1347
        %7224 = vmatmul.mubr.bf16.gmra.mxu0 %v1346
        %v7225 = vpop.f32.mrf.mxu0
        %v7226 = vadd.f32 %v7175, %v7225
        %v7227 = vpop.f32.mrf.mxu0
        %v7228 = vadd.f32 %v7177, %v7227
        %v7229 = vpop.f32.mrf.mxu0
        %v7230 = vadd.f32 %v7179, %v7229
        %v7231 = vpop.f32.mrf.mxu0
        %v7232 = vadd.f32 %v7181, %v7231
        %7233 = vmatprep.mubr.bf16.mxu0 %v1375
        %7234 = vmatmul.mubr.bf16.gmra.mxu0 %v1374
        %v7235 = vpop.f32.mrf.mxu0
        %v7236 = vadd.f32 %v7185, %v7235
        %v7237 = vpop.f32.mrf.mxu0
        %v7238 = vadd.f32 %v7187, %v7237
        %v7239 = vpop.f32.mrf.mxu0
        %v7240 = vpop.f32.mrf.mxu0
        %7241 = vdwg.mxu0
        %7242 = vmatprep.subr.bf16.mxu0 %v4923
        %7243 = vmatpush1.bf16.msra.mxu0 %v4922
        %7244 = vmatprep.subr.bf16.mxu0 %v4919
        %7245 = vmatpush1.bf16.msra.mxu0 %v4918
        %7246 = vmatprep.subr.bf16.mxu0 %v4915
        %7247 = vmatpush1.bf16.msra.mxu0 %v4914
        %7248 = vmatprep.subr.bf16.mxu0 %v4911
        %7249 = vmatpush1.bf16.msra.mxu0 %v4910
        %7250 = vmatprep.subr.bf16.mxu0 %v4907
        %7251 = vmatpush1.bf16.msra.mxu0 %v4906
        %7252 = vmatprep.subr.bf16.mxu0 %v4903
        %7253 = vmatpush1.bf16.msra.mxu0 %v4902
        %7254 = vmatprep.subr.bf16.mxu0 %v4899
        %7255 = vmatpush1.bf16.msra.mxu0 %v4898
        %7256 = vmatprep.subr.bf16.mxu0 %v4895
        %7257 = vmatpush1.bf16.msra.mxu0 %v4894
        %7258 = vmatprep.subr.bf16.mxu0 %v4955
        %7259 = vmatpush2.bf16.msra.mxu0 %v4954
        %7260 = vmatprep.subr.bf16.mxu0 %v4951
        %7261 = vmatpush2.bf16.msra.mxu0 %v4950
        %7262 = vmatprep.subr.bf16.mxu0 %v4947
        %7263 = vmatpush2.bf16.msra.mxu0 %v4946
        %7264 = vmatprep.subr.bf16.mxu0 %v4943
        %7265 = vmatpush2.bf16.msra.mxu0 %v4942
        %7266 = vmatprep.subr.bf16.mxu0 %v4939
        %7267 = vmatpush2.bf16.msra.mxu0 %v4938
        %7268 = vmatprep.subr.bf16.mxu0 %v4935
        %7269 = vmatpush2.bf16.msra.mxu0 %v4934
        %7270 = vmatprep.subr.bf16.mxu0 %v4931
        %7271 = vmatpush2.bf16.msra.mxu0 %v4930
        %7272 = vmatprep.subr.bf16.mxu0 %v4927
        %7273 = vmatpush2.bf16.msra.mxu0 %v4926
        %7274 = vmatprep.mubr.bf16.mxu0 %v1349
        %7275 = vmatmul.mubr.bf16.gmra.mxu0 %v1348
        %v7276 = vpop.f32.mrf.mxu0
        %v7277 = vadd.f32 %v7226, %v7276
        %v7278 = vpop.f32.mrf.mxu0
        %v7279 = vadd.f32 %v7228, %v7278
        %v7280 = vpop.f32.mrf.mxu0
        %v7281 = vadd.f32 %v7230, %v7280
        %v7282 = vpop.f32.mrf.mxu0
        %v7283 = vadd.f32 %v7232, %v7282
        %7284 = vmatprep.mubr.bf16.mxu0 %v1377
        %7285 = vmatmul.mubr.bf16.gmra.mxu0 %v1376
        %v7286 = vpop.f32.mrf.mxu0
        %v7287 = vadd.f32 %v7236, %v7286
        %v7288 = vpop.f32.mrf.mxu0
        %v7289 = vadd.f32 %v7238, %v7288
        %v7290 = vpop.f32.mrf.mxu0
        %v7291 = vpop.f32.mrf.mxu0
        %7292 = vdwg.mxu0
        %7293 = vmatprep.subr.bf16.mxu0 %v4987
        %7294 = vmatpush1.bf16.msra.mxu0 %v4986
        %7295 = vmatprep.subr.bf16.mxu0 %v4983
        %7296 = vmatpush1.bf16.msra.mxu0 %v4982
        %7297 = vmatprep.subr.bf16.mxu0 %v4979
        %7298 = vmatpush1.bf16.msra.mxu0 %v4978
        %7299 = vmatprep.subr.bf16.mxu0 %v4975
        %7300 = vmatpush1.bf16.msra.mxu0 %v4974
        %7301 = vmatprep.subr.bf16.mxu0 %v4971
        %7302 = vmatpush1.bf16.msra.mxu0 %v4970
        %7303 = vmatprep.subr.bf16.mxu0 %v4967
        %7304 = vmatpush1.bf16.msra.mxu0 %v4966
        %7305 = vmatprep.subr.bf16.mxu0 %v4963
        %7306 = vmatpush1.bf16.msra.mxu0 %v4962
        %7307 = vmatprep.subr.bf16.mxu0 %v4959
        %7308 = vmatpush1.bf16.msra.mxu0 %v4958
        %7309 = vmatprep.subr.bf16.mxu0 %v5019
        %7310 = vmatpush2.bf16.msra.mxu0 %v5018
        %7311 = vmatprep.subr.bf16.mxu0 %v5015
        %7312 = vmatpush2.bf16.msra.mxu0 %v5014
        %7313 = vmatprep.subr.bf16.mxu0 %v5011
        %7314 = vmatpush2.bf16.msra.mxu0 %v5010
        %7315 = vmatprep.subr.bf16.mxu0 %v5007
        %7316 = vmatpush2.bf16.msra.mxu0 %v5006
        %7317 = vmatprep.subr.bf16.mxu0 %v5003
        %7318 = vmatpush2.bf16.msra.mxu0 %v5002
        %7319 = vmatprep.subr.bf16.mxu0 %v4999
        %7320 = vmatpush2.bf16.msra.mxu0 %v4998
        %7321 = vmatprep.subr.bf16.mxu0 %v4995
        %7322 = vmatpush2.bf16.msra.mxu0 %v4994
        %7323 = vmatprep.subr.bf16.mxu0 %v4991
        %7324 = vmatpush2.bf16.msra.mxu0 %v4990
        %7325 = vmatprep.mubr.bf16.mxu0 %v1351
        %7326 = vmatmul.mubr.bf16.gmra.mxu0 %v1350
        %v7327 = vpop.f32.mrf.mxu0
        %v7328 = vadd.f32 %v7277, %v7327
        %v7329 = vpop.f32.mrf.mxu0
        %v7330 = vadd.f32 %v7279, %v7329
        %v7331 = vpop.f32.mrf.mxu0
        %v7332 = vadd.f32 %v7281, %v7331
        %v7333 = vpop.f32.mrf.mxu0
        %v7334 = vadd.f32 %v7283, %v7333
        %7335 = vmatprep.mubr.bf16.mxu0 %v1379
        %7336 = vmatmul.mubr.bf16.gmra.mxu0 %v1378
        %v7337 = vpop.f32.mrf.mxu0
        %v7338 = vadd.f32 %v7287, %v7337
        %v7339 = vpop.f32.mrf.mxu0
        %v7340 = vadd.f32 %v7289, %v7339
        %v7341 = vpop.f32.mrf.mxu0
        %v7342 = vpop.f32.mrf.mxu0
        %7343 = vdwg.mxu0
        %v7344 = vadd.f32 %v248, %v6614
        %v7345 = vadd.f32 %v249, %v6616
        %v7346 = vadd.f32 %v250, %v7328
        %v7347 = vadd.f32 %v251, %v7330
        %v7348 = vadd.f32 %v252, %v6618
        %v7349 = vadd.f32 %v253, %v6620
        %v7350 = vadd.f32 %v254, %v7332
        %v7351 = vadd.f32 %v255, %v7334
        %v7352 = vadd.f32 %v256, %v6624
        %v7353 = vadd.f32 %v257, %v6626
        %v7354 = vadd.f32 %v258, %v7338
        %v7355 = vadd.f32 %v259, %v7340
        %7356 = vst [vmem:[#allocation8] sm:$0xff] %v7344
        %7357 = vst [vmem:[#allocation8 + $0x8] sm:$0xff] %v7345
        %7358 = vst [vmem:[#allocation8 + $0x10] sm:$0xff] %v7346
        %7359 = vst [vmem:[#allocation8 + $0x18] sm:$0xff] %v7347
        %7360 = vst [vmem:[#allocation8 + $0x20] sm:$0xff] %v7348
        %7361 = vst [vmem:[#allocation8 + $0x28] sm:$0xff] %v7349
        %7362 = vst [vmem:[#allocation8 + $0x30] sm:$0xff] %v7350
        %7363 = vst [vmem:[#allocation8 + $0x38] sm:$0xff] %v7351
        %7364 = vst [vmem:[#allocation8 + $0x40] sm:$0xff] %v7352
        %7365 = vst [vmem:[#allocation8 + $0x48] sm:$0xff] %v7353
        %7366 = vst [vmem:[#allocation8 + $0x50] sm:$0xff] %v7354
        %7367 = vst [vmem:[#allocation8 + $0x58] sm:$0xff] %v7355
        %p7368 = scmp.eq.s32.totalorder %s21, 6
        // Predicated region
        $region49: #{tpu_custom_call.1} parent=31 // pred_check
          %p7369 = pneg %p7368
        $region50: #{tpu_custom_call.1} parent=31 // pred_check_branch
          %7371 = sbr.rel (%p7369) target = $region52
        $region51: #{tpu_custom_call.1} parent=31 // pred_region
          %v7372 = vld [vmem:[#allocation8] sm:$0xff]
          %v7373 = vld [vmem:[#allocation8 + $0x8] sm:$0xff]
          %v7374 = vld [vmem:[#allocation8 + $0x10] sm:$0xff]
          %v7375 = vld [vmem:[#allocation8 + $0x18] sm:$0xff]
          %v7376 = vld [vmem:[#allocation8 + $0x20] sm:$0xff]
          %v7377 = vld [vmem:[#allocation8 + $0x28] sm:$0xff]
          %v7378 = vld [vmem:[#allocation8 + $0x30] sm:$0xff]
          %v7379 = vld [vmem:[#allocation8 + $0x38] sm:$0xff]
          %v7380 = vld [vmem:[#allocation8 + $0x40] sm:$0xff]
          %v7381 = vld [vmem:[#allocation8 + $0x48] sm:$0xff]
          %v7382 = vld [vmem:[#allocation8 + $0x50] sm:$0xff]
          %v7383 = vld [vmem:[#allocation8 + $0x58] sm:$0xff]
          %v7384 = vld [vmem:[#allocation7] sm:$0xf]
          %v7386 = vlaneseq
          %v7387 = vshrl.u32 %v7386, 7
          %v7388 = vsub.s32 0, %v7387
          %v7389 = vrot.slane %v7384, %v7388
          %v7390 = vlaneseq
          %v7391 = vshrl.u32 %v7390, 7
          %v7392 = vsub.s32 1, %v7391
          %v7393 = vrot.slane %v7384, %v7392
          %v7394 = vlaneseq
          %v7395 = vshrl.u32 %v7394, 7
          %v7396 = vsub.s32 2, %v7395
          %v7397 = vrot.slane %v7384, %v7396
          %v7398 = vlaneseq
          %v7399 = vshrl.u32 %v7398, 7
          %v7400 = vsub.s32 3, %v7399
          %v7401 = vrot.slane %v7384, %v7400
          %v7406 = vadd.f32 %v7372, %v7389
          %v7407 = vadd.f32 %v7373, %v7393
          %v7408 = vadd.f32 %v7374, %v7397
          %v7409 = vadd.f32 %v7375, %v7401
          %v7410 = vadd.f32 %v7376, %v7389
          %v7411 = vadd.f32 %v7377, %v7393
          %v7412 = vadd.f32 %v7378, %v7397
          %v7413 = vadd.f32 %v7379, %v7401
          %v7414 = vadd.f32 %v7380, %v7389
          %v7415 = vadd.f32 %v7381, %v7393
          %v7416 = vadd.f32 %v7382, %v7397
          %v7417 = vadd.f32 %v7383, %v7401
          %7418 = vst [vmem:[#allocation8] sm:$0xff] %v7406
          %7419 = vst [vmem:[#allocation8 + $0x8] sm:$0xff] %v7407
          %7420 = vst [vmem:[#allocation8 + $0x10] sm:$0xff] %v7408
          %7421 = vst [vmem:[#allocation8 + $0x18] sm:$0xff] %v7409
          %7422 = vst [vmem:[#allocation8 + $0x20] sm:$0xff] %v7410
          %7423 = vst [vmem:[#allocation8 + $0x28] sm:$0xff] %v7411
          %7424 = vst [vmem:[#allocation8 + $0x30] sm:$0xff] %v7412
          %7425 = vst [vmem:[#allocation8 + $0x38] sm:$0xff] %v7413
          %7426 = vst [vmem:[#allocation8 + $0x40] sm:$0xff] %v7414
          %7427 = vst [vmem:[#allocation8 + $0x48] sm:$0xff] %v7415
          %7428 = vst [vmem:[#allocation8 + $0x50] sm:$0xff] %v7416
          %7429 = vst [vmem:[#allocation8 + $0x58] sm:$0xff] %v7417
        $region52: #{tpu_custom_call.1} parent=31 // pred_fallthru
          _
        // Predicated region
        $region53: #{tpu_custom_call.1} parent=31 // pred_check
          %p7430 = pneg %p107
        $region54: #{tpu_custom_call.1} parent=31 // pred_check_branch
          %7432 = sbr.rel (%p7430) target = $region56
        $region55: #{tpu_custom_call.1} parent=31 // pred_region
          %s7434 = ssub.s32 1536, 1536
          %7435 = vsyncadd [#allocation4], %s7434
          %s7436 = sshll.u32 [#allocation8], 4
          %s7437 = int_to_ptr.vmem [resolvable:$true] %s7436
          %7442 = dma.vmem_to_hbm [thread:$0]  %s7437, 1536, %s3, [#allocation4], 512, 512, 32
        $region56: #{tpu_custom_call.1} parent=31 // pred_fallthru
          _
        // Predicated region
        $region57: #{tpu_custom_call.1} parent=31 // pred_check
          %p7443 = pneg %p107
        $region58: #{tpu_custom_call.1} parent=31 // pred_check_branch
          %7445 = sbr.rel (%p7443) target = $region60
        $region59: #{tpu_custom_call.1} parent=31 // pred_region
          %7446 = dma.done [#allocation4], 1536
        $region60: #{tpu_custom_call.1} parent=31 // pred_fallthru
          _
      $region32: #{tpu_custom_call.1} parent=5 // pred_fallthru
        _
      %p7447 = scmp.le.s32.totalorder 2, %s16
      // Predicated region
      $region61: #{tpu_custom_call.1} parent=5 // pred_check
        %p7448 = pneg %p7447
      $region62: #{tpu_custom_call.1} parent=5 // pred_check_branch
        %7450 = sbr.rel (%p7448) target = $region64
      $region63: #{tpu_custom_call.1} parent=5 // pred_region
        %s7451 = ssub.s32 %s16, 2
      $region64: #{tpu_custom_call.1} parent=5 // pred_fallthru
        _
    $region6: #{tpu_custom_call.1} parent=1 // loop_footer
      %s20 = sadd.s32 1, %s16
    $region7: #{tpu_custom_call.1} parent=1 // loop_footer_branch
      %15 = sbr.rel target = $region3
    $region8: #{tpu_custom_call.1} parent=1 // loop_exit
      _
    %7452 = vsyncpa [#allocation3], 1
    %s7453 = scalar_lea.sflag [#allocation3], 1
    %7454 = vsyncpa %s7453, 1
    %7455 = vsyncpa [#allocation6], 1
    %s7456 = scalar_lea.sflag [#allocation6], 1
    %7457 = vsyncpa %s7456, 1
    %7458 = vsyncpa [#allocation4], 1
    %s7459 = scalar_lea.sflag [#allocation4], 1
    %7460 = vsyncpa %s7459, 1

</llo_original>
